<compile_context>
chip_gen: v5e
topology: v5e:2x2
jax: 0.10.0
libtpu: 0.0.40
codegen_flags: <defaults>
</compile_context>

<pallas_src>
import functools

import jax
import jax.numpy as jnp
from jax.experimental import pallas as pl
from jax.experimental.pallas import tpu as pltpu


# ------------------------------ kernel helpers -------------------------------

def _conv3x3_im2col(src_f32, w_ref, b_ref, mask_left, mask_right, *, H, W, relu):
    """3x3 'SAME' conv on a flattened (H*W, Cin) image as ONE im2col matmul.

    src_f32   : (H*W, Cin) f32 activation (VMEM value)
    w_ref     : (9*Cin, Cout) bf16 weights (tap-major HWIO flattening)
    b_ref     : (1, Cout) f32 bias
    mask_left : (H*W, 1) bool, False where column index == 0      (tap dw=-1)
    mask_right: (H*W, 1) bool, False where column index == W-1    (tap dw=+1)
    returns (H*W, Cout) f32 with bias (and optional ReLU) applied.
    """
    HW = H * W
    C_in = src_f32.shape[-1]
    # PAD >= W+1 keeps every tap offset in range; W+8 keeps the pad concat
    # sublane-aligned when W is a multiple of 8.
    PAD = W + 8

    src = src_f32.astype(jnp.bfloat16)                       # single hoisted cast
    zpad = jnp.zeros((PAD, C_in), jnp.bfloat16)
    padded = jnp.concatenate([zpad, src, zpad], axis=0)      # zero row-halo, (HW+2*PAD, Cin)

    taps = []
    for kh in range(3):
        for kw in range(3):
            start = PAD + (kh - 1) * W + (kw - 1)            # static tap offset
            t = jax.lax.slice_in_dim(padded, start, start + HW, axis=0)  # (HW, Cin) bf16
            if kw == 0:                                      # column w-1 < 0
                t = jnp.where(mask_left, t, 0)
            elif kw == 2:                                    # column w+1 >= W
                t = jnp.where(mask_right, t, 0)
            taps.append(t)
    patch = jnp.concatenate(taps, axis=1)                    # (HW, 9*Cin) bf16 im2col tile

    # One K = 9*Cin MXU matmul, f32 accumulation.
    acc = jnp.dot(patch, w_ref[...], preferred_element_type=jnp.float32)
    acc = acc + b_ref[...]
    if relu:
        acc = jnp.maximum(acc, 0.0)
    return acc


def _shortcut_block_kernel(x_ref, w1_ref, b1_ref, w2_ref, b2_ref, o_ref, *, H, W):
    """out = x + conv2(relu(conv1(x))) for one batch image, fully fused."""
    HW = H * W
    x = x_ref[0]                                             # (HW, C) f32

    # Column-validity masks: grid-invariant, computed once, shared by both convs.
    w_idx = jax.lax.broadcasted_iota(jnp.int32, (HW, 1), 0) % W
    mask_left = w_idx != 0
    mask_right = w_idx != (W - 1)

    # sub(x): conv1 -> ReLU -> conv2, intermediate h never leaves VMEM.
    h = _conv3x3_im2col(x, w1_ref, b1_ref, mask_left, mask_right, H=H, W=W, relu=True)
    y = _conv3x3_im2col(h, w2_ref, b2_ref, mask_left, mask_right, H=H, W=W, relu=False)

    # ShortcutBlock residual fused into the epilogue.
    o_ref[0] = (x + y).astype(o_ref.dtype)


# ----------------------------- ShortcutBlock ---------------------------------

def shortcut_block_forward(x_nhwc, params):
    """out = x + sub(x),  sub = Conv3x3 -> ReLU -> Conv3x3 (single fused kernel)."""
    B, H, W, C = x_nhwc.shape
    HW = H * W
    x_flat = x_nhwc.reshape(B, HW, C)

    # HWIO (3,3,Cin,Cout) -> (9*Cin, Cout), tap-major, matching the im2col tile.
    w1 = params['w1'].reshape(9 * C, C).astype(jnp.bfloat16)
    w2 = params['w2'].reshape(9 * C, C).astype(jnp.bfloat16)
    b1 = params['b1'].reshape(1, C).astype(jnp.float32)
    b2 = params['b2'].reshape(1, C).astype(jnp.float32)

    kernel = functools.partial(_shortcut_block_kernel, H=H, W=W)

    out = pl.pallas_call(
        kernel,
        out_shape=jax.ShapeDtypeStruct((B, HW, C), x_flat.dtype),
        grid=(B,),
        in_specs=[
            pl.BlockSpec((1, HW, C), lambda i: (i, 0, 0)),     # x (also the residual)
            pl.BlockSpec((9 * C, C), lambda i: (0, 0)),        # w1
            pl.BlockSpec((1, C), lambda i: (0, 0)),            # b1
            pl.BlockSpec((9 * C, C), lambda i: (0, 0)),        # w2
            pl.BlockSpec((1, C), lambda i: (0, 0)),            # b2
        ],
        out_specs=pl.BlockSpec((1, HW, C), lambda i: (i, 0, 0)),
        compiler_params=pltpu.CompilerParams(
            dimension_semantics=("parallel",)),                # feeds both TCs on v7x
    )(x_flat, w1, b1, w2, b2)
    return out.reshape(B, H, W, C)


def reference_forward(x_nhwc, params):
    """Pure-JAX f32 reference (lax.conv), for a tolerance check."""
    dn = ('NHWC', 'HWIO', 'NHWC')
    prec = jax.lax.Precision.HIGHEST
    h = jax.lax.conv_general_dilated(x_nhwc, params['w1'], (1, 1), 'SAME',
                                     dimension_numbers=dn, precision=prec)
    h = jnp.maximum(h + params['b1'], 0.0)
    y = jax.lax.conv_general_dilated(h, params['w2'], (1, 1), 'SAME',
                                     dimension_numbers=dn, precision=prec)
    y = y + params['b2']
    return x_nhwc + y


# ---------------------------------- main --------------------------------------

if __name__ == "__main__":
    B, H, W, C = 2, 16, 16, 64

    key = jax.random.PRNGKey(0)
    kx, kw1, kw2, kb1, kb2 = jax.random.split(key, 5)
    x = jax.random.normal(kx, (B, H, W, C), jnp.float32)
    params = dict(
        w1=jax.random.normal(kw1, (3, 3, C, C), jnp.float32) * 0.03,
        b1=jax.random.normal(kb1, (C,), jnp.float32) * 0.01,
        w2=jax.random.normal(kw2, (3, 3, C, C), jnp.float32) * 0.03,
        b2=jax.random.normal(kb2, (C,), jnp.float32) * 0.01,
    )

    fwd = jax.jit(shortcut_block_forward)
    out = jax.block_until_ready(fwd(x, params))

    assert out.shape == (B, H, W, C), out.shape
    assert bool(jnp.all(jnp.isfinite(out)))

    # bf16-MXU operands vs f32 reference: loose tolerance (inference-grade).
    ref = reference_forward(x, params)
    err = float(jnp.max(jnp.abs(out - ref)))
    assert err < 0.15, f"max abs err vs reference = {err}"

    print("KERNEL_OK")
</pallas_src>

<mosaic_0001>
module attributes {stable_mosaic.version = 11 : i64} {
  func.func @_shortcut_block_kernel(%arg0: i32, %arg1: memref<1x256x64xf32, #tpu.memory_space<vmem>>, %arg2: memref<576x64xbf16, #tpu.memory_space<vmem>>, %arg3: memref<1x64xf32, #tpu.memory_space<vmem>>, %arg4: memref<576x64xbf16, #tpu.memory_space<vmem>>, %arg5: memref<1x64xf32, #tpu.memory_space<vmem>>, %arg6: memref<1x256x64xf32, #tpu.memory_space<vmem>>) attributes {dimension_semantics = [#tpu.dimension_semantics<parallel>], iteration_bounds = array<i64: 2>, scalar_prefetch = 0 : i64, scratch_operands = 0 : i64, tpu.core_type = #tpu.core_type<tc>, window_params = [{transform_indices = @transform_0, window_bounds = array<i64: 1, 256, 64>}, {pipeline_mode = #tpu.pipeline_mode<synchronous>, transform_indices = @transform_1, window_bounds = array<i64: 576, 64>}, {pipeline_mode = #tpu.pipeline_mode<synchronous>, transform_indices = @transform_2, window_bounds = array<i64: 1, 64>}, {pipeline_mode = #tpu.pipeline_mode<synchronous>, transform_indices = @transform_3, window_bounds = array<i64: 576, 64>}, {pipeline_mode = #tpu.pipeline_mode<synchronous>, transform_indices = @transform_4, window_bounds = array<i64: 1, 64>}, {transform_indices = @transform_5, window_bounds = array<i64: 1, 256, 64>}]} {
    %c0 = arith.constant 0 : index
    %c0_0 = arith.constant 0 : index
    %c0_1 = arith.constant 0 : index
    %0 = vector.load %arg1[%c0, %c0_0, %c0_1] : memref<1x256x64xf32, #tpu.memory_space<vmem>>, vector<1x256x64xf32>
    %1 = vector.shape_cast %0 : vector<1x256x64xf32> to vector<256x64xf32>
    %2 = tpu.iota {dimensions = array<i32: 0>} : vector<256x1xi32>
    %c16_i32 = arith.constant 16 : i32
    %c0_i32 = arith.constant 0 : i32
    %3 = arith.cmpi eq, %c16_i32, %c0_i32 : i32
    %c1_i32 = arith.constant 1 : i32
    %4 = arith.select %3, %c1_i32, %c16_i32 : i32
    %5 = vector.broadcast %4 : i32 to vector<256x1xi32>
    %6 = arith.remsi %2, %5 : vector<256x1xi32>
    %c0_i32_2 = arith.constant 0 : i32
    %7 = vector.broadcast %c0_i32_2 : i32 to vector<256x1xi32>
    %8 = arith.cmpi ne, %6, %7 : vector<256x1xi32>
    %c0_i32_3 = arith.constant 0 : i32
    %9 = vector.broadcast %c0_i32_3 : i32 to vector<256x1xi32>
    %10 = arith.cmpi slt, %6, %9 : vector<256x1xi32>
    %c0_i32_4 = arith.constant 0 : i32
    %11 = arith.cmpi slt, %4, %c0_i32_4 : i32
    %12 = vector.broadcast %11 : i1 to vector<256x1xi1>
    %13 = vector.broadcast %12 : vector<256x1xi1> to vector<256x1xi1>
    %14 = arith.xori %10, %13 : vector<256x1xi1>
    %15 = arith.andi %14, %8 : vector<256x1xi1>
    %16 = vector.broadcast %4 : i32 to vector<256x1xi32>
    %17 = arith.addi %6, %16 : vector<256x1xi32>
    %18 = arith.select %15, %17, %6 : vector<256x1xi1>, vector<256x1xi32>
    %c0_i32_5 = arith.constant 0 : i32
    %19 = vector.broadcast %c0_i32_5 : i32 to vector<256x1xi32>
    %20 = arith.cmpi ne, %18, %19 : vector<256x1xi32>
    %c15_i32 = arith.constant 15 : i32
    %21 = vector.broadcast %c15_i32 : i32 to vector<256x1xi32>
    %22 = arith.cmpi ne, %18, %21 : vector<256x1xi32>
    %23 = arith.truncf %1 : vector<256x64xf32> to vector<256x64xbf16>
    %cst = arith.constant 0.000000e+00 : bf16
    %24 = vector.broadcast %cst : bf16 to vector<24x64xbf16>
    %25 = tpu.concatenate %24, %23, %24 in 0 : vector<24x64xbf16>, vector<256x64xbf16>, vector<24x64xbf16> -> vector<304x64xbf16>
    %26 = vector.extract_strided_slice %25 {offsets = [7, 0], sizes = [256, 64], strides = [1, 1]} : vector<304x64xbf16> to vector<256x64xbf16>
    %c0_i32_6 = arith.constant 0 : i32
    %27 = arith.sitofp %c0_i32_6 : i32 to bf16
    %28 = vector.shape_cast %20 : vector<256x1xi1> to vector<256x1xi1>
    %29 = vector.broadcast %28 : vector<256x1xi1> to vector<256x64xi1>
    %30 = vector.broadcast %27 : bf16 to vector<256x64xbf16>
    %31 = arith.select %29, %26, %30 : vector<256x64xi1>, vector<256x64xbf16>
    %32 = vector.extract_strided_slice %25 {offsets = [8, 0], sizes = [256, 64], strides = [1, 1]} : vector<304x64xbf16> to vector<256x64xbf16>
    %33 = vector.extract_strided_slice %25 {offsets = [9, 0], sizes = [256, 64], strides = [1, 1]} : vector<304x64xbf16> to vector<256x64xbf16>
    %c0_i32_7 = arith.constant 0 : i32
    %34 = arith.sitofp %c0_i32_7 : i32 to bf16
    %35 = vector.shape_cast %22 : vector<256x1xi1> to vector<256x1xi1>
    %36 = vector.broadcast %35 : vector<256x1xi1> to vector<256x64xi1>
    %37 = vector.broadcast %34 : bf16 to vector<256x64xbf16>
    %38 = arith.select %36, %33, %37 : vector<256x64xi1>, vector<256x64xbf16>
    %39 = vector.extract_strided_slice %25 {offsets = [23, 0], sizes = [256, 64], strides = [1, 1]} : vector<304x64xbf16> to vector<256x64xbf16>
    %c0_i32_8 = arith.constant 0 : i32
    %40 = arith.sitofp %c0_i32_8 : i32 to bf16
    %41 = vector.shape_cast %20 : vector<256x1xi1> to vector<256x1xi1>
    %42 = vector.broadcast %41 : vector<256x1xi1> to vector<256x64xi1>
    %43 = vector.broadcast %40 : bf16 to vector<256x64xbf16>
    %44 = arith.select %42, %39, %43 : vector<256x64xi1>, vector<256x64xbf16>
    %45 = vector.extract_strided_slice %25 {offsets = [24, 0], sizes = [256, 64], strides = [1, 1]} : vector<304x64xbf16> to vector<256x64xbf16>
    %46 = vector.extract_strided_slice %25 {offsets = [25, 0], sizes = [256, 64], strides = [1, 1]} : vector<304x64xbf16> to vector<256x64xbf16>
    %c0_i32_9 = arith.constant 0 : i32
    %47 = arith.sitofp %c0_i32_9 : i32 to bf16
    %48 = vector.shape_cast %22 : vector<256x1xi1> to vector<256x1xi1>
    %49 = vector.broadcast %48 : vector<256x1xi1> to vector<256x64xi1>
    %50 = vector.broadcast %47 : bf16 to vector<256x64xbf16>
    %51 = arith.select %49, %46, %50 : vector<256x64xi1>, vector<256x64xbf16>
    %52 = vector.extract_strided_slice %25 {offsets = [39, 0], sizes = [256, 64], strides = [1, 1]} : vector<304x64xbf16> to vector<256x64xbf16>
    %c0_i32_10 = arith.constant 0 : i32
    %53 = arith.sitofp %c0_i32_10 : i32 to bf16
    %54 = vector.shape_cast %20 : vector<256x1xi1> to vector<256x1xi1>
    %55 = vector.broadcast %54 : vector<256x1xi1> to vector<256x64xi1>
    %56 = vector.broadcast %53 : bf16 to vector<256x64xbf16>
    %57 = arith.select %55, %52, %56 : vector<256x64xi1>, vector<256x64xbf16>
    %58 = vector.extract_strided_slice %25 {offsets = [40, 0], sizes = [256, 64], strides = [1, 1]} : vector<304x64xbf16> to vector<256x64xbf16>
    %59 = vector.extract_strided_slice %25 {offsets = [41, 0], sizes = [256, 64], strides = [1, 1]} : vector<304x64xbf16> to vector<256x64xbf16>
    %c0_i32_11 = arith.constant 0 : i32
    %60 = arith.sitofp %c0_i32_11 : i32 to bf16
    %61 = vector.shape_cast %22 : vector<256x1xi1> to vector<256x1xi1>
    %62 = vector.broadcast %61 : vector<256x1xi1> to vector<256x64xi1>
    %63 = vector.broadcast %60 : bf16 to vector<256x64xbf16>
    %64 = arith.select %62, %59, %63 : vector<256x64xi1>, vector<256x64xbf16>
    %65 = tpu.concatenate %31, %32, %38, %44, %45, %51, %57, %58, %64 in 1 : vector<256x64xbf16>, vector<256x64xbf16>, vector<256x64xbf16>, vector<256x64xbf16>, vector<256x64xbf16>, vector<256x64xbf16>, vector<256x64xbf16>, vector<256x64xbf16>, vector<256x64xbf16> -> vector<256x576xbf16>
    %c0_12 = arith.constant 0 : index
    %c0_13 = arith.constant 0 : index
    %66 = vector.load %arg2[%c0_12, %c0_13] : memref<576x64xbf16, #tpu.memory_space<vmem>>, vector<576x64xbf16>
    %cst_14 = arith.constant dense<0.000000e+00> : vector<256x64xf32>
    %67 = tpu.matmul %65, %66, %cst_14 {dimension_numbers = #tpu.dot_dimension_numbers<[1], [0], [0], [1], [0, 0, 1, 1], [], []>} : vector<256x576xbf16>, vector<576x64xbf16>, vector<256x64xf32> -> vector<256x64xf32>
    %c0_15 = arith.constant 0 : index
    %c0_16 = arith.constant 0 : index
    %68 = vector.load %arg3[%c0_15, %c0_16] : memref<1x64xf32, #tpu.memory_space<vmem>>, vector<1x64xf32>
    %69 = vector.broadcast %68 : vector<1x64xf32> to vector<256x64xf32>
    %70 = arith.addf %67, %69 : vector<256x64xf32>
    %cst_17 = arith.constant 0.000000e+00 : f32
    %71 = vector.broadcast %cst_17 : f32 to vector<256x64xf32>
    %72 = arith.maximumf %70, %71 : vector<256x64xf32>
    %73 = arith.truncf %72 : vector<256x64xf32> to vector<256x64xbf16>
    %cst_18 = arith.constant 0.000000e+00 : bf16
    %74 = vector.broadcast %cst_18 : bf16 to vector<24x64xbf16>
    %75 = tpu.concatenate %74, %73, %74 in 0 : vector<24x64xbf16>, vector<256x64xbf16>, vector<24x64xbf16> -> vector<304x64xbf16>
    %76 = vector.extract_strided_slice %75 {offsets = [7, 0], sizes = [256, 64], strides = [1, 1]} : vector<304x64xbf16> to vector<256x64xbf16>
    %c0_i32_19 = arith.constant 0 : i32
    %77 = arith.sitofp %c0_i32_19 : i32 to bf16
    %78 = vector.shape_cast %20 : vector<256x1xi1> to vector<256x1xi1>
    %79 = vector.broadcast %78 : vector<256x1xi1> to vector<256x64xi1>
    %80 = vector.broadcast %77 : bf16 to vector<256x64xbf16>
    %81 = arith.select %79, %76, %80 : vector<256x64xi1>, vector<256x64xbf16>
    %82 = vector.extract_strided_slice %75 {offsets = [8, 0], sizes = [256, 64], strides = [1, 1]} : vector<304x64xbf16> to vector<256x64xbf16>
    %83 = vector.extract_strided_slice %75 {offsets = [9, 0], sizes = [256, 64], strides = [1, 1]} : vector<304x64xbf16> to vector<256x64xbf16>
    %c0_i32_20 = arith.constant 0 : i32
    %84 = arith.sitofp %c0_i32_20 : i32 to bf16
    %85 = vector.shape_cast %22 : vector<256x1xi1> to vector<256x1xi1>
    %86 = vector.broadcast %85 : vector<256x1xi1> to vector<256x64xi1>
    %87 = vector.broadcast %84 : bf16 to vector<256x64xbf16>
    %88 = arith.select %86, %83, %87 : vector<256x64xi1>, vector<256x64xbf16>
    %89 = vector.extract_strided_slice %75 {offsets = [23, 0], sizes = [256, 64], strides = [1, 1]} : vector<304x64xbf16> to vector<256x64xbf16>
    %c0_i32_21 = arith.constant 0 : i32
    %90 = arith.sitofp %c0_i32_21 : i32 to bf16
    %91 = vector.shape_cast %20 : vector<256x1xi1> to vector<256x1xi1>
    %92 = vector.broadcast %91 : vector<256x1xi1> to vector<256x64xi1>
    %93 = vector.broadcast %90 : bf16 to vector<256x64xbf16>
    %94 = arith.select %92, %89, %93 : vector<256x64xi1>, vector<256x64xbf16>
    %95 = vector.extract_strided_slice %75 {offsets = [24, 0], sizes = [256, 64], strides = [1, 1]} : vector<304x64xbf16> to vector<256x64xbf16>
    %96 = vector.extract_strided_slice %75 {offsets = [25, 0], sizes = [256, 64], strides = [1, 1]} : vector<304x64xbf16> to vector<256x64xbf16>
    %c0_i32_22 = arith.constant 0 : i32
    %97 = arith.sitofp %c0_i32_22 : i32 to bf16
    %98 = vector.shape_cast %22 : vector<256x1xi1> to vector<256x1xi1>
    %99 = vector.broadcast %98 : vector<256x1xi1> to vector<256x64xi1>
    %100 = vector.broadcast %97 : bf16 to vector<256x64xbf16>
    %101 = arith.select %99, %96, %100 : vector<256x64xi1>, vector<256x64xbf16>
    %102 = vector.extract_strided_slice %75 {offsets = [39, 0], sizes = [256, 64], strides = [1, 1]} : vector<304x64xbf16> to vector<256x64xbf16>
    %c0_i32_23 = arith.constant 0 : i32
    %103 = arith.sitofp %c0_i32_23 : i32 to bf16
    %104 = vector.shape_cast %20 : vector<256x1xi1> to vector<256x1xi1>
    %105 = vector.broadcast %104 : vector<256x1xi1> to vector<256x64xi1>
    %106 = vector.broadcast %103 : bf16 to vector<256x64xbf16>
    %107 = arith.select %105, %102, %106 : vector<256x64xi1>, vector<256x64xbf16>
    %108 = vector.extract_strided_slice %75 {offsets = [40, 0], sizes = [256, 64], strides = [1, 1]} : vector<304x64xbf16> to vector<256x64xbf16>
    %109 = vector.extract_strided_slice %75 {offsets = [41, 0], sizes = [256, 64], strides = [1, 1]} : vector<304x64xbf16> to vector<256x64xbf16>
    %c0_i32_24 = arith.constant 0 : i32
    %110 = arith.sitofp %c0_i32_24 : i32 to bf16
    %111 = vector.shape_cast %22 : vector<256x1xi1> to vector<256x1xi1>
    %112 = vector.broadcast %111 : vector<256x1xi1> to vector<256x64xi1>
    %113 = vector.broadcast %110 : bf16 to vector<256x64xbf16>
    %114 = arith.select %112, %109, %113 : vector<256x64xi1>, vector<256x64xbf16>
    %115 = tpu.concatenate %81, %82, %88, %94, %95, %101, %107, %108, %114 in 1 : vector<256x64xbf16>, vector<256x64xbf16>, vector<256x64xbf16>, vector<256x64xbf16>, vector<256x64xbf16>, vector<256x64xbf16>, vector<256x64xbf16>, vector<256x64xbf16>, vector<256x64xbf16> -> vector<256x576xbf16>
    %c0_25 = arith.constant 0 : index
    %c0_26 = arith.constant 0 : index
    %116 = vector.load %arg4[%c0_25, %c0_26] : memref<576x64xbf16, #tpu.memory_space<vmem>>, vector<576x64xbf16>
    %cst_27 = arith.constant dense<0.000000e+00> : vector<256x64xf32>
    %117 = tpu.matmul %115, %116, %cst_27 {dimension_numbers = #tpu.dot_dimension_numbers<[1], [0], [0], [1], [0, 0, 1, 1], [], []>} : vector<256x576xbf16>, vector<576x64xbf16>, vector<256x64xf32> -> vector<256x64xf32>
    %c0_28 = arith.constant 0 : index
    %c0_29 = arith.constant 0 : index
    %118 = vector.load %arg5[%c0_28, %c0_29] : memref<1x64xf32, #tpu.memory_space<vmem>>, vector<1x64xf32>
    %119 = vector.broadcast %118 : vector<1x64xf32> to vector<256x64xf32>
    %120 = arith.addf %117, %119 : vector<256x64xf32>
    %121 = arith.addf %1, %120 : vector<256x64xf32>
    %c0_30 = arith.constant 0 : index
    %c0_31 = arith.constant 0 : index
    %c0_32 = arith.constant 0 : index
    %122 = vector.load %arg6[%c0_30, %c0_31, %c0_32] : memref<1x256x64xf32, #tpu.memory_space<vmem>>, vector<1x256x64xf32>
    %123 = vector.shape_cast %122 : vector<1x256x64xf32> to vector<256x64xf32>
    %124 = vector.shape_cast %121 : vector<256x64xf32> to vector<1x256x64xf32>
    tpu.vector_store %arg6[%c0_30, %c0_31, %c0_32], %124 {strides = array<i32>} : memref<1x256x64xf32, #tpu.memory_space<vmem>>, vector<1x256x64xf32>,
    return
  }
  func.func @transform_0(%arg0: i32) -> (i32, i32, i32) {
    %c0_i32 = arith.constant 0 : i32
    %c0_i32_0 = arith.constant 0 : i32
    %c0_i32_1 = arith.constant 0 : i32
    return %arg0, %c0_i32, %c0_i32_0 : i32, i32, i32
  }
  func.func @transform_1(%arg0: i32) -> (i32, i32) {
    %c0_i32 = arith.constant 0 : i32
    %c0_i32_0 = arith.constant 0 : i32
    %c0_i32_1 = arith.constant 0 : i32
    return %c0_i32, %c0_i32_0 : i32, i32
  }
  func.func @transform_2(%arg0: i32) -> (i32, i32) {
    %c0_i32 = arith.constant 0 : i32
    %c0_i32_0 = arith.constant 0 : i32
    %c0_i32_1 = arith.constant 0 : i32
    return %c0_i32, %c0_i32_0 : i32, i32
  }
  func.func @transform_3(%arg0: i32) -> (i32, i32) {
    %c0_i32 = arith.constant 0 : i32
    %c0_i32_0 = arith.constant 0 : i32
    %c0_i32_1 = arith.constant 0 : i32
    return %c0_i32, %c0_i32_0 : i32, i32
  }
  func.func @transform_4(%arg0: i32) -> (i32, i32) {
    %c0_i32 = arith.constant 0 : i32
    %c0_i32_0 = arith.constant 0 : i32
    %c0_i32_1 = arith.constant 0 : i32
    return %c0_i32, %c0_i32_0 : i32, i32
  }
  func.func @transform_5(%arg0: i32) -> (i32, i32, i32) {
    %c0_i32 = arith.constant 0 : i32
    %c0_i32_0 = arith.constant 0 : i32
    %c0_i32_1 = arith.constant 0 : i32
    return %arg0, %c0_i32, %c0_i32_0 : i32, i32, i32
  }
}

</mosaic_0001>

<llo_original>
// kernel: shortcut_block_forward.1
$region0: #{shortcut_block_forward.1}
  #allocation0 [shape = 'u32[]', space=smem, size = 0x4, offset = 0x4, fixed_abs, tag = 'smem constant byte address 0x4 - core index']
  #allocation1 [shape = 'u32[72,128]{1,0:T(1,128)}', space=vmem, size = 0x9000, scoped, tag = 'internal scratch']
  %s0 = inlined_call_operand.vmem [shape: f32[2,256,64], index: 0, kind: input, shape index: {}]
  %s1 = inlined_call_operand.vmem [shape: bf16[576,64], index: 1, kind: input, shape index: {}]
  %s2 = inlined_call_operand.vmem [shape: f32[1,64], index: 2, kind: input, shape index: {}]
  %s3 = inlined_call_operand.vmem [shape: bf16[576,64], index: 3, kind: input, shape index: {}]
  %s4 = inlined_call_operand.vmem [shape: f32[1,64], index: 4, kind: input, shape index: {}]
  %s5 = inlined_call_operand.hbm [shape: f32[2,256,64], index: 5, kind: output, shape index: {}]
  %s6 = sld [smem:[#allocation0]]
  $region53: #{shortcut_block_forward.1} parent=0
    _
  %s8 = ssub.s32 1, %s6
  %s9 = scalar_select 0, %s8, %s6
  $region1: #{shortcut_block_forward.1} parent=0
    #allocation2 [shape = 'u8[262144]{0}', space=vmem, size = 0x40000, scoped, tag = 'output window, operand 0']
    #allocation3 [shape = 's32[2]{0}', space=sflag, size = 0x8, scoped, tag = 'scoped memory for shortcut_block_forward.1']
    %10 = vsyncpa [#allocation3], 0
    %s11 = scalar_lea.sflag [#allocation3], 1
    %12 = vsyncpa %s11, 0
    loop: start=0, step=1, limit=4
    $region2: #{shortcut_block_forward.1} parent=1 // loop_pre_header
      _
    $region3: #{shortcut_block_forward.1} parent=1 // loop_header
      %s14 = sphi 0, %s18
      %p15 = scmp.ge.s32.totalorder %s14, 4
      %s24 = sphi 0, %s26
      %s27 = sphi 0, %s24
      %s28 = sphi 0, %s27
      %s44 = sphi 0, %s28
      %s48 = sphi 0, %s48
      %s50 = sphi 0, %s48
      %s51 = sphi 0, %s50
      %s65 = sphi 0, %s51
      %s69 = sphi 0, %s69
      %s71 = sphi 0, %s69
      %s72 = sphi 0, %s71
      %s86 = sphi 0, %s72
      %s90 = sphi 0, %s90
      %s92 = sphi 0, %s90
      %s93 = sphi 0, %s92
      %s107 = sphi 0, %s93
      %s111 = sphi 0, %s111
      %s113 = sphi 0, %s111
      %s114 = sphi 0, %s113
      %s128 = sphi 0, %s114
      %s134 = sphi 0, %s136
      %s137 = sphi 0, %s134
      %s138 = sphi 0, %s137
      %s154 = sphi 0, %s138
    $region4: #{shortcut_block_forward.1} parent=1 // loop_header_branch
      %17 = sbr.rel (%p15) target = $region8
    $region5: #{shortcut_block_forward.1} parent=1 // loop_body
      %s19 = ssub.s32 %s14, 1
      %s20 = ssub.s32 %s14, 2
      %s21 = sadd.s32 %s14, 1
      %s22 = ssub.s32 %s14, %s21
      %p23 = scmp.eq.s32.totalorder %s22, 0
      %s25 = sadd.s32 %s24, 1
      %s26 = scalar_select %p23, %s24, %s25
      %p29 = pneg %p23
      %p30 = scmp.eq.s32.totalorder %s14, 1
      %p31 = por %p29, %p30
      %p32 = scmp.ne.s32.totalorder %s24, %s27
      %p33 = scmp.eq.s32.totalorder %s14, 0
      %p34 = por %p32, %p33
      %p35 = scmp.ne.s32.totalorder %s24, %s27
      %p36 = scmp.eq.s32.totalorder %s19, 1
      %p37 = por %p35, %p36
      %p38 = scmp.ne.s32.totalorder %s27, %s28
      %p39 = scmp.eq.s32.totalorder %s19, 0
      %p40 = por %p38, %p39
      %p41 = scmp.ne.s32.totalorder %s27, %s28
      %p42 = scmp.eq.s32.totalorder %s20, 1
      %p43 = por %p41, %p42
      %p45 = scmp.ne.s32.totalorder %s28, %s44
      %p46 = scmp.eq.s32.totalorder %s20, 0
      %p47 = por %p45, %p46
      %s49 = sadd.s32 %s48, 1
      %p52 = scmp.eq.s32.totalorder %s14, 1
      %p53 = scmp.ne.s32.totalorder %s48, %s50
      %p54 = scmp.eq.s32.totalorder %s14, 0
      %p55 = por %p53, %p54
      %p56 = scmp.ne.s32.totalorder %s48, %s50
      %p57 = scmp.eq.s32.totalorder %s19, 1
      %p58 = por %p56, %p57
      %p59 = scmp.ne.s32.totalorder %s50, %s51
      %p60 = scmp.eq.s32.totalorder %s19, 0
      %p61 = por %p59, %p60
      %p62 = scmp.ne.s32.totalorder %s50, %s51
      %p63 = scmp.eq.s32.totalorder %s20, 1
      %p64 = por %p62, %p63
      %p66 = scmp.ne.s32.totalorder %s51, %s65
      %p67 = scmp.eq.s32.totalorder %s20, 0
      %p68 = por %p66, %p67
      %s70 = sadd.s32 %s69, 1
      %p73 = scmp.eq.s32.totalorder %s14, 1
      %p74 = scmp.ne.s32.totalorder %s69, %s71
      %p75 = scmp.eq.s32.totalorder %s14, 0
      %p76 = por %p74, %p75
      %p77 = scmp.ne.s32.totalorder %s69, %s71
      %p78 = scmp.eq.s32.totalorder %s19, 1
      %p79 = por %p77, %p78
      %p80 = scmp.ne.s32.totalorder %s71, %s72
      %p81 = scmp.eq.s32.totalorder %s19, 0
      %p82 = por %p80, %p81
      %p83 = scmp.ne.s32.totalorder %s71, %s72
      %p84 = scmp.eq.s32.totalorder %s20, 1
      %p85 = por %p83, %p84
      %p87 = scmp.ne.s32.totalorder %s72, %s86
      %p88 = scmp.eq.s32.totalorder %s20, 0
      %p89 = por %p87, %p88
      %s91 = sadd.s32 %s90, 1
      %p94 = scmp.eq.s32.totalorder %s14, 1
      %p95 = scmp.ne.s32.totalorder %s90, %s92
      %p96 = scmp.eq.s32.totalorder %s14, 0
      %p97 = por %p95, %p96
      %p98 = scmp.ne.s32.totalorder %s90, %s92
      %p99 = scmp.eq.s32.totalorder %s19, 1
      %p100 = por %p98, %p99
      %p101 = scmp.ne.s32.totalorder %s92, %s93
      %p102 = scmp.eq.s32.totalorder %s19, 0
      %p103 = por %p101, %p102
      %p104 = scmp.ne.s32.totalorder %s92, %s93
      %p105 = scmp.eq.s32.totalorder %s20, 1
      %p106 = por %p104, %p105
      %p108 = scmp.ne.s32.totalorder %s93, %s107
      %p109 = scmp.eq.s32.totalorder %s20, 0
      %p110 = por %p108, %p109
      %s112 = sadd.s32 %s111, 1
      %p115 = scmp.eq.s32.totalorder %s14, 1
      %p116 = scmp.ne.s32.totalorder %s111, %s113
      %p117 = scmp.eq.s32.totalorder %s14, 0
      %p118 = por %p116, %p117
      %p119 = scmp.ne.s32.totalorder %s111, %s113
      %p120 = scmp.eq.s32.totalorder %s19, 1
      %p121 = por %p119, %p120
      %p122 = scmp.ne.s32.totalorder %s113, %s114
      %p123 = scmp.eq.s32.totalorder %s19, 0
      %p124 = por %p122, %p123
      %p125 = scmp.ne.s32.totalorder %s113, %s114
      %p126 = scmp.eq.s32.totalorder %s20, 1
      %p127 = por %p125, %p126
      %p129 = scmp.ne.s32.totalorder %s114, %s128
      %p130 = scmp.eq.s32.totalorder %s20, 0
      %p131 = por %p129, %p130
      %s132 = ssub.s32 %s14, %s21
      %p133 = scmp.eq.s32.totalorder %s132, 0
      %s135 = sadd.s32 %s134, 1
      %s136 = scalar_select %p133, %s134, %s135
      %p139 = pneg %p133
      %p140 = scmp.eq.s32.totalorder %s14, 1
      %p141 = por %p139, %p140
      %p142 = scmp.ne.s32.totalorder %s134, %s137
      %p143 = scmp.eq.s32.totalorder %s14, 0
      %p144 = por %p142, %p143
      %p145 = scmp.ne.s32.totalorder %s134, %s137
      %p146 = scmp.eq.s32.totalorder %s19, 1
      %p147 = por %p145, %p146
      %p148 = scmp.ne.s32.totalorder %s137, %s138
      %p149 = scmp.eq.s32.totalorder %s19, 0
      %p150 = por %p148, %p149
      %p151 = scmp.ne.s32.totalorder %s137, %s138
      %p152 = scmp.eq.s32.totalorder %s20, 1
      %p153 = por %p151, %p152
      %p155 = scmp.ne.s32.totalorder %s138, %s154
      %p156 = scmp.eq.s32.totalorder %s20, 0
      %p157 = por %p155, %p156
      %p158 = scmp.le.s32.totalorder 1, %s14
      %p159 = scmp.lt.s32.totalorder %s14, 3
      %p160 = pnand %p158, %p159
      %p161 = pneg %p160
      // Predicated region
      $region9: #{shortcut_block_forward.1} parent=5 // pred_check
        _
      $region10: #{shortcut_block_forward.1} parent=5 // pred_check_branch
        %163 = sbr.rel (%p160) target = $region12
      $region11: #{shortcut_block_forward.1} parent=5 // pred_region
        %s164 = ssub.s32 %s14, 1
        // Predicated region
        $region13: #{shortcut_block_forward.1} parent=11 // pred_check
          %p165 = pneg %p61
        $region14: #{shortcut_block_forward.1} parent=11 // pred_check_branch
          %167 = sbr.rel (%p165) target = $region16
        $region15: #{shortcut_block_forward.1} parent=11 // pred_region
          _
        $region16: #{shortcut_block_forward.1} parent=11 // pred_fallthru
          _
        // Predicated region
        $region17: #{shortcut_block_forward.1} parent=11 // pred_check
          %p168 = pneg %p82
        $region18: #{shortcut_block_forward.1} parent=11 // pred_check_branch
          %170 = sbr.rel (%p168) target = $region20
        $region19: #{shortcut_block_forward.1} parent=11 // pred_region
          _
        $region20: #{shortcut_block_forward.1} parent=11 // pred_fallthru
          _
        // Predicated region
        $region21: #{shortcut_block_forward.1} parent=11 // pred_check
          %p171 = pneg %p103
        $region22: #{shortcut_block_forward.1} parent=11 // pred_check_branch
          %173 = sbr.rel (%p171) target = $region24
        $region23: #{shortcut_block_forward.1} parent=11 // pred_region
          _
        $region24: #{shortcut_block_forward.1} parent=11 // pred_fallthru
          _
        // Predicated region
        $region25: #{shortcut_block_forward.1} parent=11 // pred_check
          %p174 = pneg %p124
        $region26: #{shortcut_block_forward.1} parent=11 // pred_check_branch
          %176 = sbr.rel (%p174) target = $region28
        $region27: #{shortcut_block_forward.1} parent=11 // pred_region
          _
        $region28: #{shortcut_block_forward.1} parent=11 // pred_fallthru
          _
      $region12: #{shortcut_block_forward.1} parent=5 // pred_fallthru
        _
      %p177 = scmp.lt.s32.totalorder %s14, 2
      // Predicated region
      $region29: #{shortcut_block_forward.1} parent=5 // pred_check
        %p178 = pneg %p177
      $region30: #{shortcut_block_forward.1} parent=5 // pred_check_branch
        %180 = sbr.rel (%p178) target = $region32
      $region31: #{shortcut_block_forward.1} parent=5 // pred_region
        // Predicated region
        $region33: #{shortcut_block_forward.1} parent=31 // pred_check
          %p181 = pneg %p34
        $region34: #{shortcut_block_forward.1} parent=31 // pred_check_branch
          %183 = sbr.rel (%p181) target = $region36
        $region35: #{shortcut_block_forward.1} parent=31 // pred_region
          %p184 = scmp.lt.s32.totalorder %s14, 1
          %s185 = scalar_select %p184, %s14, 1
          %s186 = smul.addr %s185, 32
          %s187 = smul.addr %s186, 8
          %s188 = scalar_lea.vmem %s0, %s187
        $region36: #{shortcut_block_forward.1} parent=31 // pred_fallthru
          _
      $region32: #{shortcut_block_forward.1} parent=5 // pred_fallthru
        _
      %p189 = scmp.le.s32.totalorder 1, %s14
      %p190 = scmp.lt.s32.totalorder %s14, 3
      %p191 = pnand %p189, %p190
      %p192 = pneg %p191
      // Predicated region
      $region37: #{shortcut_block_forward.1} parent=5 // pred_check
        _
      $region38: #{shortcut_block_forward.1} parent=5 // pred_check_branch
        %194 = sbr.rel (%p191) target = $region40
      $region39: #{shortcut_block_forward.1} parent=5 // pred_region
        %s195 = ssub.s32 %s14, 1
        %p196 = scmp.lt.s32.totalorder %s19, 1
        %s197 = scalar_select %p196, %s19, 1
        %s198 = smul.addr %s197, 32
        %s199 = smul.addr %s198, 8
        %s200 = scalar_lea.vmem %s0, %s199
        %p201 = pneg %p40
        %p202 = pneg %p37
        %p203 = pneg %p61
        %p204 = pneg %p58
        %p205 = pneg %p82
        %p206 = pneg %p79
        %p207 = pneg %p103
        %p208 = pneg %p100
        %p209 = pneg %p124
        %p210 = pneg %p121
        %p211 = pneg %p150
        %p212 = pneg %p147
        %s213 = sand.u32 %s137, 1
        %s214 = scalar_lea.sflag [#allocation3], %s213
        %s215 = sand.u32 %s137, 1
        %s216 = smul.addr %s215, 256
        %s217 = scalar_lea.vmem [#allocation2], %s216
        %p218 = scmp.lt.s32.totalorder %s19, 1
        %s219 = scalar_select %p218, %s19, 1
        %s220 = smul.addr %s219, 32
        %s221 = smul.addr %s220, 8
        %s222 = scalar_lea.vmem %s0, %s221
        %v226 = vld [vmem:[%s222] sm:$0xff]
        %v227 = vld [vmem:[%s222 + $0x8] sm:$0xff]
        %v228 = vld [vmem:[%s222 + $0x10] sm:$0xff]
        %v229 = vld [vmem:[%s222 + $0x18] sm:$0xff]
        %v230 = vld [vmem:[%s222 + $0x20] sm:$0xff]
        %v231 = vld [vmem:[%s222 + $0x28] sm:$0xff]
        %v232 = vld [vmem:[%s222 + $0x30] sm:$0xff]
        %v233 = vld [vmem:[%s222 + $0x38] sm:$0xff]
        %v234 = vld [vmem:[%s222 + $0x40] sm:$0xff]
        %v235 = vld [vmem:[%s222 + $0x48] sm:$0xff]
        %v236 = vld [vmem:[%s222 + $0x50] sm:$0xff]
        %v237 = vld [vmem:[%s222 + $0x58] sm:$0xff]
        %v238 = vld [vmem:[%s222 + $0x60] sm:$0xff]
        %v239 = vld [vmem:[%s222 + $0x68] sm:$0xff]
        %v240 = vld [vmem:[%s222 + $0x70] sm:$0xff]
        %v241 = vld [vmem:[%s222 + $0x78] sm:$0xff]
        %v242 = vld [vmem:[%s222 + $0x80] sm:$0xff]
        %v243 = vld [vmem:[%s222 + $0x88] sm:$0xff]
        %v244 = vld [vmem:[%s222 + $0x90] sm:$0xff]
        %v245 = vld [vmem:[%s222 + $0x98] sm:$0xff]
        %v246 = vld [vmem:[%s222 + $0xa0] sm:$0xff]
        %v247 = vld [vmem:[%s222 + $0xa8] sm:$0xff]
        %v248 = vld [vmem:[%s222 + $0xb0] sm:$0xff]
        %v249 = vld [vmem:[%s222 + $0xb8] sm:$0xff]
        %v250 = vld [vmem:[%s222 + $0xc0] sm:$0xff]
        %v251 = vld [vmem:[%s222 + $0xc8] sm:$0xff]
        %v252 = vld [vmem:[%s222 + $0xd0] sm:$0xff]
        %v253 = vld [vmem:[%s222 + $0xd8] sm:$0xff]
        %v254 = vld [vmem:[%s222 + $0xe0] sm:$0xff]
        %v255 = vld [vmem:[%s222 + $0xe8] sm:$0xff]
        %v256 = vld [vmem:[%s222 + $0xf0] sm:$0xff]
        %v257 = vld [vmem:[%s222 + $0xf8] sm:$0xff]
        %v258 = vlaneseq
        %v259 = vshrl.u32 %v258, 7
        %v260 = vadd.s32 %v259, 8
        %v261 = vadd.s32 %v259, 16
        %v262 = vadd.s32 %v259, 24
        %v263 = vadd.s32 %v259, 32
        %v264 = vadd.s32 %v259, 40
        %v265 = vadd.s32 %v259, 48
        %v266 = vadd.s32 %v259, 56
        %v267 = vadd.s32 %v259, 64
        %v268 = vadd.s32 %v259, 72
        %v269 = vadd.s32 %v259, 80
        %v270 = vadd.s32 %v259, 88
        %v271 = vadd.s32 %v259, 96
        %v272 = vadd.s32 %v259, 104
        %v273 = vadd.s32 %v259, 112
        %v274 = vadd.s32 %v259, 120
        %v275 = vadd.s32 %v259, 128
        %v276 = vadd.s32 %v259, 136
        %v277 = vadd.s32 %v259, 144
        %v278 = vadd.s32 %v259, 152
        %v279 = vadd.s32 %v259, 160
        %v280 = vadd.s32 %v259, 168
        %v281 = vadd.s32 %v259, 176
        %v282 = vadd.s32 %v259, 184
        %v283 = vadd.s32 %v259, 192
        %v284 = vadd.s32 %v259, 200
        %v285 = vadd.s32 %v259, 208
        %v286 = vadd.s32 %v259, 216
        %v287 = vadd.s32 %v259, 224
        %v288 = vadd.s32 %v259, 232
        %v289 = vadd.s32 %v259, 240
        %v290 = vadd.s32 %v259, 248
        %vm291 = vcmp.lt.s32.totalorder %v259, 0
        %v292 = vsub.s32 0, %v259
        %v293 = vsel %vm291, %v292, %v259
        %v294 = vshrl.u32 %v293, 4
        %v295 = vand.u32 %v293, 15
        %v296 = vsub.s32 0, %v295
        %v297 = vsel %vm291, %v296, %v295
        %vm298 = vcmp.lt.s32.totalorder %v260, 0
        %v299 = vsub.s32 0, %v260
        %v300 = vsel %vm298, %v299, %v260
        %v301 = vshrl.u32 %v300, 4
        %v302 = vand.u32 %v300, 15
        %v303 = vsub.s32 0, %v302
        %v304 = vsel %vm298, %v303, %v302
        %vm305 = vcmp.lt.s32.totalorder %v261, 0
        %v306 = vsub.s32 0, %v261
        %v307 = vsel %vm305, %v306, %v261
        %v308 = vshrl.u32 %v307, 4
        %v309 = vand.u32 %v307, 15
        %v310 = vsub.s32 0, %v309
        %v311 = vsel %vm305, %v310, %v309
        %vm312 = vcmp.lt.s32.totalorder %v262, 0
        %v313 = vsub.s32 0, %v262
        %v314 = vsel %vm312, %v313, %v262
        %v315 = vshrl.u32 %v314, 4
        %v316 = vand.u32 %v314, 15
        %v317 = vsub.s32 0, %v316
        %v318 = vsel %vm312, %v317, %v316
        %vm319 = vcmp.lt.s32.totalorder %v263, 0
        %v320 = vsub.s32 0, %v263
        %v321 = vsel %vm319, %v320, %v263
        %v322 = vshrl.u32 %v321, 4
        %v323 = vand.u32 %v321, 15
        %v324 = vsub.s32 0, %v323
        %v325 = vsel %vm319, %v324, %v323
        %vm326 = vcmp.lt.s32.totalorder %v264, 0
        %v327 = vsub.s32 0, %v264
        %v328 = vsel %vm326, %v327, %v264
        %v329 = vshrl.u32 %v328, 4
        %v330 = vand.u32 %v328, 15
        %v331 = vsub.s32 0, %v330
        %v332 = vsel %vm326, %v331, %v330
        %vm333 = vcmp.lt.s32.totalorder %v265, 0
        %v334 = vsub.s32 0, %v265
        %v335 = vsel %vm333, %v334, %v265
        %v336 = vshrl.u32 %v335, 4
        %v337 = vand.u32 %v335, 15
        %v338 = vsub.s32 0, %v337
        %v339 = vsel %vm333, %v338, %v337
        %vm340 = vcmp.lt.s32.totalorder %v266, 0
        %v341 = vsub.s32 0, %v266
        %v342 = vsel %vm340, %v341, %v266
        %v343 = vshrl.u32 %v342, 4
        %v344 = vand.u32 %v342, 15
        %v345 = vsub.s32 0, %v344
        %v346 = vsel %vm340, %v345, %v344
        %vm347 = vcmp.lt.s32.totalorder %v267, 0
        %v348 = vsub.s32 0, %v267
        %v349 = vsel %vm347, %v348, %v267
        %v350 = vshrl.u32 %v349, 4
        %v351 = vand.u32 %v349, 15
        %v352 = vsub.s32 0, %v351
        %v353 = vsel %vm347, %v352, %v351
        %vm354 = vcmp.lt.s32.totalorder %v268, 0
        %v355 = vsub.s32 0, %v268
        %v356 = vsel %vm354, %v355, %v268
        %v357 = vshrl.u32 %v356, 4
        %v358 = vand.u32 %v356, 15
        %v359 = vsub.s32 0, %v358
        %v360 = vsel %vm354, %v359, %v358
        %vm361 = vcmp.lt.s32.totalorder %v269, 0
        %v362 = vsub.s32 0, %v269
        %v363 = vsel %vm361, %v362, %v269
        %v364 = vshrl.u32 %v363, 4
        %v365 = vand.u32 %v363, 15
        %v366 = vsub.s32 0, %v365
        %v367 = vsel %vm361, %v366, %v365
        %vm368 = vcmp.lt.s32.totalorder %v270, 0
        %v369 = vsub.s32 0, %v270
        %v370 = vsel %vm368, %v369, %v270
        %v371 = vshrl.u32 %v370, 4
        %v372 = vand.u32 %v370, 15
        %v373 = vsub.s32 0, %v372
        %v374 = vsel %vm368, %v373, %v372
        %vm375 = vcmp.lt.s32.totalorder %v271, 0
        %v376 = vsub.s32 0, %v271
        %v377 = vsel %vm375, %v376, %v271
        %v378 = vshrl.u32 %v377, 4
        %v379 = vand.u32 %v377, 15
        %v380 = vsub.s32 0, %v379
        %v381 = vsel %vm375, %v380, %v379
        %vm382 = vcmp.lt.s32.totalorder %v272, 0
        %v383 = vsub.s32 0, %v272
        %v384 = vsel %vm382, %v383, %v272
        %v385 = vshrl.u32 %v384, 4
        %v386 = vand.u32 %v384, 15
        %v387 = vsub.s32 0, %v386
        %v388 = vsel %vm382, %v387, %v386
        %vm389 = vcmp.lt.s32.totalorder %v273, 0
        %v390 = vsub.s32 0, %v273
        %v391 = vsel %vm389, %v390, %v273
        %v392 = vshrl.u32 %v391, 4
        %v393 = vand.u32 %v391, 15
        %v394 = vsub.s32 0, %v393
        %v395 = vsel %vm389, %v394, %v393
        %vm396 = vcmp.lt.s32.totalorder %v274, 0
        %v397 = vsub.s32 0, %v274
        %v398 = vsel %vm396, %v397, %v274
        %v399 = vshrl.u32 %v398, 4
        %v400 = vand.u32 %v398, 15
        %v401 = vsub.s32 0, %v400
        %v402 = vsel %vm396, %v401, %v400
        %vm403 = vcmp.lt.s32.totalorder %v275, 0
        %v404 = vsub.s32 0, %v275
        %v405 = vsel %vm403, %v404, %v275
        %v406 = vshrl.u32 %v405, 4
        %v407 = vand.u32 %v405, 15
        %v408 = vsub.s32 0, %v407
        %v409 = vsel %vm403, %v408, %v407
        %vm410 = vcmp.lt.s32.totalorder %v276, 0
        %v411 = vsub.s32 0, %v276
        %v412 = vsel %vm410, %v411, %v276
        %v413 = vshrl.u32 %v412, 4
        %v414 = vand.u32 %v412, 15
        %v415 = vsub.s32 0, %v414
        %v416 = vsel %vm410, %v415, %v414
        %vm417 = vcmp.lt.s32.totalorder %v277, 0
        %v418 = vsub.s32 0, %v277
        %v419 = vsel %vm417, %v418, %v277
        %v420 = vshrl.u32 %v419, 4
        %v421 = vand.u32 %v419, 15
        %v422 = vsub.s32 0, %v421
        %v423 = vsel %vm417, %v422, %v421
        %vm424 = vcmp.lt.s32.totalorder %v278, 0
        %v425 = vsub.s32 0, %v278
        %v426 = vsel %vm424, %v425, %v278
        %v427 = vshrl.u32 %v426, 4
        %v428 = vand.u32 %v426, 15
        %v429 = vsub.s32 0, %v428
        %v430 = vsel %vm424, %v429, %v428
        %vm431 = vcmp.lt.s32.totalorder %v279, 0
        %v432 = vsub.s32 0, %v279
        %v433 = vsel %vm431, %v432, %v279
        %v434 = vshrl.u32 %v433, 4
        %v435 = vand.u32 %v433, 15
        %v436 = vsub.s32 0, %v435
        %v437 = vsel %vm431, %v436, %v435
        %vm438 = vcmp.lt.s32.totalorder %v280, 0
        %v439 = vsub.s32 0, %v280
        %v440 = vsel %vm438, %v439, %v280
        %v441 = vshrl.u32 %v440, 4
        %v442 = vand.u32 %v440, 15
        %v443 = vsub.s32 0, %v442
        %v444 = vsel %vm438, %v443, %v442
        %vm445 = vcmp.lt.s32.totalorder %v281, 0
        %v446 = vsub.s32 0, %v281
        %v447 = vsel %vm445, %v446, %v281
        %v448 = vshrl.u32 %v447, 4
        %v449 = vand.u32 %v447, 15
        %v450 = vsub.s32 0, %v449
        %v451 = vsel %vm445, %v450, %v449
        %vm452 = vcmp.lt.s32.totalorder %v282, 0
        %v453 = vsub.s32 0, %v282
        %v454 = vsel %vm452, %v453, %v282
        %v455 = vshrl.u32 %v454, 4
        %v456 = vand.u32 %v454, 15
        %v457 = vsub.s32 0, %v456
        %v458 = vsel %vm452, %v457, %v456
        %vm459 = vcmp.lt.s32.totalorder %v283, 0
        %v460 = vsub.s32 0, %v283
        %v461 = vsel %vm459, %v460, %v283
        %v462 = vshrl.u32 %v461, 4
        %v463 = vand.u32 %v461, 15
        %v464 = vsub.s32 0, %v463
        %v465 = vsel %vm459, %v464, %v463
        %vm466 = vcmp.lt.s32.totalorder %v284, 0
        %v467 = vsub.s32 0, %v284
        %v468 = vsel %vm466, %v467, %v284
        %v469 = vshrl.u32 %v468, 4
        %v470 = vand.u32 %v468, 15
        %v471 = vsub.s32 0, %v470
        %v472 = vsel %vm466, %v471, %v470
        %vm473 = vcmp.lt.s32.totalorder %v285, 0
        %v474 = vsub.s32 0, %v285
        %v475 = vsel %vm473, %v474, %v285
        %v476 = vshrl.u32 %v475, 4
        %v477 = vand.u32 %v475, 15
        %v478 = vsub.s32 0, %v477
        %v479 = vsel %vm473, %v478, %v477
        %vm480 = vcmp.lt.s32.totalorder %v286, 0
        %v481 = vsub.s32 0, %v286
        %v482 = vsel %vm480, %v481, %v286
        %v483 = vshrl.u32 %v482, 4
        %v484 = vand.u32 %v482, 15
        %v485 = vsub.s32 0, %v484
        %v486 = vsel %vm480, %v485, %v484
        %vm487 = vcmp.lt.s32.totalorder %v287, 0
        %v488 = vsub.s32 0, %v287
        %v489 = vsel %vm487, %v488, %v287
        %v490 = vshrl.u32 %v489, 4
        %v491 = vand.u32 %v489, 15
        %v492 = vsub.s32 0, %v491
        %v493 = vsel %vm487, %v492, %v491
        %vm494 = vcmp.lt.s32.totalorder %v288, 0
        %v495 = vsub.s32 0, %v288
        %v496 = vsel %vm494, %v495, %v288
        %v497 = vshrl.u32 %v496, 4
        %v498 = vand.u32 %v496, 15
        %v499 = vsub.s32 0, %v498
        %v500 = vsel %vm494, %v499, %v498
        %vm501 = vcmp.lt.s32.totalorder %v289, 0
        %v502 = vsub.s32 0, %v289
        %v503 = vsel %vm501, %v502, %v289
        %v504 = vshrl.u32 %v503, 4
        %v505 = vand.u32 %v503, 15
        %v506 = vsub.s32 0, %v505
        %v507 = vsel %vm501, %v506, %v505
        %vm508 = vcmp.lt.s32.totalorder %v290, 0
        %v509 = vsub.s32 0, %v290
        %v510 = vsel %vm508, %v509, %v290
        %v511 = vshrl.u32 %v510, 4
        %v512 = vand.u32 %v510, 15
        %v513 = vsub.s32 0, %v512
        %v514 = vsel %vm508, %v513, %v512
        %vm515 = vcmp.ne.s32.totalorder %v297, 0
        %vm516 = vcmp.ne.s32.totalorder %v304, 0
        %vm517 = vcmp.ne.s32.totalorder %v311, 0
        %vm518 = vcmp.ne.s32.totalorder %v318, 0
        %vm519 = vcmp.ne.s32.totalorder %v325, 0
        %vm520 = vcmp.ne.s32.totalorder %v332, 0
        %vm521 = vcmp.ne.s32.totalorder %v339, 0
        %vm522 = vcmp.ne.s32.totalorder %v346, 0
        %vm523 = vcmp.ne.s32.totalorder %v353, 0
        %vm524 = vcmp.ne.s32.totalorder %v360, 0
        %vm525 = vcmp.ne.s32.totalorder %v367, 0
        %vm526 = vcmp.ne.s32.totalorder %v374, 0
        %vm527 = vcmp.ne.s32.totalorder %v381, 0
        %vm528 = vcmp.ne.s32.totalorder %v388, 0
        %vm529 = vcmp.ne.s32.totalorder %v395, 0
        %vm530 = vcmp.ne.s32.totalorder %v402, 0
        %vm531 = vcmp.ne.s32.totalorder %v409, 0
        %vm532 = vcmp.ne.s32.totalorder %v416, 0
        %vm533 = vcmp.ne.s32.totalorder %v423, 0
        %vm534 = vcmp.ne.s32.totalorder %v430, 0
        %vm535 = vcmp.ne.s32.totalorder %v437, 0
        %vm536 = vcmp.ne.s32.totalorder %v444, 0
        %vm537 = vcmp.ne.s32.totalorder %v451, 0
        %vm538 = vcmp.ne.s32.totalorder %v458, 0
        %vm539 = vcmp.ne.s32.totalorder %v465, 0
        %vm540 = vcmp.ne.s32.totalorder %v472, 0
        %vm541 = vcmp.ne.s32.totalorder %v479, 0
        %vm542 = vcmp.ne.s32.totalorder %v486, 0
        %vm543 = vcmp.ne.s32.totalorder %v493, 0
        %vm544 = vcmp.ne.s32.totalorder %v500, 0
        %vm545 = vcmp.ne.s32.totalorder %v507, 0
        %vm546 = vcmp.ne.s32.totalorder %v514, 0
        %vm547 = vcmp.lt.s32.totalorder %v297, 0
        %vm548 = vcmp.lt.s32.totalorder %v304, 0
        %vm549 = vcmp.lt.s32.totalorder %v311, 0
        %vm550 = vcmp.lt.s32.totalorder %v318, 0
        %vm551 = vcmp.lt.s32.totalorder %v325, 0
        %vm552 = vcmp.lt.s32.totalorder %v332, 0
        %vm553 = vcmp.lt.s32.totalorder %v339, 0
        %vm554 = vcmp.lt.s32.totalorder %v346, 0
        %vm555 = vcmp.lt.s32.totalorder %v353, 0
        %vm556 = vcmp.lt.s32.totalorder %v360, 0
        %vm557 = vcmp.lt.s32.totalorder %v367, 0
        %vm558 = vcmp.lt.s32.totalorder %v374, 0
        %vm559 = vcmp.lt.s32.totalorder %v381, 0
        %vm560 = vcmp.lt.s32.totalorder %v388, 0
        %vm561 = vcmp.lt.s32.totalorder %v395, 0
        %vm562 = vcmp.lt.s32.totalorder %v402, 0
        %vm563 = vcmp.lt.s32.totalorder %v409, 0
        %vm564 = vcmp.lt.s32.totalorder %v416, 0
        %vm565 = vcmp.lt.s32.totalorder %v423, 0
        %vm566 = vcmp.lt.s32.totalorder %v430, 0
        %vm567 = vcmp.lt.s32.totalorder %v437, 0
        %vm568 = vcmp.lt.s32.totalorder %v444, 0
        %vm569 = vcmp.lt.s32.totalorder %v451, 0
        %vm570 = vcmp.lt.s32.totalorder %v458, 0
        %vm571 = vcmp.lt.s32.totalorder %v465, 0
        %vm572 = vcmp.lt.s32.totalorder %v472, 0
        %vm573 = vcmp.lt.s32.totalorder %v479, 0
        %vm574 = vcmp.lt.s32.totalorder %v486, 0
        %vm575 = vcmp.lt.s32.totalorder %v493, 0
        %vm576 = vcmp.lt.s32.totalorder %v500, 0
        %vm577 = vcmp.lt.s32.totalorder %v507, 0
        %vm578 = vcmp.lt.s32.totalorder %v514, 0
        %vm579 = vmand %vm547, %vm515
        %vm580 = vmand %vm548, %vm516
        %vm581 = vmand %vm549, %vm517
        %vm582 = vmand %vm550, %vm518
        %vm583 = vmand %vm551, %vm519
        %vm584 = vmand %vm552, %vm520
        %vm585 = vmand %vm553, %vm521
        %vm586 = vmand %vm554, %vm522
        %vm587 = vmand %vm555, %vm523
        %vm588 = vmand %vm556, %vm524
        %vm589 = vmand %vm557, %vm525
        %vm590 = vmand %vm558, %vm526
        %vm591 = vmand %vm559, %vm527
        %vm592 = vmand %vm560, %vm528
        %vm593 = vmand %vm561, %vm529
        %vm594 = vmand %vm562, %vm530
        %vm595 = vmand %vm563, %vm531
        %vm596 = vmand %vm564, %vm532
        %vm597 = vmand %vm565, %vm533
        %vm598 = vmand %vm566, %vm534
        %vm599 = vmand %vm567, %vm535
        %vm600 = vmand %vm568, %vm536
        %vm601 = vmand %vm569, %vm537
        %vm602 = vmand %vm570, %vm538
        %vm603 = vmand %vm571, %vm539
        %vm604 = vmand %vm572, %vm540
        %vm605 = vmand %vm573, %vm541
        %vm606 = vmand %vm574, %vm542
        %vm607 = vmand %vm575, %vm543
        %vm608 = vmand %vm576, %vm544
        %vm609 = vmand %vm577, %vm545
        %vm610 = vmand %vm578, %vm546
        %v611 = vadd.s32 %v297, 16
        %v612 = vadd.s32 %v304, 16
        %v613 = vadd.s32 %v311, 16
        %v614 = vadd.s32 %v318, 16
        %v615 = vadd.s32 %v325, 16
        %v616 = vadd.s32 %v332, 16
        %v617 = vadd.s32 %v339, 16
        %v618 = vadd.s32 %v346, 16
        %v619 = vadd.s32 %v353, 16
        %v620 = vadd.s32 %v360, 16
        %v621 = vadd.s32 %v367, 16
        %v622 = vadd.s32 %v374, 16
        %v623 = vadd.s32 %v381, 16
        %v624 = vadd.s32 %v388, 16
        %v625 = vadd.s32 %v395, 16
        %v626 = vadd.s32 %v402, 16
        %v627 = vadd.s32 %v409, 16
        %v628 = vadd.s32 %v416, 16
        %v629 = vadd.s32 %v423, 16
        %v630 = vadd.s32 %v430, 16
        %v631 = vadd.s32 %v437, 16
        %v632 = vadd.s32 %v444, 16
        %v633 = vadd.s32 %v451, 16
        %v634 = vadd.s32 %v458, 16
        %v635 = vadd.s32 %v465, 16
        %v636 = vadd.s32 %v472, 16
        %v637 = vadd.s32 %v479, 16
        %v638 = vadd.s32 %v486, 16
        %v639 = vadd.s32 %v493, 16
        %v640 = vadd.s32 %v500, 16
        %v641 = vadd.s32 %v507, 16
        %v642 = vadd.s32 %v514, 16
        %v643 = vsel %vm579, %v611, %v297
        %v644 = vsel %vm580, %v612, %v304
        %v645 = vsel %vm581, %v613, %v311
        %v646 = vsel %vm582, %v614, %v318
        %v647 = vsel %vm583, %v615, %v325
        %v648 = vsel %vm584, %v616, %v332
        %v649 = vsel %vm585, %v617, %v339
        %v650 = vsel %vm586, %v618, %v346
        %v651 = vsel %vm587, %v619, %v353
        %v652 = vsel %vm588, %v620, %v360
        %v653 = vsel %vm589, %v621, %v367
        %v654 = vsel %vm590, %v622, %v374
        %v655 = vsel %vm591, %v623, %v381
        %v656 = vsel %vm592, %v624, %v388
        %v657 = vsel %vm593, %v625, %v395
        %v658 = vsel %vm594, %v626, %v402
        %v659 = vsel %vm595, %v627, %v409
        %v660 = vsel %vm596, %v628, %v416
        %v661 = vsel %vm597, %v629, %v423
        %v662 = vsel %vm598, %v630, %v430
        %v663 = vsel %vm599, %v631, %v437
        %v664 = vsel %vm600, %v632, %v444
        %v665 = vsel %vm601, %v633, %v451
        %v666 = vsel %vm602, %v634, %v458
        %v667 = vsel %vm603, %v635, %v465
        %v668 = vsel %vm604, %v636, %v472
        %v669 = vsel %vm605, %v637, %v479
        %v670 = vsel %vm606, %v638, %v486
        %v671 = vsel %vm607, %v639, %v493
        %v672 = vsel %vm608, %v640, %v500
        %v673 = vsel %vm609, %v641, %v507
        %v674 = vsel %vm610, %v642, %v514
        %vm675 = vcmp.ne.s32.totalorder %v643, 0
        %vm676 = vcmp.ne.s32.totalorder %v644, 0
        %vm677 = vcmp.ne.s32.totalorder %v645, 0
        %vm678 = vcmp.ne.s32.totalorder %v646, 0
        %vm679 = vcmp.ne.s32.totalorder %v647, 0
        %vm680 = vcmp.ne.s32.totalorder %v648, 0
        %vm681 = vcmp.ne.s32.totalorder %v649, 0
        %vm682 = vcmp.ne.s32.totalorder %v650, 0
        %vm683 = vcmp.ne.s32.totalorder %v651, 0
        %vm684 = vcmp.ne.s32.totalorder %v652, 0
        %vm685 = vcmp.ne.s32.totalorder %v653, 0
        %vm686 = vcmp.ne.s32.totalorder %v654, 0
        %vm687 = vcmp.ne.s32.totalorder %v655, 0
        %vm688 = vcmp.ne.s32.totalorder %v656, 0
        %vm689 = vcmp.ne.s32.totalorder %v657, 0
        %vm690 = vcmp.ne.s32.totalorder %v658, 0
        %vm691 = vcmp.ne.s32.totalorder %v659, 0
        %vm692 = vcmp.ne.s32.totalorder %v660, 0
        %vm693 = vcmp.ne.s32.totalorder %v661, 0
        %vm694 = vcmp.ne.s32.totalorder %v662, 0
        %vm695 = vcmp.ne.s32.totalorder %v663, 0
        %vm696 = vcmp.ne.s32.totalorder %v664, 0
        %vm697 = vcmp.ne.s32.totalorder %v665, 0
        %vm698 = vcmp.ne.s32.totalorder %v666, 0
        %vm699 = vcmp.ne.s32.totalorder %v667, 0
        %vm700 = vcmp.ne.s32.totalorder %v668, 0
        %vm701 = vcmp.ne.s32.totalorder %v669, 0
        %vm702 = vcmp.ne.s32.totalorder %v670, 0
        %vm703 = vcmp.ne.s32.totalorder %v671, 0
        %vm704 = vcmp.ne.s32.totalorder %v672, 0
        %vm705 = vcmp.ne.s32.totalorder %v673, 0
        %vm706 = vcmp.ne.s32.totalorder %v674, 0
        %vm707 = vcmp.ne.s32.totalorder %v643, 15
        %vm708 = vcmp.ne.s32.totalorder %v644, 15
        %vm709 = vcmp.ne.s32.totalorder %v645, 15
        %vm710 = vcmp.ne.s32.totalorder %v646, 15
        %vm711 = vcmp.ne.s32.totalorder %v647, 15
        %vm712 = vcmp.ne.s32.totalorder %v648, 15
        %vm713 = vcmp.ne.s32.totalorder %v649, 15
        %vm714 = vcmp.ne.s32.totalorder %v650, 15
        %vm715 = vcmp.ne.s32.totalorder %v651, 15
        %vm716 = vcmp.ne.s32.totalorder %v652, 15
        %vm717 = vcmp.ne.s32.totalorder %v653, 15
        %vm718 = vcmp.ne.s32.totalorder %v654, 15
        %vm719 = vcmp.ne.s32.totalorder %v655, 15
        %vm720 = vcmp.ne.s32.totalorder %v656, 15
        %vm721 = vcmp.ne.s32.totalorder %v657, 15
        %vm722 = vcmp.ne.s32.totalorder %v658, 15
        %vm723 = vcmp.ne.s32.totalorder %v659, 15
        %vm724 = vcmp.ne.s32.totalorder %v660, 15
        %vm725 = vcmp.ne.s32.totalorder %v661, 15
        %vm726 = vcmp.ne.s32.totalorder %v662, 15
        %vm727 = vcmp.ne.s32.totalorder %v663, 15
        %vm728 = vcmp.ne.s32.totalorder %v664, 15
        %vm729 = vcmp.ne.s32.totalorder %v665, 15
        %vm730 = vcmp.ne.s32.totalorder %v666, 15
        %vm731 = vcmp.ne.s32.totalorder %v667, 15
        %vm732 = vcmp.ne.s32.totalorder %v668, 15
        %vm733 = vcmp.ne.s32.totalorder %v669, 15
        %vm734 = vcmp.ne.s32.totalorder %v670, 15
        %vm735 = vcmp.ne.s32.totalorder %v671, 15
        %vm736 = vcmp.ne.s32.totalorder %v672, 15
        %vm737 = vcmp.ne.s32.totalorder %v673, 15
        %vm738 = vcmp.ne.s32.totalorder %v674, 15
        %v739 = vpack.c.bf16 %v226, %v226
        %v740 = vpack.c.bf16 %v227, %v227
        %v741 = vpack.c.bf16 %v228, %v228
        %v742 = vpack.c.bf16 %v229, %v229
        %v743 = vpack.c.bf16 %v230, %v230
        %v744 = vpack.c.bf16 %v231, %v231
        %v745 = vpack.c.bf16 %v232, %v232
        %v746 = vpack.c.bf16 %v233, %v233
        %v747 = vpack.c.bf16 %v234, %v234
        %v748 = vpack.c.bf16 %v235, %v235
        %v749 = vpack.c.bf16 %v236, %v236
        %v750 = vpack.c.bf16 %v237, %v237
        %v751 = vpack.c.bf16 %v238, %v238
        %v752 = vpack.c.bf16 %v239, %v239
        %v753 = vpack.c.bf16 %v240, %v240
        %v754 = vpack.c.bf16 %v241, %v241
        %v755 = vpack.c.bf16 %v242, %v242
        %v756 = vpack.c.bf16 %v243, %v243
        %v757 = vpack.c.bf16 %v244, %v244
        %v758 = vpack.c.bf16 %v245, %v245
        %v759 = vpack.c.bf16 %v246, %v246
        %v760 = vpack.c.bf16 %v247, %v247
        %v761 = vpack.c.bf16 %v248, %v248
        %v762 = vpack.c.bf16 %v249, %v249
        %v763 = vpack.c.bf16 %v250, %v250
        %v764 = vpack.c.bf16 %v251, %v251
        %v765 = vpack.c.bf16 %v252, %v252
        %v766 = vpack.c.bf16 %v253, %v253
        %v767 = vpack.c.bf16 %v254, %v254
        %v768 = vpack.c.bf16 %v255, %v255
        %v769 = vpack.c.bf16 %v256, %v256
        %v770 = vpack.c.bf16 %v257, %v257
        %v803 = vunpack.c.l.b16 %v739
        %v804 = vunpack.c.l.b16 %v740
        %v805 = vunpack.c.l.b16 %v741
        %v806 = vunpack.c.l.b16 %v742
        %v807 = vunpack.c.l.b16 %v743
        %v808 = vunpack.c.l.b16 %v744
        %v809 = vunpack.c.l.b16 %v745
        %v810 = vunpack.c.l.b16 %v746
        %v811 = vunpack.c.l.b16 %v747
        %v812 = vunpack.c.l.b16 %v748
        %v813 = vunpack.c.l.b16 %v749
        %v814 = vunpack.c.l.b16 %v750
        %v815 = vunpack.c.l.b16 %v751
        %v816 = vunpack.c.l.b16 %v752
        %v817 = vunpack.c.l.b16 %v753
        %v818 = vunpack.c.l.b16 %v754
        %v819 = vunpack.c.l.b16 %v755
        %v820 = vunpack.c.l.b16 %v756
        %v821 = vunpack.c.l.b16 %v757
        %v822 = vunpack.c.l.b16 %v758
        %v823 = vunpack.c.l.b16 %v759
        %v824 = vunpack.c.l.b16 %v760
        %v825 = vunpack.c.l.b16 %v761
        %v826 = vunpack.c.l.b16 %v762
        %v827 = vunpack.c.l.b16 %v763
        %v828 = vunpack.c.l.b16 %v764
        %v829 = vunpack.c.l.b16 %v765
        %v830 = vunpack.c.l.b16 %v766
        %v831 = vunpack.c.l.b16 %v767
        %v832 = vunpack.c.l.b16 %v768
        %v833 = vunpack.c.l.b16 %v769
        %v834 = vunpack.c.l.b16 %v770
        %v835 = vpack.c.b16 %v803, %v803
        %v836 = vpack.c.b16 %v805, %v804
        %v837 = vpack.c.b16 %v807, %v806
        %v838 = vpack.c.b16 %v809, %v808
        %v839 = vpack.c.b16 %v811, %v810
        %v840 = vpack.c.b16 %v813, %v812
        %v841 = vpack.c.b16 %v815, %v814
        %v842 = vpack.c.b16 %v817, %v816
        %v843 = vpack.c.b16 %v819, %v818
        %v844 = vpack.c.b16 %v821, %v820
        %v845 = vpack.c.b16 %v823, %v822
        %v846 = vpack.c.b16 %v825, %v824
        %v847 = vpack.c.b16 %v827, %v826
        %v848 = vpack.c.b16 %v829, %v828
        %v849 = vpack.c.b16 %v831, %v830
        %v850 = vpack.c.b16 %v833, %v832
        %v851 = vpack.c.b16 %v834, %v834
        %vm867 = vcmask 1043456
        %v870 = vsel %vm867, 0, %v835
        %v873 = vsel %vm867, %v851, 0
        %v875 = vsel %vm675, 1, 0
        %v876 = vsel %vm676, 1, 0
        %v877 = vsel %vm677, 1, 0
        %v878 = vsel %vm678, 1, 0
        %v879 = vsel %vm679, 1, 0
        %v880 = vsel %vm680, 1, 0
        %v881 = vsel %vm681, 1, 0
        %v882 = vsel %vm682, 1, 0
        %v883 = vsel %vm683, 1, 0
        %v884 = vsel %vm684, 1, 0
        %v885 = vsel %vm685, 1, 0
        %v886 = vsel %vm686, 1, 0
        %v887 = vsel %vm687, 1, 0
        %v888 = vsel %vm688, 1, 0
        %v889 = vsel %vm689, 1, 0
        %v890 = vsel %vm690, 1, 0
        %v891 = vsel %vm691, 1, 0
        %v892 = vsel %vm692, 1, 0
        %v893 = vsel %vm693, 1, 0
        %v894 = vsel %vm694, 1, 0
        %v895 = vsel %vm695, 1, 0
        %v896 = vsel %vm696, 1, 0
        %v897 = vsel %vm697, 1, 0
        %v898 = vsel %vm698, 1, 0
        %v899 = vsel %vm699, 1, 0
        %v900 = vsel %vm700, 1, 0
        %v901 = vsel %vm701, 1, 0
        %v902 = vsel %vm702, 1, 0
        %v903 = vsel %vm703, 1, 0
        %v904 = vsel %vm704, 1, 0
        %v905 = vsel %vm705, 1, 0
        %v906 = vsel %vm706, 1, 0
        %vm907 = vcmp.eq.s32.totalorder %v875, 1
        %vm908 = vcmp.eq.s32.totalorder %v876, 1
        %vm909 = vcmp.eq.s32.totalorder %v877, 1
        %vm910 = vcmp.eq.s32.totalorder %v878, 1
        %vm911 = vcmp.eq.s32.totalorder %v879, 1
        %vm912 = vcmp.eq.s32.totalorder %v880, 1
        %vm913 = vcmp.eq.s32.totalorder %v881, 1
        %vm914 = vcmp.eq.s32.totalorder %v882, 1
        %vm915 = vcmp.eq.s32.totalorder %v883, 1
        %vm916 = vcmp.eq.s32.totalorder %v884, 1
        %vm917 = vcmp.eq.s32.totalorder %v885, 1
        %vm918 = vcmp.eq.s32.totalorder %v886, 1
        %vm919 = vcmp.eq.s32.totalorder %v887, 1
        %vm920 = vcmp.eq.s32.totalorder %v888, 1
        %vm921 = vcmp.eq.s32.totalorder %v889, 1
        %vm922 = vcmp.eq.s32.totalorder %v890, 1
        %vm923 = vcmp.eq.s32.totalorder %v891, 1
        %vm924 = vcmp.eq.s32.totalorder %v892, 1
        %vm925 = vcmp.eq.s32.totalorder %v893, 1
        %vm926 = vcmp.eq.s32.totalorder %v894, 1
        %vm927 = vcmp.eq.s32.totalorder %v895, 1
        %vm928 = vcmp.eq.s32.totalorder %v896, 1
        %vm929 = vcmp.eq.s32.totalorder %v897, 1
        %vm930 = vcmp.eq.s32.totalorder %v898, 1
        %vm931 = vcmp.eq.s32.totalorder %v899, 1
        %vm932 = vcmp.eq.s32.totalorder %v900, 1
        %vm933 = vcmp.eq.s32.totalorder %v901, 1
        %vm934 = vcmp.eq.s32.totalorder %v902, 1
        %vm935 = vcmp.eq.s32.totalorder %v903, 1
        %vm936 = vcmp.eq.s32.totalorder %v904, 1
        %vm937 = vcmp.eq.s32.totalorder %v905, 1
        %vm938 = vcmp.eq.s32.totalorder %v906, 1
        %vm939 = vmpackc.low %vm907, %vm907
        %vm940 = vmpackc.low %vm908, %vm908
        %vm941 = vmpackc.low %vm909, %vm909
        %vm942 = vmpackc.low %vm910, %vm910
        %vm943 = vmpackc.low %vm911, %vm911
        %vm944 = vmpackc.low %vm912, %vm912
        %vm945 = vmpackc.low %vm913, %vm913
        %vm946 = vmpackc.low %vm914, %vm914
        %vm947 = vmpackc.low %vm915, %vm915
        %vm948 = vmpackc.low %vm916, %vm916
        %vm949 = vmpackc.low %vm917, %vm917
        %vm950 = vmpackc.low %vm918, %vm918
        %vm951 = vmpackc.low %vm919, %vm919
        %vm952 = vmpackc.low %vm920, %vm920
        %vm953 = vmpackc.low %vm921, %vm921
        %vm954 = vmpackc.low %vm922, %vm922
        %vm955 = vmpackc.low %vm923, %vm923
        %vm956 = vmpackc.low %vm924, %vm924
        %vm957 = vmpackc.low %vm925, %vm925
        %vm958 = vmpackc.low %vm926, %vm926
        %vm959 = vmpackc.low %vm927, %vm927
        %vm960 = vmpackc.low %vm928, %vm928
        %vm961 = vmpackc.low %vm929, %vm929
        %vm962 = vmpackc.low %vm930, %vm930
        %vm963 = vmpackc.low %vm931, %vm931
        %vm964 = vmpackc.low %vm932, %vm932
        %vm965 = vmpackc.low %vm933, %vm933
        %vm966 = vmpackc.low %vm934, %vm934
        %vm967 = vmpackc.low %vm935, %vm935
        %vm968 = vmpackc.low %vm936, %vm936
        %vm969 = vmpackc.low %vm937, %vm937
        %vm970 = vmpackc.low %vm938, %vm938
        %v971 = vsel %vm939, 65537, 0
        %v972 = vsel %vm940, 65537, 0
        %v973 = vsel %vm941, 65537, 0
        %v974 = vsel %vm942, 65537, 0
        %v975 = vsel %vm943, 65537, 0
        %v976 = vsel %vm944, 65537, 0
        %v977 = vsel %vm945, 65537, 0
        %v978 = vsel %vm946, 65537, 0
        %v979 = vsel %vm947, 65537, 0
        %v980 = vsel %vm948, 65537, 0
        %v981 = vsel %vm949, 65537, 0
        %v982 = vsel %vm950, 65537, 0
        %v983 = vsel %vm951, 65537, 0
        %v984 = vsel %vm952, 65537, 0
        %v985 = vsel %vm953, 65537, 0
        %v986 = vsel %vm954, 65537, 0
        %v987 = vsel %vm955, 65537, 0
        %v988 = vsel %vm956, 65537, 0
        %v989 = vsel %vm957, 65537, 0
        %v990 = vsel %vm958, 65537, 0
        %v991 = vsel %vm959, 65537, 0
        %v992 = vsel %vm960, 65537, 0
        %v993 = vsel %vm961, 65537, 0
        %v994 = vsel %vm962, 65537, 0
        %v995 = vsel %vm963, 65537, 0
        %v996 = vsel %vm964, 65537, 0
        %v997 = vsel %vm965, 65537, 0
        %v998 = vsel %vm966, 65537, 0
        %v999 = vsel %vm967, 65537, 0
        %v1000 = vsel %vm968, 65537, 0
        %v1001 = vsel %vm969, 65537, 0
        %v1002 = vsel %vm970, 65537, 0
        %v1003 = vunpack.c.l.b16 %v971
        %v1004 = vunpack.c.l.b16 %v972
        %v1005 = vunpack.c.l.b16 %v973
        %v1006 = vunpack.c.l.b16 %v974
        %v1007 = vunpack.c.l.b16 %v975
        %v1008 = vunpack.c.l.b16 %v976
        %v1009 = vunpack.c.l.b16 %v977
        %v1010 = vunpack.c.l.b16 %v978
        %v1011 = vunpack.c.l.b16 %v979
        %v1012 = vunpack.c.l.b16 %v980
        %v1013 = vunpack.c.l.b16 %v981
        %v1014 = vunpack.c.l.b16 %v982
        %v1015 = vunpack.c.l.b16 %v983
        %v1016 = vunpack.c.l.b16 %v984
        %v1017 = vunpack.c.l.b16 %v985
        %v1018 = vunpack.c.l.b16 %v986
        %v1019 = vunpack.c.l.b16 %v987
        %v1020 = vunpack.c.l.b16 %v988
        %v1021 = vunpack.c.l.b16 %v989
        %v1022 = vunpack.c.l.b16 %v990
        %v1023 = vunpack.c.l.b16 %v991
        %v1024 = vunpack.c.l.b16 %v992
        %v1025 = vunpack.c.l.b16 %v993
        %v1026 = vunpack.c.l.b16 %v994
        %v1027 = vunpack.c.l.b16 %v995
        %v1028 = vunpack.c.l.b16 %v996
        %v1029 = vunpack.c.l.b16 %v997
        %v1030 = vunpack.c.l.b16 %v998
        %v1031 = vunpack.c.l.b16 %v999
        %v1032 = vunpack.c.l.b16 %v1000
        %v1033 = vunpack.c.l.b16 %v1001
        %v1034 = vunpack.c.l.b16 %v1002
        %v1035 = vpack.c.b16 %v1004, %v1003
        %v1036 = vpack.c.b16 %v1006, %v1005
        %v1037 = vpack.c.b16 %v1008, %v1007
        %v1038 = vpack.c.b16 %v1010, %v1009
        %v1039 = vpack.c.b16 %v1012, %v1011
        %v1040 = vpack.c.b16 %v1014, %v1013
        %v1041 = vpack.c.b16 %v1016, %v1015
        %v1042 = vpack.c.b16 %v1018, %v1017
        %v1043 = vpack.c.b16 %v1020, %v1019
        %v1044 = vpack.c.b16 %v1022, %v1021
        %v1045 = vpack.c.b16 %v1024, %v1023
        %v1046 = vpack.c.b16 %v1026, %v1025
        %v1047 = vpack.c.b16 %v1028, %v1027
        %v1048 = vpack.c.b16 %v1030, %v1029
        %v1049 = vpack.c.b16 %v1032, %v1031
        %v1050 = vpack.c.b16 %v1034, %v1033
        %vm1051 = vsmask.f32 3328
        %v1053 = vshrl.u32 %v1035, 16
        %v1055 = vrot.slane %v1053, 4
        %v1056 = vshll.u32 %v1035, 16
        %v1058 = vrot.slane %v1056, 5
        %v1059 = vor.u32 %v1055, %v1058
        %v1061 = vshrl.u32 %v1036, 16
        %v1063 = vrot.slane %v1061, 4
        %v1064 = vshll.u32 %v1036, 16
        %v1066 = vrot.slane %v1064, 5
        %v1067 = vor.u32 %v1063, %v1066
        %v1068 = vsel %vm1051, %v1059, %v1067
        %v1070 = vshrl.u32 %v1037, 16
        %v1072 = vrot.slane %v1070, 4
        %v1073 = vshll.u32 %v1037, 16
        %v1075 = vrot.slane %v1073, 5
        %v1076 = vor.u32 %v1072, %v1075
        %v1077 = vsel %vm1051, %v1067, %v1076
        %v1079 = vshrl.u32 %v1038, 16
        %v1081 = vrot.slane %v1079, 4
        %v1082 = vshll.u32 %v1038, 16
        %v1084 = vrot.slane %v1082, 5
        %v1085 = vor.u32 %v1081, %v1084
        %v1086 = vsel %vm1051, %v1076, %v1085
        %v1088 = vshrl.u32 %v1039, 16
        %v1090 = vrot.slane %v1088, 4
        %v1091 = vshll.u32 %v1039, 16
        %v1093 = vrot.slane %v1091, 5
        %v1094 = vor.u32 %v1090, %v1093
        %v1095 = vsel %vm1051, %v1085, %v1094
        %v1097 = vshrl.u32 %v1040, 16
        %v1099 = vrot.slane %v1097, 4
        %v1100 = vshll.u32 %v1040, 16
        %v1102 = vrot.slane %v1100, 5
        %v1103 = vor.u32 %v1099, %v1102
        %v1104 = vsel %vm1051, %v1094, %v1103
        %v1106 = vshrl.u32 %v1041, 16
        %v1108 = vrot.slane %v1106, 4
        %v1109 = vshll.u32 %v1041, 16
        %v1111 = vrot.slane %v1109, 5
        %v1112 = vor.u32 %v1108, %v1111
        %v1113 = vsel %vm1051, %v1103, %v1112
        %v1115 = vshrl.u32 %v1042, 16
        %v1117 = vrot.slane %v1115, 4
        %v1118 = vshll.u32 %v1042, 16
        %v1120 = vrot.slane %v1118, 5
        %v1121 = vor.u32 %v1117, %v1120
        %v1122 = vsel %vm1051, %v1112, %v1121
        %v1124 = vshrl.u32 %v1043, 16
        %v1126 = vrot.slane %v1124, 4
        %v1127 = vshll.u32 %v1043, 16
        %v1129 = vrot.slane %v1127, 5
        %v1130 = vor.u32 %v1126, %v1129
        %v1131 = vsel %vm1051, %v1121, %v1130
        %v1133 = vshrl.u32 %v1044, 16
        %v1135 = vrot.slane %v1133, 4
        %v1136 = vshll.u32 %v1044, 16
        %v1138 = vrot.slane %v1136, 5
        %v1139 = vor.u32 %v1135, %v1138
        %v1140 = vsel %vm1051, %v1130, %v1139
        %v1142 = vshrl.u32 %v1045, 16
        %v1144 = vrot.slane %v1142, 4
        %v1145 = vshll.u32 %v1045, 16
        %v1147 = vrot.slane %v1145, 5
        %v1148 = vor.u32 %v1144, %v1147
        %v1149 = vsel %vm1051, %v1139, %v1148
        %v1151 = vshrl.u32 %v1046, 16
        %v1153 = vrot.slane %v1151, 4
        %v1154 = vshll.u32 %v1046, 16
        %v1156 = vrot.slane %v1154, 5
        %v1157 = vor.u32 %v1153, %v1156
        %v1158 = vsel %vm1051, %v1148, %v1157
        %v1160 = vshrl.u32 %v1047, 16
        %v1162 = vrot.slane %v1160, 4
        %v1163 = vshll.u32 %v1047, 16
        %v1165 = vrot.slane %v1163, 5
        %v1166 = vor.u32 %v1162, %v1165
        %v1167 = vsel %vm1051, %v1157, %v1166
        %v1169 = vshrl.u32 %v1048, 16
        %v1171 = vrot.slane %v1169, 4
        %v1172 = vshll.u32 %v1048, 16
        %v1174 = vrot.slane %v1172, 5
        %v1175 = vor.u32 %v1171, %v1174
        %v1176 = vsel %vm1051, %v1166, %v1175
        %v1178 = vshrl.u32 %v1049, 16
        %v1180 = vrot.slane %v1178, 4
        %v1181 = vshll.u32 %v1049, 16
        %v1183 = vrot.slane %v1181, 5
        %v1184 = vor.u32 %v1180, %v1183
        %v1185 = vsel %vm1051, %v1175, %v1184
        %v1187 = vshrl.u32 %v1050, 16
        %v1189 = vrot.slane %v1187, 4
        %v1190 = vshll.u32 %v1050, 16
        %v1192 = vrot.slane %v1190, 5
        %v1193 = vor.u32 %v1189, %v1192
        %v1194 = vsel %vm1051, %v1184, %v1193
        %v1195 = vunpack.c.l.b16 %v1068
        %v1196 = vunpack.c.h.b16 %v1068
        %v1197 = vunpack.c.l.b16 0
        %v1198 = vunpack.c.h.b16 0
        %vm1199 = vcmp.ne.s32.totalorder %v1195, %v1197
        %vm1200 = vcmp.ne.s32.totalorder %v1196, %v1198
        %vm1201 = vmpackc.low %vm1200, %vm1199
        %v1202 = vunpack.c.l.b16 %v1077
        %v1203 = vunpack.c.h.b16 %v1077
        %v1204 = vunpack.c.l.b16 0
        %v1205 = vunpack.c.h.b16 0
        %vm1206 = vcmp.ne.s32.totalorder %v1202, %v1204
        %vm1207 = vcmp.ne.s32.totalorder %v1203, %v1205
        %vm1208 = vmpackc.low %vm1207, %vm1206
        %v1209 = vunpack.c.l.b16 %v1086
        %v1210 = vunpack.c.h.b16 %v1086
        %v1211 = vunpack.c.l.b16 0
        %v1212 = vunpack.c.h.b16 0
        %vm1213 = vcmp.ne.s32.totalorder %v1209, %v1211
        %vm1214 = vcmp.ne.s32.totalorder %v1210, %v1212
        %vm1215 = vmpackc.low %vm1214, %vm1213
        %v1216 = vunpack.c.l.b16 %v1095
        %v1217 = vunpack.c.h.b16 %v1095
        %v1218 = vunpack.c.l.b16 0
        %v1219 = vunpack.c.h.b16 0
        %vm1220 = vcmp.ne.s32.totalorder %v1216, %v1218
        %vm1221 = vcmp.ne.s32.totalorder %v1217, %v1219
        %vm1222 = vmpackc.low %vm1221, %vm1220
        %v1223 = vunpack.c.l.b16 %v1104
        %v1224 = vunpack.c.h.b16 %v1104
        %v1225 = vunpack.c.l.b16 0
        %v1226 = vunpack.c.h.b16 0
        %vm1227 = vcmp.ne.s32.totalorder %v1223, %v1225
        %vm1228 = vcmp.ne.s32.totalorder %v1224, %v1226
        %vm1229 = vmpackc.low %vm1228, %vm1227
        %v1230 = vunpack.c.l.b16 %v1113
        %v1231 = vunpack.c.h.b16 %v1113
        %v1232 = vunpack.c.l.b16 0
        %v1233 = vunpack.c.h.b16 0
        %vm1234 = vcmp.ne.s32.totalorder %v1230, %v1232
        %vm1235 = vcmp.ne.s32.totalorder %v1231, %v1233
        %vm1236 = vmpackc.low %vm1235, %vm1234
        %v1237 = vunpack.c.l.b16 %v1122
        %v1238 = vunpack.c.h.b16 %v1122
        %v1239 = vunpack.c.l.b16 0
        %v1240 = vunpack.c.h.b16 0
        %vm1241 = vcmp.ne.s32.totalorder %v1237, %v1239
        %vm1242 = vcmp.ne.s32.totalorder %v1238, %v1240
        %vm1243 = vmpackc.low %vm1242, %vm1241
        %v1244 = vunpack.c.l.b16 %v1131
        %v1245 = vunpack.c.h.b16 %v1131
        %v1246 = vunpack.c.l.b16 0
        %v1247 = vunpack.c.h.b16 0
        %vm1248 = vcmp.ne.s32.totalorder %v1244, %v1246
        %vm1249 = vcmp.ne.s32.totalorder %v1245, %v1247
        %vm1250 = vmpackc.low %vm1249, %vm1248
        %v1251 = vunpack.c.l.b16 %v1140
        %v1252 = vunpack.c.h.b16 %v1140
        %v1253 = vunpack.c.l.b16 0
        %v1254 = vunpack.c.h.b16 0
        %vm1255 = vcmp.ne.s32.totalorder %v1251, %v1253
        %vm1256 = vcmp.ne.s32.totalorder %v1252, %v1254
        %vm1257 = vmpackc.low %vm1256, %vm1255
        %v1258 = vunpack.c.l.b16 %v1149
        %v1259 = vunpack.c.h.b16 %v1149
        %v1260 = vunpack.c.l.b16 0
        %v1261 = vunpack.c.h.b16 0
        %vm1262 = vcmp.ne.s32.totalorder %v1258, %v1260
        %vm1263 = vcmp.ne.s32.totalorder %v1259, %v1261
        %vm1264 = vmpackc.low %vm1263, %vm1262
        %v1265 = vunpack.c.l.b16 %v1158
        %v1266 = vunpack.c.h.b16 %v1158
        %v1267 = vunpack.c.l.b16 0
        %v1268 = vunpack.c.h.b16 0
        %vm1269 = vcmp.ne.s32.totalorder %v1265, %v1267
        %vm1270 = vcmp.ne.s32.totalorder %v1266, %v1268
        %vm1271 = vmpackc.low %vm1270, %vm1269
        %v1272 = vunpack.c.l.b16 %v1167
        %v1273 = vunpack.c.h.b16 %v1167
        %v1274 = vunpack.c.l.b16 0
        %v1275 = vunpack.c.h.b16 0
        %vm1276 = vcmp.ne.s32.totalorder %v1272, %v1274
        %vm1277 = vcmp.ne.s32.totalorder %v1273, %v1275
        %vm1278 = vmpackc.low %vm1277, %vm1276
        %v1279 = vunpack.c.l.b16 %v1176
        %v1280 = vunpack.c.h.b16 %v1176
        %v1281 = vunpack.c.l.b16 0
        %v1282 = vunpack.c.h.b16 0
        %vm1283 = vcmp.ne.s32.totalorder %v1279, %v1281
        %vm1284 = vcmp.ne.s32.totalorder %v1280, %v1282
        %vm1285 = vmpackc.low %vm1284, %vm1283
        %v1286 = vunpack.c.l.b16 %v1185
        %v1287 = vunpack.c.h.b16 %v1185
        %v1288 = vunpack.c.l.b16 0
        %v1289 = vunpack.c.h.b16 0
        %vm1290 = vcmp.ne.s32.totalorder %v1286, %v1288
        %vm1291 = vcmp.ne.s32.totalorder %v1287, %v1289
        %vm1292 = vmpackc.low %vm1291, %vm1290
        %v1293 = vunpack.c.l.b16 %v1194
        %v1294 = vunpack.c.h.b16 %v1194
        %v1295 = vunpack.c.l.b16 0
        %v1296 = vunpack.c.h.b16 0
        %vm1297 = vcmp.ne.s32.totalorder %v1293, %v1295
        %vm1298 = vcmp.ne.s32.totalorder %v1294, %v1296
        %vm1299 = vmpackc.low %vm1298, %vm1297
        %v1300 = vunpack.c.l.b16 %v1193
        %v1301 = vunpack.c.h.b16 %v1193
        %v1302 = vunpack.c.l.b16 0
        %v1303 = vunpack.c.h.b16 0
        %vm1304 = vcmp.ne.s32.totalorder %v1300, %v1302
        %vm1305 = vcmp.ne.s32.totalorder %v1301, %v1303
        %vm1306 = vmpackc.low %vm1305, %vm1304
        %v1307 = vsel %vm1201, %v870, 0
        %v1308 = vsel %vm1208, %v836, 0
        %v1309 = vsel %vm1215, %v837, 0
        %v1310 = vsel %vm1222, %v838, 0
        %v1311 = vsel %vm1229, %v839, 0
        %v1312 = vsel %vm1236, %v840, 0
        %v1313 = vsel %vm1243, %v841, 0
        %v1314 = vsel %vm1250, %v842, 0
        %v1315 = vsel %vm1257, %v843, 0
        %v1316 = vsel %vm1264, %v844, 0
        %v1317 = vsel %vm1271, %v845, 0
        %v1318 = vsel %vm1278, %v846, 0
        %v1319 = vsel %vm1285, %v847, 0
        %v1320 = vsel %vm1292, %v848, 0
        %v1321 = vsel %vm1299, %v849, 0
        %v1322 = vsel %vm1306, %v850, 0
        %v1323 = vsel %vm707, 1, 0
        %v1324 = vsel %vm708, 1, 0
        %v1325 = vsel %vm709, 1, 0
        %v1326 = vsel %vm710, 1, 0
        %v1327 = vsel %vm711, 1, 0
        %v1328 = vsel %vm712, 1, 0
        %v1329 = vsel %vm713, 1, 0
        %v1330 = vsel %vm714, 1, 0
        %v1331 = vsel %vm715, 1, 0
        %v1332 = vsel %vm716, 1, 0
        %v1333 = vsel %vm717, 1, 0
        %v1334 = vsel %vm718, 1, 0
        %v1335 = vsel %vm719, 1, 0
        %v1336 = vsel %vm720, 1, 0
        %v1337 = vsel %vm721, 1, 0
        %v1338 = vsel %vm722, 1, 0
        %v1339 = vsel %vm723, 1, 0
        %v1340 = vsel %vm724, 1, 0
        %v1341 = vsel %vm725, 1, 0
        %v1342 = vsel %vm726, 1, 0
        %v1343 = vsel %vm727, 1, 0
        %v1344 = vsel %vm728, 1, 0
        %v1345 = vsel %vm729, 1, 0
        %v1346 = vsel %vm730, 1, 0
        %v1347 = vsel %vm731, 1, 0
        %v1348 = vsel %vm732, 1, 0
        %v1349 = vsel %vm733, 1, 0
        %v1350 = vsel %vm734, 1, 0
        %v1351 = vsel %vm735, 1, 0
        %v1352 = vsel %vm736, 1, 0
        %v1353 = vsel %vm737, 1, 0
        %v1354 = vsel %vm738, 1, 0
        %vm1355 = vcmp.eq.s32.totalorder %v1323, 1
        %vm1356 = vcmp.eq.s32.totalorder %v1324, 1
        %vm1357 = vcmp.eq.s32.totalorder %v1325, 1
        %vm1358 = vcmp.eq.s32.totalorder %v1326, 1
        %vm1359 = vcmp.eq.s32.totalorder %v1327, 1
        %vm1360 = vcmp.eq.s32.totalorder %v1328, 1
        %vm1361 = vcmp.eq.s32.totalorder %v1329, 1
        %vm1362 = vcmp.eq.s32.totalorder %v1330, 1
        %vm1363 = vcmp.eq.s32.totalorder %v1331, 1
        %vm1364 = vcmp.eq.s32.totalorder %v1332, 1
        %vm1365 = vcmp.eq.s32.totalorder %v1333, 1
        %vm1366 = vcmp.eq.s32.totalorder %v1334, 1
        %vm1367 = vcmp.eq.s32.totalorder %v1335, 1
        %vm1368 = vcmp.eq.s32.totalorder %v1336, 1
        %vm1369 = vcmp.eq.s32.totalorder %v1337, 1
        %vm1370 = vcmp.eq.s32.totalorder %v1338, 1
        %vm1371 = vcmp.eq.s32.totalorder %v1339, 1
        %vm1372 = vcmp.eq.s32.totalorder %v1340, 1
        %vm1373 = vcmp.eq.s32.totalorder %v1341, 1
        %vm1374 = vcmp.eq.s32.totalorder %v1342, 1
        %vm1375 = vcmp.eq.s32.totalorder %v1343, 1
        %vm1376 = vcmp.eq.s32.totalorder %v1344, 1
        %vm1377 = vcmp.eq.s32.totalorder %v1345, 1
        %vm1378 = vcmp.eq.s32.totalorder %v1346, 1
        %vm1379 = vcmp.eq.s32.totalorder %v1347, 1
        %vm1380 = vcmp.eq.s32.totalorder %v1348, 1
        %vm1381 = vcmp.eq.s32.totalorder %v1349, 1
        %vm1382 = vcmp.eq.s32.totalorder %v1350, 1
        %vm1383 = vcmp.eq.s32.totalorder %v1351, 1
        %vm1384 = vcmp.eq.s32.totalorder %v1352, 1
        %vm1385 = vcmp.eq.s32.totalorder %v1353, 1
        %vm1386 = vcmp.eq.s32.totalorder %v1354, 1
        %vm1387 = vmpackc.low %vm1355, %vm1355
        %vm1388 = vmpackc.low %vm1356, %vm1356
        %vm1389 = vmpackc.low %vm1357, %vm1357
        %vm1390 = vmpackc.low %vm1358, %vm1358
        %vm1391 = vmpackc.low %vm1359, %vm1359
        %vm1392 = vmpackc.low %vm1360, %vm1360
        %vm1393 = vmpackc.low %vm1361, %vm1361
        %vm1394 = vmpackc.low %vm1362, %vm1362
        %vm1395 = vmpackc.low %vm1363, %vm1363
        %vm1396 = vmpackc.low %vm1364, %vm1364
        %vm1397 = vmpackc.low %vm1365, %vm1365
        %vm1398 = vmpackc.low %vm1366, %vm1366
        %vm1399 = vmpackc.low %vm1367, %vm1367
        %vm1400 = vmpackc.low %vm1368, %vm1368
        %vm1401 = vmpackc.low %vm1369, %vm1369
        %vm1402 = vmpackc.low %vm1370, %vm1370
        %vm1403 = vmpackc.low %vm1371, %vm1371
        %vm1404 = vmpackc.low %vm1372, %vm1372
        %vm1405 = vmpackc.low %vm1373, %vm1373
        %vm1406 = vmpackc.low %vm1374, %vm1374
        %vm1407 = vmpackc.low %vm1375, %vm1375
        %vm1408 = vmpackc.low %vm1376, %vm1376
        %vm1409 = vmpackc.low %vm1377, %vm1377
        %vm1410 = vmpackc.low %vm1378, %vm1378
        %vm1411 = vmpackc.low %vm1379, %vm1379
        %vm1412 = vmpackc.low %vm1380, %vm1380
        %vm1413 = vmpackc.low %vm1381, %vm1381
        %vm1414 = vmpackc.low %vm1382, %vm1382
        %vm1415 = vmpackc.low %vm1383, %vm1383
        %vm1416 = vmpackc.low %vm1384, %vm1384
        %vm1417 = vmpackc.low %vm1385, %vm1385
        %vm1418 = vmpackc.low %vm1386, %vm1386
        %v1419 = vsel %vm1387, 65537, 0
        %v1420 = vsel %vm1388, 65537, 0
        %v1421 = vsel %vm1389, 65537, 0
        %v1422 = vsel %vm1390, 65537, 0
        %v1423 = vsel %vm1391, 65537, 0
        %v1424 = vsel %vm1392, 65537, 0
        %v1425 = vsel %vm1393, 65537, 0
        %v1426 = vsel %vm1394, 65537, 0
        %v1427 = vsel %vm1395, 65537, 0
        %v1428 = vsel %vm1396, 65537, 0
        %v1429 = vsel %vm1397, 65537, 0
        %v1430 = vsel %vm1398, 65537, 0
        %v1431 = vsel %vm1399, 65537, 0
        %v1432 = vsel %vm1400, 65537, 0
        %v1433 = vsel %vm1401, 65537, 0
        %v1434 = vsel %vm1402, 65537, 0
        %v1435 = vsel %vm1403, 65537, 0
        %v1436 = vsel %vm1404, 65537, 0
        %v1437 = vsel %vm1405, 65537, 0
        %v1438 = vsel %vm1406, 65537, 0
        %v1439 = vsel %vm1407, 65537, 0
        %v1440 = vsel %vm1408, 65537, 0
        %v1441 = vsel %vm1409, 65537, 0
        %v1442 = vsel %vm1410, 65537, 0
        %v1443 = vsel %vm1411, 65537, 0
        %v1444 = vsel %vm1412, 65537, 0
        %v1445 = vsel %vm1413, 65537, 0
        %v1446 = vsel %vm1414, 65537, 0
        %v1447 = vsel %vm1415, 65537, 0
        %v1448 = vsel %vm1416, 65537, 0
        %v1449 = vsel %vm1417, 65537, 0
        %v1450 = vsel %vm1418, 65537, 0
        %v1451 = vunpack.c.l.b16 %v1419
        %v1452 = vunpack.c.l.b16 %v1420
        %v1453 = vunpack.c.l.b16 %v1421
        %v1454 = vunpack.c.l.b16 %v1422
        %v1455 = vunpack.c.l.b16 %v1423
        %v1456 = vunpack.c.l.b16 %v1424
        %v1457 = vunpack.c.l.b16 %v1425
        %v1458 = vunpack.c.l.b16 %v1426
        %v1459 = vunpack.c.l.b16 %v1427
        %v1460 = vunpack.c.l.b16 %v1428
        %v1461 = vunpack.c.l.b16 %v1429
        %v1462 = vunpack.c.l.b16 %v1430
        %v1463 = vunpack.c.l.b16 %v1431
        %v1464 = vunpack.c.l.b16 %v1432
        %v1465 = vunpack.c.l.b16 %v1433
        %v1466 = vunpack.c.l.b16 %v1434
        %v1467 = vunpack.c.l.b16 %v1435
        %v1468 = vunpack.c.l.b16 %v1436
        %v1469 = vunpack.c.l.b16 %v1437
        %v1470 = vunpack.c.l.b16 %v1438
        %v1471 = vunpack.c.l.b16 %v1439
        %v1472 = vunpack.c.l.b16 %v1440
        %v1473 = vunpack.c.l.b16 %v1441
        %v1474 = vunpack.c.l.b16 %v1442
        %v1475 = vunpack.c.l.b16 %v1443
        %v1476 = vunpack.c.l.b16 %v1444
        %v1477 = vunpack.c.l.b16 %v1445
        %v1478 = vunpack.c.l.b16 %v1446
        %v1479 = vunpack.c.l.b16 %v1447
        %v1480 = vunpack.c.l.b16 %v1448
        %v1481 = vunpack.c.l.b16 %v1449
        %v1482 = vunpack.c.l.b16 %v1450
        %v1483 = vpack.c.b16 %v1452, %v1451
        %v1484 = vpack.c.b16 %v1454, %v1453
        %v1485 = vpack.c.b16 %v1456, %v1455
        %v1486 = vpack.c.b16 %v1458, %v1457
        %v1487 = vpack.c.b16 %v1460, %v1459
        %v1488 = vpack.c.b16 %v1462, %v1461
        %v1489 = vpack.c.b16 %v1464, %v1463
        %v1490 = vpack.c.b16 %v1466, %v1465
        %v1491 = vpack.c.b16 %v1468, %v1467
        %v1492 = vpack.c.b16 %v1470, %v1469
        %v1493 = vpack.c.b16 %v1472, %v1471
        %v1494 = vpack.c.b16 %v1474, %v1473
        %v1495 = vpack.c.b16 %v1476, %v1475
        %v1496 = vpack.c.b16 %v1478, %v1477
        %v1497 = vpack.c.b16 %v1480, %v1479
        %v1498 = vpack.c.b16 %v1482, %v1481
        %vm1499 = vsmask.f32 4352
        %v1501 = vshrl.u32 %v1483, 16
        %v1503 = vrot.slane %v1501, 3
        %v1504 = vshll.u32 %v1483, 16
        %v1506 = vrot.slane %v1504, 4
        %v1507 = vor.u32 %v1503, %v1506
        %v1509 = vshrl.u32 %v1484, 16
        %v1511 = vrot.slane %v1509, 3
        %v1512 = vshll.u32 %v1484, 16
        %v1514 = vrot.slane %v1512, 4
        %v1515 = vor.u32 %v1511, %v1514
        %v1516 = vsel %vm1499, %v1507, %v1515
        %v1518 = vshrl.u32 %v1485, 16
        %v1520 = vrot.slane %v1518, 3
        %v1521 = vshll.u32 %v1485, 16
        %v1523 = vrot.slane %v1521, 4
        %v1524 = vor.u32 %v1520, %v1523
        %v1525 = vsel %vm1499, %v1515, %v1524
        %v1527 = vshrl.u32 %v1486, 16
        %v1529 = vrot.slane %v1527, 3
        %v1530 = vshll.u32 %v1486, 16
        %v1532 = vrot.slane %v1530, 4
        %v1533 = vor.u32 %v1529, %v1532
        %v1534 = vsel %vm1499, %v1524, %v1533
        %v1536 = vshrl.u32 %v1487, 16
        %v1538 = vrot.slane %v1536, 3
        %v1539 = vshll.u32 %v1487, 16
        %v1541 = vrot.slane %v1539, 4
        %v1542 = vor.u32 %v1538, %v1541
        %v1543 = vsel %vm1499, %v1533, %v1542
        %v1545 = vshrl.u32 %v1488, 16
        %v1547 = vrot.slane %v1545, 3
        %v1548 = vshll.u32 %v1488, 16
        %v1550 = vrot.slane %v1548, 4
        %v1551 = vor.u32 %v1547, %v1550
        %v1552 = vsel %vm1499, %v1542, %v1551
        %v1554 = vshrl.u32 %v1489, 16
        %v1556 = vrot.slane %v1554, 3
        %v1557 = vshll.u32 %v1489, 16
        %v1559 = vrot.slane %v1557, 4
        %v1560 = vor.u32 %v1556, %v1559
        %v1561 = vsel %vm1499, %v1551, %v1560
        %v1563 = vshrl.u32 %v1490, 16
        %v1565 = vrot.slane %v1563, 3
        %v1566 = vshll.u32 %v1490, 16
        %v1568 = vrot.slane %v1566, 4
        %v1569 = vor.u32 %v1565, %v1568
        %v1570 = vsel %vm1499, %v1560, %v1569
        %v1572 = vshrl.u32 %v1491, 16
        %v1574 = vrot.slane %v1572, 3
        %v1575 = vshll.u32 %v1491, 16
        %v1577 = vrot.slane %v1575, 4
        %v1578 = vor.u32 %v1574, %v1577
        %v1579 = vsel %vm1499, %v1569, %v1578
        %v1581 = vshrl.u32 %v1492, 16
        %v1583 = vrot.slane %v1581, 3
        %v1584 = vshll.u32 %v1492, 16
        %v1586 = vrot.slane %v1584, 4
        %v1587 = vor.u32 %v1583, %v1586
        %v1588 = vsel %vm1499, %v1578, %v1587
        %v1590 = vshrl.u32 %v1493, 16
        %v1592 = vrot.slane %v1590, 3
        %v1593 = vshll.u32 %v1493, 16
        %v1595 = vrot.slane %v1593, 4
        %v1596 = vor.u32 %v1592, %v1595
        %v1597 = vsel %vm1499, %v1587, %v1596
        %v1599 = vshrl.u32 %v1494, 16
        %v1601 = vrot.slane %v1599, 3
        %v1602 = vshll.u32 %v1494, 16
        %v1604 = vrot.slane %v1602, 4
        %v1605 = vor.u32 %v1601, %v1604
        %v1606 = vsel %vm1499, %v1596, %v1605
        %v1608 = vshrl.u32 %v1495, 16
        %v1610 = vrot.slane %v1608, 3
        %v1611 = vshll.u32 %v1495, 16
        %v1613 = vrot.slane %v1611, 4
        %v1614 = vor.u32 %v1610, %v1613
        %v1615 = vsel %vm1499, %v1605, %v1614
        %v1617 = vshrl.u32 %v1496, 16
        %v1619 = vrot.slane %v1617, 3
        %v1620 = vshll.u32 %v1496, 16
        %v1622 = vrot.slane %v1620, 4
        %v1623 = vor.u32 %v1619, %v1622
        %v1624 = vsel %vm1499, %v1614, %v1623
        %v1626 = vshrl.u32 %v1497, 16
        %v1628 = vrot.slane %v1626, 3
        %v1629 = vshll.u32 %v1497, 16
        %v1631 = vrot.slane %v1629, 4
        %v1632 = vor.u32 %v1628, %v1631
        %v1633 = vsel %vm1499, %v1623, %v1632
        %v1635 = vshrl.u32 %v1498, 16
        %v1637 = vrot.slane %v1635, 3
        %v1638 = vshll.u32 %v1498, 16
        %v1640 = vrot.slane %v1638, 4
        %v1641 = vor.u32 %v1637, %v1640
        %v1642 = vsel %vm1499, %v1632, %v1641
        %v1643 = vunpack.c.l.b16 %v1516
        %v1644 = vunpack.c.h.b16 %v1516
        %v1645 = vunpack.c.l.b16 0
        %v1646 = vunpack.c.h.b16 0
        %vm1647 = vcmp.ne.s32.totalorder %v1643, %v1645
        %vm1648 = vcmp.ne.s32.totalorder %v1644, %v1646
        %vm1649 = vmpackc.low %vm1648, %vm1647
        %v1650 = vunpack.c.l.b16 %v1525
        %v1651 = vunpack.c.h.b16 %v1525
        %v1652 = vunpack.c.l.b16 0
        %v1653 = vunpack.c.h.b16 0
        %vm1654 = vcmp.ne.s32.totalorder %v1650, %v1652
        %vm1655 = vcmp.ne.s32.totalorder %v1651, %v1653
        %vm1656 = vmpackc.low %vm1655, %vm1654
        %v1657 = vunpack.c.l.b16 %v1534
        %v1658 = vunpack.c.h.b16 %v1534
        %v1659 = vunpack.c.l.b16 0
        %v1660 = vunpack.c.h.b16 0
        %vm1661 = vcmp.ne.s32.totalorder %v1657, %v1659
        %vm1662 = vcmp.ne.s32.totalorder %v1658, %v1660
        %vm1663 = vmpackc.low %vm1662, %vm1661
        %v1664 = vunpack.c.l.b16 %v1543
        %v1665 = vunpack.c.h.b16 %v1543
        %v1666 = vunpack.c.l.b16 0
        %v1667 = vunpack.c.h.b16 0
        %vm1668 = vcmp.ne.s32.totalorder %v1664, %v1666
        %vm1669 = vcmp.ne.s32.totalorder %v1665, %v1667
        %vm1670 = vmpackc.low %vm1669, %vm1668
        %v1671 = vunpack.c.l.b16 %v1552
        %v1672 = vunpack.c.h.b16 %v1552
        %v1673 = vunpack.c.l.b16 0
        %v1674 = vunpack.c.h.b16 0
        %vm1675 = vcmp.ne.s32.totalorder %v1671, %v1673
        %vm1676 = vcmp.ne.s32.totalorder %v1672, %v1674
        %vm1677 = vmpackc.low %vm1676, %vm1675
        %v1678 = vunpack.c.l.b16 %v1561
        %v1679 = vunpack.c.h.b16 %v1561
        %v1680 = vunpack.c.l.b16 0
        %v1681 = vunpack.c.h.b16 0
        %vm1682 = vcmp.ne.s32.totalorder %v1678, %v1680
        %vm1683 = vcmp.ne.s32.totalorder %v1679, %v1681
        %vm1684 = vmpackc.low %vm1683, %vm1682
        %v1685 = vunpack.c.l.b16 %v1570
        %v1686 = vunpack.c.h.b16 %v1570
        %v1687 = vunpack.c.l.b16 0
        %v1688 = vunpack.c.h.b16 0
        %vm1689 = vcmp.ne.s32.totalorder %v1685, %v1687
        %vm1690 = vcmp.ne.s32.totalorder %v1686, %v1688
        %vm1691 = vmpackc.low %vm1690, %vm1689
        %v1692 = vunpack.c.l.b16 %v1579
        %v1693 = vunpack.c.h.b16 %v1579
        %v1694 = vunpack.c.l.b16 0
        %v1695 = vunpack.c.h.b16 0
        %vm1696 = vcmp.ne.s32.totalorder %v1692, %v1694
        %vm1697 = vcmp.ne.s32.totalorder %v1693, %v1695
        %vm1698 = vmpackc.low %vm1697, %vm1696
        %v1699 = vunpack.c.l.b16 %v1588
        %v1700 = vunpack.c.h.b16 %v1588
        %v1701 = vunpack.c.l.b16 0
        %v1702 = vunpack.c.h.b16 0
        %vm1703 = vcmp.ne.s32.totalorder %v1699, %v1701
        %vm1704 = vcmp.ne.s32.totalorder %v1700, %v1702
        %vm1705 = vmpackc.low %vm1704, %vm1703
        %v1706 = vunpack.c.l.b16 %v1597
        %v1707 = vunpack.c.h.b16 %v1597
        %v1708 = vunpack.c.l.b16 0
        %v1709 = vunpack.c.h.b16 0
        %vm1710 = vcmp.ne.s32.totalorder %v1706, %v1708
        %vm1711 = vcmp.ne.s32.totalorder %v1707, %v1709
        %vm1712 = vmpackc.low %vm1711, %vm1710
        %v1713 = vunpack.c.l.b16 %v1606
        %v1714 = vunpack.c.h.b16 %v1606
        %v1715 = vunpack.c.l.b16 0
        %v1716 = vunpack.c.h.b16 0
        %vm1717 = vcmp.ne.s32.totalorder %v1713, %v1715
        %vm1718 = vcmp.ne.s32.totalorder %v1714, %v1716
        %vm1719 = vmpackc.low %vm1718, %vm1717
        %v1720 = vunpack.c.l.b16 %v1615
        %v1721 = vunpack.c.h.b16 %v1615
        %v1722 = vunpack.c.l.b16 0
        %v1723 = vunpack.c.h.b16 0
        %vm1724 = vcmp.ne.s32.totalorder %v1720, %v1722
        %vm1725 = vcmp.ne.s32.totalorder %v1721, %v1723
        %vm1726 = vmpackc.low %vm1725, %vm1724
        %v1727 = vunpack.c.l.b16 %v1624
        %v1728 = vunpack.c.h.b16 %v1624
        %v1729 = vunpack.c.l.b16 0
        %v1730 = vunpack.c.h.b16 0
        %vm1731 = vcmp.ne.s32.totalorder %v1727, %v1729
        %vm1732 = vcmp.ne.s32.totalorder %v1728, %v1730
        %vm1733 = vmpackc.low %vm1732, %vm1731
        %v1734 = vunpack.c.l.b16 %v1633
        %v1735 = vunpack.c.h.b16 %v1633
        %v1736 = vunpack.c.l.b16 0
        %v1737 = vunpack.c.h.b16 0
        %vm1738 = vcmp.ne.s32.totalorder %v1734, %v1736
        %vm1739 = vcmp.ne.s32.totalorder %v1735, %v1737
        %vm1740 = vmpackc.low %vm1739, %vm1738
        %v1741 = vunpack.c.l.b16 %v1642
        %v1742 = vunpack.c.h.b16 %v1642
        %v1743 = vunpack.c.l.b16 0
        %v1744 = vunpack.c.h.b16 0
        %vm1745 = vcmp.ne.s32.totalorder %v1741, %v1743
        %vm1746 = vcmp.ne.s32.totalorder %v1742, %v1744
        %vm1747 = vmpackc.low %vm1746, %vm1745
        %v1748 = vunpack.c.l.b16 %v1641
        %v1749 = vunpack.c.h.b16 %v1641
        %v1750 = vunpack.c.l.b16 0
        %v1751 = vunpack.c.h.b16 0
        %vm1752 = vcmp.ne.s32.totalorder %v1748, %v1750
        %vm1753 = vcmp.ne.s32.totalorder %v1749, %v1751
        %vm1754 = vmpackc.low %vm1753, %vm1752
        %v1755 = vsel %vm1649, %v870, 0
        %v1756 = vsel %vm1656, %v836, 0
        %v1757 = vsel %vm1663, %v837, 0
        %v1758 = vsel %vm1670, %v838, 0
        %v1759 = vsel %vm1677, %v839, 0
        %v1760 = vsel %vm1684, %v840, 0
        %v1761 = vsel %vm1691, %v841, 0
        %v1762 = vsel %vm1698, %v842, 0
        %v1763 = vsel %vm1705, %v843, 0
        %v1764 = vsel %vm1712, %v844, 0
        %v1765 = vsel %vm1719, %v845, 0
        %v1766 = vsel %vm1726, %v846, 0
        %v1767 = vsel %vm1733, %v847, 0
        %v1768 = vsel %vm1740, %v848, 0
        %v1769 = vsel %vm1747, %v849, 0
        %v1770 = vsel %vm1754, %v850, 0
        %v1771 = vunpack.c.l.b16 %v1059
        %v1772 = vunpack.c.h.b16 %v1059
        %v1773 = vunpack.c.l.b16 0
        %v1774 = vunpack.c.h.b16 0
        %vm1775 = vcmp.ne.s32.totalorder %v1771, %v1773
        %vm1776 = vcmp.ne.s32.totalorder %v1772, %v1774
        %vm1777 = vmpackc.low %vm1776, %vm1775
        %v1778 = vsel %vm1777, %v870, 0
        %v1779 = vsel %vm1201, %v836, 0
        %v1780 = vsel %vm1208, %v837, 0
        %v1781 = vsel %vm1215, %v838, 0
        %v1782 = vsel %vm1222, %v839, 0
        %v1783 = vsel %vm1229, %v840, 0
        %v1784 = vsel %vm1236, %v841, 0
        %v1785 = vsel %vm1243, %v842, 0
        %v1786 = vsel %vm1250, %v843, 0
        %v1787 = vsel %vm1257, %v844, 0
        %v1788 = vsel %vm1264, %v845, 0
        %v1789 = vsel %vm1271, %v846, 0
        %v1790 = vsel %vm1278, %v847, 0
        %v1791 = vsel %vm1285, %v848, 0
        %v1792 = vsel %vm1292, %v849, 0
        %v1793 = vsel %vm1299, %v850, 0
        %v1794 = vsel %vm1306, %v873, 0
        %v1795 = vunpack.c.l.b16 %v1507
        %v1796 = vunpack.c.h.b16 %v1507
        %v1797 = vunpack.c.l.b16 0
        %v1798 = vunpack.c.h.b16 0
        %vm1799 = vcmp.ne.s32.totalorder %v1795, %v1797
        %vm1800 = vcmp.ne.s32.totalorder %v1796, %v1798
        %vm1801 = vmpackc.low %vm1800, %vm1799
        %v1802 = vsel %vm1801, %v870, 0
        %v1803 = vsel %vm1649, %v836, 0
        %v1804 = vsel %vm1656, %v837, 0
        %v1805 = vsel %vm1663, %v838, 0
        %v1806 = vsel %vm1670, %v839, 0
        %v1807 = vsel %vm1677, %v840, 0
        %v1808 = vsel %vm1684, %v841, 0
        %v1809 = vsel %vm1691, %v842, 0
        %v1810 = vsel %vm1698, %v843, 0
        %v1811 = vsel %vm1705, %v844, 0
        %v1812 = vsel %vm1712, %v845, 0
        %v1813 = vsel %vm1719, %v846, 0
        %v1814 = vsel %vm1726, %v847, 0
        %v1815 = vsel %vm1733, %v848, 0
        %v1816 = vsel %vm1740, %v849, 0
        %v1817 = vsel %vm1747, %v850, 0
        %v1818 = vsel %vm1754, %v873, 0
        %v1819 = vsel %vm1777, %v836, 0
        %v1820 = vsel %vm1201, %v837, 0
        %v1821 = vsel %vm1208, %v838, 0
        %v1822 = vsel %vm1215, %v839, 0
        %v1823 = vsel %vm1222, %v840, 0
        %v1824 = vsel %vm1229, %v841, 0
        %v1825 = vsel %vm1236, %v842, 0
        %v1826 = vsel %vm1243, %v843, 0
        %v1827 = vsel %vm1250, %v844, 0
        %v1828 = vsel %vm1257, %v845, 0
        %v1829 = vsel %vm1264, %v846, 0
        %v1830 = vsel %vm1271, %v847, 0
        %v1831 = vsel %vm1278, %v848, 0
        %v1832 = vsel %vm1285, %v849, 0
        %v1833 = vsel %vm1292, %v850, 0
        %v1834 = vsel %vm1299, %v873, 0
        %v1835 = vsel %vm1801, %v836, 0
        %v1836 = vsel %vm1649, %v837, 0
        %v1837 = vsel %vm1656, %v838, 0
        %v1838 = vsel %vm1663, %v839, 0
        %v1839 = vsel %vm1670, %v840, 0
        %v1840 = vsel %vm1677, %v841, 0
        %v1841 = vsel %vm1684, %v842, 0
        %v1842 = vsel %vm1691, %v843, 0
        %v1843 = vsel %vm1698, %v844, 0
        %v1844 = vsel %vm1705, %v845, 0
        %v1845 = vsel %vm1712, %v846, 0
        %v1846 = vsel %vm1719, %v847, 0
        %v1847 = vsel %vm1726, %v848, 0
        %v1848 = vsel %vm1733, %v849, 0
        %v1849 = vsel %vm1740, %v850, 0
        %v1850 = vsel %vm1747, %v873, 0
        %vm1851 = vsmask.f32 7424
        %v1852 = vshrl.u32 0, 16
        %v1854 = vshll.u32 0, 16
        %v1856 = vrot.slane %v1854, 1
        %v1857 = vor.u32 %v1852, %v1856
        %v1858 = vshll.u32 %v870, 16
        %v1860 = vrot.slane %v1858, 1
        %v1861 = vsel %vm1851, %v1857, %v1860
        %v1862 = vshrl.u32 %v870, 16
        %v1864 = vor.u32 %v1862, %v1860
        %v1866 = vshll.u32 %v836, 16
        %v1868 = vrot.slane %v1866, 1
        %v1869 = vsel %vm1851, %v1864, %v1868
        %v1870 = vshrl.u32 %v836, 16
        %v1872 = vor.u32 %v1870, %v1868
        %v1874 = vshll.u32 %v837, 16
        %v1876 = vrot.slane %v1874, 1
        %v1877 = vsel %vm1851, %v1872, %v1876
        %v1878 = vshrl.u32 %v837, 16
        %v1880 = vor.u32 %v1878, %v1876
        %v1882 = vshll.u32 %v838, 16
        %v1884 = vrot.slane %v1882, 1
        %v1885 = vsel %vm1851, %v1880, %v1884
        %v1886 = vshrl.u32 %v838, 16
        %v1888 = vor.u32 %v1886, %v1884
        %v1890 = vshll.u32 %v839, 16
        %v1892 = vrot.slane %v1890, 1
        %v1893 = vsel %vm1851, %v1888, %v1892
        %v1894 = vshrl.u32 %v839, 16
        %v1896 = vor.u32 %v1894, %v1892
        %v1898 = vshll.u32 %v840, 16
        %v1900 = vrot.slane %v1898, 1
        %v1901 = vsel %vm1851, %v1896, %v1900
        %v1902 = vshrl.u32 %v840, 16
        %v1904 = vor.u32 %v1902, %v1900
        %v1906 = vshll.u32 %v841, 16
        %v1908 = vrot.slane %v1906, 1
        %v1909 = vsel %vm1851, %v1904, %v1908
        %v1910 = vshrl.u32 %v841, 16
        %v1912 = vor.u32 %v1910, %v1908
        %v1914 = vshll.u32 %v842, 16
        %v1916 = vrot.slane %v1914, 1
        %v1917 = vsel %vm1851, %v1912, %v1916
        %v1918 = vshrl.u32 %v842, 16
        %v1920 = vor.u32 %v1918, %v1916
        %v1922 = vshll.u32 %v843, 16
        %v1924 = vrot.slane %v1922, 1
        %v1925 = vsel %vm1851, %v1920, %v1924
        %v1926 = vshrl.u32 %v843, 16
        %v1928 = vor.u32 %v1926, %v1924
        %v1930 = vshll.u32 %v844, 16
        %v1932 = vrot.slane %v1930, 1
        %v1933 = vsel %vm1851, %v1928, %v1932
        %v1934 = vshrl.u32 %v844, 16
        %v1936 = vor.u32 %v1934, %v1932
        %v1938 = vshll.u32 %v845, 16
        %v1940 = vrot.slane %v1938, 1
        %v1941 = vsel %vm1851, %v1936, %v1940
        %v1942 = vshrl.u32 %v845, 16
        %v1944 = vor.u32 %v1942, %v1940
        %v1946 = vshll.u32 %v846, 16
        %v1948 = vrot.slane %v1946, 1
        %v1949 = vsel %vm1851, %v1944, %v1948
        %v1950 = vshrl.u32 %v846, 16
        %v1952 = vor.u32 %v1950, %v1948
        %v1954 = vshll.u32 %v847, 16
        %v1956 = vrot.slane %v1954, 1
        %v1957 = vsel %vm1851, %v1952, %v1956
        %v1958 = vshrl.u32 %v847, 16
        %v1960 = vor.u32 %v1958, %v1956
        %v1962 = vshll.u32 %v848, 16
        %v1964 = vrot.slane %v1962, 1
        %v1965 = vsel %vm1851, %v1960, %v1964
        %v1966 = vshrl.u32 %v848, 16
        %v1968 = vor.u32 %v1966, %v1964
        %v1970 = vshll.u32 %v849, 16
        %v1972 = vrot.slane %v1970, 1
        %v1973 = vsel %vm1851, %v1968, %v1972
        %v1974 = vshrl.u32 %v849, 16
        %v1976 = vor.u32 %v1974, %v1972
        %v1978 = vshll.u32 %v850, 16
        %v1980 = vrot.slane %v1978, 1
        %v1981 = vsel %vm1851, %v1976, %v1980
        %v1982 = vshrl.u32 %v850, 16
        %v1984 = vor.u32 %v1982, %v1980
        %1985 = vrot.lane.b32.xlu0 %v1861, 64
        %v1986 = vpop.permute.xlu0 %1985
        %1987 = vrot.lane.b32.xlu0 %v1869, 64
        %v1988 = vpop.permute.xlu0 %1987
        %1989 = vrot.lane.b32.xlu0 %v1877, 64
        %v1990 = vpop.permute.xlu0 %1989
        %1991 = vrot.lane.b32.xlu0 %v1885, 64
        %v1992 = vpop.permute.xlu0 %1991
        %1993 = vrot.lane.b32.xlu0 %v1893, 64
        %v1994 = vpop.permute.xlu0 %1993
        %1995 = vrot.lane.b32.xlu0 %v1901, 64
        %v1996 = vpop.permute.xlu0 %1995
        %1997 = vrot.lane.b32.xlu0 %v1909, 64
        %v1998 = vpop.permute.xlu0 %1997
        %1999 = vrot.lane.b32.xlu0 %v1917, 64
        %v2000 = vpop.permute.xlu0 %1999
        %2001 = vrot.lane.b32.xlu0 %v1925, 64
        %v2002 = vpop.permute.xlu0 %2001
        %2003 = vrot.lane.b32.xlu0 %v1933, 64
        %v2004 = vpop.permute.xlu0 %2003
        %2005 = vrot.lane.b32.xlu0 %v1941, 64
        %v2006 = vpop.permute.xlu0 %2005
        %2007 = vrot.lane.b32.xlu0 %v1949, 64
        %v2008 = vpop.permute.xlu0 %2007
        %2009 = vrot.lane.b32.xlu0 %v1957, 64
        %v2010 = vpop.permute.xlu0 %2009
        %2011 = vrot.lane.b32.xlu0 %v1965, 64
        %v2012 = vpop.permute.xlu0 %2011
        %2013 = vrot.lane.b32.xlu0 %v1973, 64
        %v2014 = vpop.permute.xlu0 %2013
        %2015 = vrot.lane.b32.xlu0 %v1981, 64
        %v2016 = vpop.permute.xlu0 %2015
        %2017 = vrot.lane.b32.xlu0 %v1984, 64
        %v2018 = vpop.permute.xlu0 %2017
        %vm2036 = vcmask 1046528
        %v2037 = vrot.slane 0, 1
        %v2038 = vrot.slane %v1755, 1
        %v2039 = vsel %vm2036, %v2037, %v2038
        %v2040 = vrot.slane %v1756, 1
        %v2041 = vsel %vm2036, %v2038, %v2040
        %v2042 = vrot.slane %v1757, 1
        %v2043 = vsel %vm2036, %v2040, %v2042
        %v2044 = vrot.slane %v1758, 1
        %v2045 = vsel %vm2036, %v2042, %v2044
        %v2046 = vrot.slane %v1759, 1
        %v2047 = vsel %vm2036, %v2044, %v2046
        %v2048 = vrot.slane %v1760, 1
        %v2049 = vsel %vm2036, %v2046, %v2048
        %v2050 = vrot.slane %v1761, 1
        %v2051 = vsel %vm2036, %v2048, %v2050
        %v2052 = vrot.slane %v1762, 1
        %v2053 = vsel %vm2036, %v2050, %v2052
        %v2054 = vrot.slane %v1763, 1
        %v2055 = vsel %vm2036, %v2052, %v2054
        %v2056 = vrot.slane %v1764, 1
        %v2057 = vsel %vm2036, %v2054, %v2056
        %v2058 = vrot.slane %v1765, 1
        %v2059 = vsel %vm2036, %v2056, %v2058
        %v2060 = vrot.slane %v1766, 1
        %v2061 = vsel %vm2036, %v2058, %v2060
        %v2062 = vrot.slane %v1767, 1
        %v2063 = vsel %vm2036, %v2060, %v2062
        %v2064 = vrot.slane %v1768, 1
        %v2065 = vsel %vm2036, %v2062, %v2064
        %v2066 = vrot.slane %v1769, 1
        %v2067 = vsel %vm2036, %v2064, %v2066
        %v2068 = vrot.slane %v1770, 1
        %v2069 = vsel %vm2036, %v2066, %v2068
        %2087 = vrot.lane.b32.xlu0 %v1778, 64
        %v2088 = vpop.permute.xlu0 %2087
        %2089 = vrot.lane.b32.xlu0 %v1779, 64
        %v2090 = vpop.permute.xlu0 %2089
        %2091 = vrot.lane.b32.xlu0 %v1780, 64
        %v2092 = vpop.permute.xlu0 %2091
        %2093 = vrot.lane.b32.xlu0 %v1781, 64
        %v2094 = vpop.permute.xlu0 %2093
        %2095 = vrot.lane.b32.xlu0 %v1782, 64
        %v2096 = vpop.permute.xlu0 %2095
        %2097 = vrot.lane.b32.xlu0 %v1783, 64
        %v2098 = vpop.permute.xlu0 %2097
        %2099 = vrot.lane.b32.xlu0 %v1784, 64
        %v2100 = vpop.permute.xlu0 %2099
        %2101 = vrot.lane.b32.xlu0 %v1785, 64
        %v2102 = vpop.permute.xlu0 %2101
        %2103 = vrot.lane.b32.xlu0 %v1786, 64
        %v2104 = vpop.permute.xlu0 %2103
        %2105 = vrot.lane.b32.xlu0 %v1787, 64
        %v2106 = vpop.permute.xlu0 %2105
        %2107 = vrot.lane.b32.xlu0 %v1788, 64
        %v2108 = vpop.permute.xlu0 %2107
        %2109 = vrot.lane.b32.xlu0 %v1789, 64
        %v2110 = vpop.permute.xlu0 %2109
        %2111 = vrot.lane.b32.xlu0 %v1790, 64
        %v2112 = vpop.permute.xlu0 %2111
        %2113 = vrot.lane.b32.xlu0 %v1791, 64
        %v2114 = vpop.permute.xlu0 %2113
        %2115 = vrot.lane.b32.xlu0 %v1792, 64
        %v2116 = vpop.permute.xlu0 %2115
        %2117 = vrot.lane.b32.xlu0 %v1793, 64
        %v2118 = vpop.permute.xlu0 %2117
        %2119 = vrot.lane.b32.xlu0 %v1794, 64
        %v2120 = vpop.permute.xlu0 %2119
        %v2121 = vshll.u32 %v873, 16
        %v2123 = vrot.slane %v2121, 1
        %v2124 = vsel %vm1851, %v1984, %v2123
        %v2125 = vshrl.u32 %v873, 16
        %v2127 = vor.u32 %v2125, %v2123
        %v2145 = vrot.slane %v1802, 1
        %v2146 = vrot.slane %v1803, 1
        %v2147 = vsel %vm2036, %v2145, %v2146
        %v2148 = vrot.slane %v1804, 1
        %v2149 = vsel %vm2036, %v2146, %v2148
        %v2150 = vrot.slane %v1805, 1
        %v2151 = vsel %vm2036, %v2148, %v2150
        %v2152 = vrot.slane %v1806, 1
        %v2153 = vsel %vm2036, %v2150, %v2152
        %v2154 = vrot.slane %v1807, 1
        %v2155 = vsel %vm2036, %v2152, %v2154
        %v2156 = vrot.slane %v1808, 1
        %v2157 = vsel %vm2036, %v2154, %v2156
        %v2158 = vrot.slane %v1809, 1
        %v2159 = vsel %vm2036, %v2156, %v2158
        %v2160 = vrot.slane %v1810, 1
        %v2161 = vsel %vm2036, %v2158, %v2160
        %v2162 = vrot.slane %v1811, 1
        %v2163 = vsel %vm2036, %v2160, %v2162
        %v2164 = vrot.slane %v1812, 1
        %v2165 = vsel %vm2036, %v2162, %v2164
        %v2166 = vrot.slane %v1813, 1
        %v2167 = vsel %vm2036, %v2164, %v2166
        %v2168 = vrot.slane %v1814, 1
        %v2169 = vsel %vm2036, %v2166, %v2168
        %v2170 = vrot.slane %v1815, 1
        %v2171 = vsel %vm2036, %v2168, %v2170
        %v2172 = vrot.slane %v1816, 1
        %v2173 = vsel %vm2036, %v2170, %v2172
        %v2174 = vrot.slane %v1817, 1
        %v2175 = vsel %vm2036, %v2172, %v2174
        %v2176 = vrot.slane %v1818, 1
        %v2177 = vsel %vm2036, %v2174, %v2176
        %2178 = vrot.lane.b32.xlu0 %v2147, 64
        %v2179 = vpop.permute.xlu0 %2178
        %2180 = vrot.lane.b32.xlu0 %v2149, 64
        %v2181 = vpop.permute.xlu0 %2180
        %2182 = vrot.lane.b32.xlu0 %v2151, 64
        %v2183 = vpop.permute.xlu0 %2182
        %2184 = vrot.lane.b32.xlu0 %v2153, 64
        %v2185 = vpop.permute.xlu0 %2184
        %2186 = vrot.lane.b32.xlu0 %v2155, 64
        %v2187 = vpop.permute.xlu0 %2186
        %2188 = vrot.lane.b32.xlu0 %v2157, 64
        %v2189 = vpop.permute.xlu0 %2188
        %2190 = vrot.lane.b32.xlu0 %v2159, 64
        %v2191 = vpop.permute.xlu0 %2190
        %2192 = vrot.lane.b32.xlu0 %v2161, 64
        %v2193 = vpop.permute.xlu0 %2192
        %2194 = vrot.lane.b32.xlu0 %v2163, 64
        %v2195 = vpop.permute.xlu0 %2194
        %2196 = vrot.lane.b32.xlu0 %v2165, 64
        %v2197 = vpop.permute.xlu0 %2196
        %2198 = vrot.lane.b32.xlu0 %v2167, 64
        %v2199 = vpop.permute.xlu0 %2198
        %2200 = vrot.lane.b32.xlu0 %v2169, 64
        %v2201 = vpop.permute.xlu0 %2200
        %2202 = vrot.lane.b32.xlu0 %v2171, 64
        %v2203 = vpop.permute.xlu0 %2202
        %2204 = vrot.lane.b32.xlu0 %v2173, 64
        %v2205 = vpop.permute.xlu0 %2204
        %2206 = vrot.lane.b32.xlu0 %v2175, 64
        %v2207 = vpop.permute.xlu0 %2206
        %2208 = vrot.lane.b32.xlu0 %v2177, 64
        %v2209 = vpop.permute.xlu0 %2208
        %2210 = vrot.lane.b32.xlu0 %v2176, 64
        %v2211 = vpop.permute.xlu0 %2210
        %v2212 = vsel %vm1851, %v2127, %v1856
        %2213 = vrot.lane.b32.xlu0 %v2124, 64
        %v2214 = vpop.permute.xlu0 %2213
        %2215 = vrot.lane.b32.xlu0 %v2212, 64
        %v2216 = vpop.permute.xlu0 %2215
        %2217 = vrot.lane.b32.xlu0 %v1857, 64
        %v2218 = vpop.permute.xlu0 %2217
        %v2235 = vrot.slane %v1835, 1
        %v2236 = vrot.slane %v1836, 1
        %v2237 = vsel %vm2036, %v2235, %v2236
        %v2238 = vrot.slane %v1837, 1
        %v2239 = vsel %vm2036, %v2236, %v2238
        %v2240 = vrot.slane %v1838, 1
        %v2241 = vsel %vm2036, %v2238, %v2240
        %v2242 = vrot.slane %v1839, 1
        %v2243 = vsel %vm2036, %v2240, %v2242
        %v2244 = vrot.slane %v1840, 1
        %v2245 = vsel %vm2036, %v2242, %v2244
        %v2246 = vrot.slane %v1841, 1
        %v2247 = vsel %vm2036, %v2244, %v2246
        %v2248 = vrot.slane %v1842, 1
        %v2249 = vsel %vm2036, %v2246, %v2248
        %v2250 = vrot.slane %v1843, 1
        %v2251 = vsel %vm2036, %v2248, %v2250
        %v2252 = vrot.slane %v1844, 1
        %v2253 = vsel %vm2036, %v2250, %v2252
        %v2254 = vrot.slane %v1845, 1
        %v2255 = vsel %vm2036, %v2252, %v2254
        %v2256 = vrot.slane %v1846, 1
        %v2257 = vsel %vm2036, %v2254, %v2256
        %v2258 = vrot.slane %v1847, 1
        %v2259 = vsel %vm2036, %v2256, %v2258
        %v2260 = vrot.slane %v1848, 1
        %v2261 = vsel %vm2036, %v2258, %v2260
        %v2262 = vrot.slane %v1849, 1
        %v2263 = vsel %vm2036, %v2260, %v2262
        %v2264 = vrot.slane %v1850, 1
        %v2265 = vsel %vm2036, %v2262, %v2264
        %v2266 = vsel %vm2036, %v2264, %v2037
        %vm2267 = vcmask 523264
        %v2269 = vsel %vm2267, 0, %v1986
        %v2272 = vsel %vm2267, %v1307, %v1988
        %v2275 = vsel %vm2267, %v1308, %v1990
        %v2278 = vsel %vm2267, %v1309, %v1992
        %v2281 = vsel %vm2267, %v1310, %v1994
        %v2284 = vsel %vm2267, %v1311, %v1996
        %v2287 = vsel %vm2267, %v1312, %v1998
        %v2290 = vsel %vm2267, %v1313, %v2000
        %v2293 = vsel %vm2267, %v1314, %v2002
        %v2296 = vsel %vm2267, %v1315, %v2004
        %v2299 = vsel %vm2267, %v1316, %v2006
        %v2302 = vsel %vm2267, %v1317, %v2008
        %v2305 = vsel %vm2267, %v1318, %v2010
        %v2308 = vsel %vm2267, %v1319, %v2012
        %v2311 = vsel %vm2267, %v1320, %v2014
        %v2314 = vsel %vm2267, %v1321, %v2016
        %v2317 = vsel %vm2267, %v1322, %v2018
        %v2320 = vsel %vm2267, %v2039, %v2088
        %v2323 = vsel %vm2267, %v2041, %v2090
        %v2326 = vsel %vm2267, %v2043, %v2092
        %v2329 = vsel %vm2267, %v2045, %v2094
        %v2332 = vsel %vm2267, %v2047, %v2096
        %v2335 = vsel %vm2267, %v2049, %v2098
        %v2338 = vsel %vm2267, %v2051, %v2100
        %v2341 = vsel %vm2267, %v2053, %v2102
        %v2344 = vsel %vm2267, %v2055, %v2104
        %v2347 = vsel %vm2267, %v2057, %v2106
        %v2350 = vsel %vm2267, %v2059, %v2108
        %v2353 = vsel %vm2267, %v2061, %v2110
        %v2356 = vsel %vm2267, %v2063, %v2112
        %v2359 = vsel %vm2267, %v2065, %v2114
        %v2362 = vsel %vm2267, %v2067, %v2116
        %v2365 = vsel %vm2267, %v2069, %v2118
        %v2368 = vsel %vm2267, %v2068, %v2120
        %v2371 = vsel %vm2267, %v1869, %v2179
        %v2374 = vsel %vm2267, %v1877, %v2181
        %v2377 = vsel %vm2267, %v1885, %v2183
        %v2380 = vsel %vm2267, %v1893, %v2185
        %v2383 = vsel %vm2267, %v1901, %v2187
        %v2386 = vsel %vm2267, %v1909, %v2189
        %v2389 = vsel %vm2267, %v1917, %v2191
        %v2392 = vsel %vm2267, %v1925, %v2193
        %v2395 = vsel %vm2267, %v1933, %v2195
        %v2398 = vsel %vm2267, %v1941, %v2197
        %v2401 = vsel %vm2267, %v1949, %v2199
        %v2404 = vsel %vm2267, %v1957, %v2201
        %v2407 = vsel %vm2267, %v1965, %v2203
        %v2410 = vsel %vm2267, %v1973, %v2205
        %v2413 = vsel %vm2267, %v1981, %v2207
        %v2416 = vsel %vm2267, %v2124, %v2209
        %v2419 = vsel %vm2267, %v2127, %v2211
        %v2421 = vsel %vm2267, %v1819, %v1990
        %v2423 = vsel %vm2267, %v1820, %v1992
        %v2425 = vsel %vm2267, %v1821, %v1994
        %v2427 = vsel %vm2267, %v1822, %v1996
        %v2429 = vsel %vm2267, %v1823, %v1998
        %v2431 = vsel %vm2267, %v1824, %v2000
        %v2433 = vsel %vm2267, %v1825, %v2002
        %v2435 = vsel %vm2267, %v1826, %v2004
        %v2437 = vsel %vm2267, %v1827, %v2006
        %v2439 = vsel %vm2267, %v1828, %v2008
        %v2441 = vsel %vm2267, %v1829, %v2010
        %v2443 = vsel %vm2267, %v1830, %v2012
        %v2445 = vsel %vm2267, %v1831, %v2014
        %v2447 = vsel %vm2267, %v1832, %v2016
        %v2450 = vsel %vm2267, %v1833, %v2214
        %v2453 = vsel %vm2267, %v1834, %v2216
        %v2455 = vsel %vm2267, 0, %v2218
        %v2456 = vld [vmem:[%s1] sm:$0xf]
        %v2457 = vld [vmem:[%s1 + $0x4] sm:$0xf]
        %v2458 = vld [vmem:[%s1 + $0x8] sm:$0xf]
        %v2459 = vld [vmem:[%s1 + $0xc] sm:$0xf]
        %v2460 = vld [vmem:[%s1 + $0x10] sm:$0xf]
        %v2461 = vld [vmem:[%s1 + $0x14] sm:$0xf]
        %v2462 = vld [vmem:[%s1 + $0x18] sm:$0xf]
        %v2463 = vld [vmem:[%s1 + $0x1c] sm:$0xf]
        %v2464 = vld [vmem:[%s1 + $0x20] sm:$0xf]
        %v2465 = vld [vmem:[%s1 + $0x24] sm:$0xf]
        %v2466 = vld [vmem:[%s1 + $0x28] sm:$0xf]
        %v2467 = vld [vmem:[%s1 + $0x2c] sm:$0xf]
        %v2468 = vld [vmem:[%s1 + $0x30] sm:$0xf]
        %v2469 = vld [vmem:[%s1 + $0x34] sm:$0xf]
        %v2470 = vld [vmem:[%s1 + $0x38] sm:$0xf]
        %v2471 = vld [vmem:[%s1 + $0x3c] sm:$0xf]
        %v2472 = vld [vmem:[%s1 + $0x40] sm:$0xf]
        %v2473 = vld [vmem:[%s1 + $0x44] sm:$0xf]
        %v2474 = vld [vmem:[%s1 + $0x48] sm:$0xf]
        %v2475 = vld [vmem:[%s1 + $0x4c] sm:$0xf]
        %v2476 = vld [vmem:[%s1 + $0x50] sm:$0xf]
        %v2477 = vld [vmem:[%s1 + $0x54] sm:$0xf]
        %v2478 = vld [vmem:[%s1 + $0x58] sm:$0xf]
        %v2479 = vld [vmem:[%s1 + $0x5c] sm:$0xf]
        %v2480 = vld [vmem:[%s1 + $0x60] sm:$0xf]
        %v2481 = vld [vmem:[%s1 + $0x64] sm:$0xf]
        %v2482 = vld [vmem:[%s1 + $0x68] sm:$0xf]
        %v2483 = vld [vmem:[%s1 + $0x6c] sm:$0xf]
        %v2484 = vld [vmem:[%s1 + $0x70] sm:$0xf]
        %v2485 = vld [vmem:[%s1 + $0x74] sm:$0xf]
        %v2486 = vld [vmem:[%s1 + $0x78] sm:$0xf]
        %v2487 = vld [vmem:[%s1 + $0x7c] sm:$0xf]
        %v2488 = vld [vmem:[%s1 + $0x80] sm:$0xf]
        %v2489 = vld [vmem:[%s1 + $0x84] sm:$0xf]
        %v2490 = vld [vmem:[%s1 + $0x88] sm:$0xf]
        %v2491 = vld [vmem:[%s1 + $0x8c] sm:$0xf]
        %v2492 = vld [vmem:[%s1 + $0x90] sm:$0xf]
        %v2493 = vld [vmem:[%s1 + $0x94] sm:$0xf]
        %v2494 = vld [vmem:[%s1 + $0x98] sm:$0xf]
        %v2495 = vld [vmem:[%s1 + $0x9c] sm:$0xf]
        %v2496 = vld [vmem:[%s1 + $0xa0] sm:$0xf]
        %v2497 = vld [vmem:[%s1 + $0xa4] sm:$0xf]
        %v2498 = vld [vmem:[%s1 + $0xa8] sm:$0xf]
        %v2499 = vld [vmem:[%s1 + $0xac] sm:$0xf]
        %v2500 = vld [vmem:[%s1 + $0xb0] sm:$0xf]
        %v2501 = vld [vmem:[%s1 + $0xb4] sm:$0xf]
        %v2502 = vld [vmem:[%s1 + $0xb8] sm:$0xf]
        %v2503 = vld [vmem:[%s1 + $0xbc] sm:$0xf]
        %v2504 = vld [vmem:[%s1 + $0xc0] sm:$0xf]
        %v2505 = vld [vmem:[%s1 + $0xc4] sm:$0xf]
        %v2506 = vld [vmem:[%s1 + $0xc8] sm:$0xf]
        %v2507 = vld [vmem:[%s1 + $0xcc] sm:$0xf]
        %v2508 = vld [vmem:[%s1 + $0xd0] sm:$0xf]
        %v2509 = vld [vmem:[%s1 + $0xd4] sm:$0xf]
        %v2510 = vld [vmem:[%s1 + $0xd8] sm:$0xf]
        %v2511 = vld [vmem:[%s1 + $0xdc] sm:$0xf]
        %v2512 = vld [vmem:[%s1 + $0xe0] sm:$0xf]
        %v2513 = vld [vmem:[%s1 + $0xe4] sm:$0xf]
        %v2514 = vld [vmem:[%s1 + $0xe8] sm:$0xf]
        %v2515 = vld [vmem:[%s1 + $0xec] sm:$0xf]
        %v2516 = vld [vmem:[%s1 + $0xf0] sm:$0xf]
        %v2517 = vld [vmem:[%s1 + $0xf4] sm:$0xf]
        %v2518 = vld [vmem:[%s1 + $0xf8] sm:$0xf]
        %v2519 = vld [vmem:[%s1 + $0xfc] sm:$0xf]
        %v2520 = vld [vmem:[%s1 + $0x100] sm:$0xf]
        %v2521 = vld [vmem:[%s1 + $0x104] sm:$0xf]
        %v2522 = vld [vmem:[%s1 + $0x108] sm:$0xf]
        %v2523 = vld [vmem:[%s1 + $0x10c] sm:$0xf]
        %v2524 = vld [vmem:[%s1 + $0x110] sm:$0xf]
        %v2525 = vld [vmem:[%s1 + $0x114] sm:$0xf]
        %v2526 = vld [vmem:[%s1 + $0x118] sm:$0xf]
        %v2527 = vld [vmem:[%s1 + $0x11c] sm:$0xf]
        %v2528 = vld [vmem:[%s2] sm:$0x1]
        %v2530 = vperm.slane %v2528, 0
        %v2532 = vshrl.u32 %v2269, 16
        %v2534 = vrot.slane %v2532, 3
        %v2535 = vshll.u32 %v2269, 16
        %v2537 = vrot.slane %v2535, 4
        %v2538 = vor.u32 %v2534, %v2537
        %v2539 = vshrl.u32 %v2272, 16
        %v2541 = vrot.slane %v2539, 3
        %v2542 = vshll.u32 %v2272, 16
        %v2544 = vrot.slane %v2542, 4
        %v2545 = vor.u32 %v2541, %v2544
        %v2546 = vsel %vm1499, %v2538, %v2545
        %v2547 = vshrl.u32 %v2320, 16
        %v2549 = vrot.slane %v2547, 3
        %v2550 = vshll.u32 %v2320, 16
        %v2552 = vrot.slane %v2550, 4
        %v2553 = vor.u32 %v2549, %v2552
        %v2554 = vshrl.u32 %v2323, 16
        %v2556 = vrot.slane %v2554, 3
        %v2557 = vshll.u32 %v2323, 16
        %v2559 = vrot.slane %v2557, 4
        %v2560 = vor.u32 %v2556, %v2559
        %v2561 = vsel %vm1499, %v2553, %v2560
        %v2562 = vshrl.u32 %v2371, 16
        %v2564 = vrot.slane %v2562, 3
        %v2565 = vshll.u32 %v2371, 16
        %v2567 = vrot.slane %v2565, 4
        %v2568 = vor.u32 %v2564, %v2567
        %v2569 = vshrl.u32 %v2374, 16
        %v2571 = vrot.slane %v2569, 3
        %v2572 = vshll.u32 %v2374, 16
        %v2574 = vrot.slane %v2572, 4
        %v2575 = vor.u32 %v2571, %v2574
        %v2576 = vsel %vm1499, %v2568, %v2575
        %v2577 = vshrl.u32 %v2421, 16
        %v2579 = vrot.slane %v2577, 3
        %v2580 = vshll.u32 %v2421, 16
        %v2582 = vrot.slane %v2580, 4
        %v2583 = vor.u32 %v2579, %v2582
        %v2584 = vshrl.u32 %v2423, 16
        %v2586 = vrot.slane %v2584, 3
        %v2587 = vshll.u32 %v2423, 16
        %v2589 = vrot.slane %v2587, 4
        %v2590 = vor.u32 %v2586, %v2589
        %v2591 = vsel %vm1499, %v2583, %v2590
        %v2593 = vshrl.u32 %v2237, 16
        %v2595 = vrot.slane %v2593, 3
        %v2596 = vshll.u32 %v2237, 16
        %v2598 = vrot.slane %v2596, 4
        %v2599 = vor.u32 %v2595, %v2598
        %v2601 = vshrl.u32 %v2239, 16
        %v2603 = vrot.slane %v2601, 3
        %v2604 = vshll.u32 %v2239, 16
        %v2606 = vrot.slane %v2604, 4
        %v2607 = vor.u32 %v2603, %v2606
        %v2608 = vsel %vm1499, %v2599, %v2607
        %v2609 = vshrl.u32 %v2275, 16
        %v2611 = vrot.slane %v2609, 3
        %v2612 = vshll.u32 %v2275, 16
        %v2614 = vrot.slane %v2612, 4
        %v2615 = vor.u32 %v2611, %v2614
        %v2616 = vsel %vm1499, %v2545, %v2615
        %v2617 = vshrl.u32 %v2326, 16
        %v2619 = vrot.slane %v2617, 3
        %v2620 = vshll.u32 %v2326, 16
        %v2622 = vrot.slane %v2620, 4
        %v2623 = vor.u32 %v2619, %v2622
        %v2624 = vsel %vm1499, %v2560, %v2623
        %v2625 = vshrl.u32 %v2377, 16
        %v2627 = vrot.slane %v2625, 3
        %v2628 = vshll.u32 %v2377, 16
        %v2630 = vrot.slane %v2628, 4
        %v2631 = vor.u32 %v2627, %v2630
        %v2632 = vsel %vm1499, %v2575, %v2631
        %v2633 = vshrl.u32 %v2425, 16
        %v2635 = vrot.slane %v2633, 3
        %v2636 = vshll.u32 %v2425, 16
        %v2638 = vrot.slane %v2636, 4
        %v2639 = vor.u32 %v2635, %v2638
        %v2640 = vsel %vm1499, %v2590, %v2639
        %v2642 = vshrl.u32 %v2241, 16
        %v2644 = vrot.slane %v2642, 3
        %v2645 = vshll.u32 %v2241, 16
        %v2647 = vrot.slane %v2645, 4
        %v2648 = vor.u32 %v2644, %v2647
        %v2649 = vsel %vm1499, %v2607, %v2648
        %v2650 = vshrl.u32 %v2278, 16
        %v2652 = vrot.slane %v2650, 3
        %v2653 = vshll.u32 %v2278, 16
        %v2655 = vrot.slane %v2653, 4
        %v2656 = vor.u32 %v2652, %v2655
        %v2657 = vsel %vm1499, %v2615, %v2656
        %v2658 = vshrl.u32 %v2329, 16
        %v2660 = vrot.slane %v2658, 3
        %v2661 = vshll.u32 %v2329, 16
        %v2663 = vrot.slane %v2661, 4
        %v2664 = vor.u32 %v2660, %v2663
        %v2665 = vsel %vm1499, %v2623, %v2664
        %v2666 = vshrl.u32 %v2380, 16
        %v2668 = vrot.slane %v2666, 3
        %v2669 = vshll.u32 %v2380, 16
        %v2671 = vrot.slane %v2669, 4
        %v2672 = vor.u32 %v2668, %v2671
        %v2673 = vsel %vm1499, %v2631, %v2672
        %v2674 = vshrl.u32 %v2427, 16
        %v2676 = vrot.slane %v2674, 3
        %v2677 = vshll.u32 %v2427, 16
        %v2679 = vrot.slane %v2677, 4
        %v2680 = vor.u32 %v2676, %v2679
        %v2681 = vsel %vm1499, %v2639, %v2680
        %v2683 = vshrl.u32 %v2243, 16
        %v2685 = vrot.slane %v2683, 3
        %v2686 = vshll.u32 %v2243, 16
        %v2688 = vrot.slane %v2686, 4
        %v2689 = vor.u32 %v2685, %v2688
        %v2690 = vsel %vm1499, %v2648, %v2689
        %v2691 = vshrl.u32 %v2281, 16
        %v2693 = vrot.slane %v2691, 3
        %v2694 = vshll.u32 %v2281, 16
        %v2696 = vrot.slane %v2694, 4
        %v2697 = vor.u32 %v2693, %v2696
        %v2698 = vsel %vm1499, %v2656, %v2697
        %v2699 = vshrl.u32 %v2332, 16
        %v2701 = vrot.slane %v2699, 3
        %v2702 = vshll.u32 %v2332, 16
        %v2704 = vrot.slane %v2702, 4
        %v2705 = vor.u32 %v2701, %v2704
        %v2706 = vsel %vm1499, %v2664, %v2705
        %v2707 = vshrl.u32 %v2383, 16
        %v2709 = vrot.slane %v2707, 3
        %v2710 = vshll.u32 %v2383, 16
        %v2712 = vrot.slane %v2710, 4
        %v2713 = vor.u32 %v2709, %v2712
        %v2714 = vsel %vm1499, %v2672, %v2713
        %v2715 = vshrl.u32 %v2429, 16
        %v2717 = vrot.slane %v2715, 3
        %v2718 = vshll.u32 %v2429, 16
        %v2720 = vrot.slane %v2718, 4
        %v2721 = vor.u32 %v2717, %v2720
        %v2722 = vsel %vm1499, %v2680, %v2721
        %v2724 = vshrl.u32 %v2245, 16
        %v2726 = vrot.slane %v2724, 3
        %v2727 = vshll.u32 %v2245, 16
        %v2729 = vrot.slane %v2727, 4
        %v2730 = vor.u32 %v2726, %v2729
        %v2731 = vsel %vm1499, %v2689, %v2730
        %v2732 = vshrl.u32 %v2284, 16
        %v2734 = vrot.slane %v2732, 3
        %v2735 = vshll.u32 %v2284, 16
        %v2737 = vrot.slane %v2735, 4
        %v2738 = vor.u32 %v2734, %v2737
        %v2739 = vsel %vm1499, %v2697, %v2738
        %v2740 = vshrl.u32 %v2335, 16
        %v2742 = vrot.slane %v2740, 3
        %v2743 = vshll.u32 %v2335, 16
        %v2745 = vrot.slane %v2743, 4
        %v2746 = vor.u32 %v2742, %v2745
        %v2747 = vsel %vm1499, %v2705, %v2746
        %v2748 = vshrl.u32 %v2386, 16
        %v2750 = vrot.slane %v2748, 3
        %v2751 = vshll.u32 %v2386, 16
        %v2753 = vrot.slane %v2751, 4
        %v2754 = vor.u32 %v2750, %v2753
        %v2755 = vsel %vm1499, %v2713, %v2754
        %v2756 = vshrl.u32 %v2431, 16
        %v2758 = vrot.slane %v2756, 3
        %v2759 = vshll.u32 %v2431, 16
        %v2761 = vrot.slane %v2759, 4
        %v2762 = vor.u32 %v2758, %v2761
        %v2763 = vsel %vm1499, %v2721, %v2762
        %v2765 = vshrl.u32 %v2247, 16
        %v2767 = vrot.slane %v2765, 3
        %v2768 = vshll.u32 %v2247, 16
        %v2770 = vrot.slane %v2768, 4
        %v2771 = vor.u32 %v2767, %v2770
        %v2772 = vsel %vm1499, %v2730, %v2771
        %v2773 = vshrl.u32 %v2287, 16
        %v2775 = vrot.slane %v2773, 3
        %v2776 = vshll.u32 %v2287, 16
        %v2778 = vrot.slane %v2776, 4
        %v2779 = vor.u32 %v2775, %v2778
        %v2780 = vsel %vm1499, %v2738, %v2779
        %v2781 = vshrl.u32 %v2338, 16
        %v2783 = vrot.slane %v2781, 3
        %v2784 = vshll.u32 %v2338, 16
        %v2786 = vrot.slane %v2784, 4
        %v2787 = vor.u32 %v2783, %v2786
        %v2788 = vsel %vm1499, %v2746, %v2787
        %v2789 = vshrl.u32 %v2389, 16
        %v2791 = vrot.slane %v2789, 3
        %v2792 = vshll.u32 %v2389, 16
        %v2794 = vrot.slane %v2792, 4
        %v2795 = vor.u32 %v2791, %v2794
        %v2796 = vsel %vm1499, %v2754, %v2795
        %v2797 = vshrl.u32 %v2433, 16
        %v2799 = vrot.slane %v2797, 3
        %v2800 = vshll.u32 %v2433, 16
        %v2802 = vrot.slane %v2800, 4
        %v2803 = vor.u32 %v2799, %v2802
        %v2804 = vsel %vm1499, %v2762, %v2803
        %v2806 = vshrl.u32 %v2249, 16
        %v2808 = vrot.slane %v2806, 3
        %v2809 = vshll.u32 %v2249, 16
        %v2811 = vrot.slane %v2809, 4
        %v2812 = vor.u32 %v2808, %v2811
        %v2813 = vsel %vm1499, %v2771, %v2812
        %v2814 = vshrl.u32 %v2290, 16
        %v2816 = vrot.slane %v2814, 3
        %v2817 = vshll.u32 %v2290, 16
        %v2819 = vrot.slane %v2817, 4
        %v2820 = vor.u32 %v2816, %v2819
        %v2821 = vsel %vm1499, %v2779, %v2820
        %v2822 = vshrl.u32 %v2341, 16
        %v2824 = vrot.slane %v2822, 3
        %v2825 = vshll.u32 %v2341, 16
        %v2827 = vrot.slane %v2825, 4
        %v2828 = vor.u32 %v2824, %v2827
        %v2829 = vsel %vm1499, %v2787, %v2828
        %v2830 = vshrl.u32 %v2392, 16
        %v2832 = vrot.slane %v2830, 3
        %v2833 = vshll.u32 %v2392, 16
        %v2835 = vrot.slane %v2833, 4
        %v2836 = vor.u32 %v2832, %v2835
        %v2837 = vsel %vm1499, %v2795, %v2836
        %v2838 = vshrl.u32 %v2435, 16
        %v2840 = vrot.slane %v2838, 3
        %v2841 = vshll.u32 %v2435, 16
        %v2843 = vrot.slane %v2841, 4
        %v2844 = vor.u32 %v2840, %v2843
        %v2845 = vsel %vm1499, %v2803, %v2844
        %v2847 = vshrl.u32 %v2251, 16
        %v2849 = vrot.slane %v2847, 3
        %v2850 = vshll.u32 %v2251, 16
        %v2852 = vrot.slane %v2850, 4
        %v2853 = vor.u32 %v2849, %v2852
        %v2854 = vsel %vm1499, %v2812, %v2853
        %v2855 = vshrl.u32 %v2293, 16
        %v2857 = vrot.slane %v2855, 3
        %v2858 = vshll.u32 %v2293, 16
        %v2860 = vrot.slane %v2858, 4
        %v2861 = vor.u32 %v2857, %v2860
        %v2862 = vsel %vm1499, %v2820, %v2861
        %v2863 = vshrl.u32 %v2344, 16
        %v2865 = vrot.slane %v2863, 3
        %v2866 = vshll.u32 %v2344, 16
        %v2868 = vrot.slane %v2866, 4
        %v2869 = vor.u32 %v2865, %v2868
        %v2870 = vsel %vm1499, %v2828, %v2869
        %v2871 = vshrl.u32 %v2395, 16
        %v2873 = vrot.slane %v2871, 3
        %v2874 = vshll.u32 %v2395, 16
        %v2876 = vrot.slane %v2874, 4
        %v2877 = vor.u32 %v2873, %v2876
        %v2878 = vsel %vm1499, %v2836, %v2877
        %v2879 = vshrl.u32 %v2437, 16
        %v2881 = vrot.slane %v2879, 3
        %v2882 = vshll.u32 %v2437, 16
        %v2884 = vrot.slane %v2882, 4
        %v2885 = vor.u32 %v2881, %v2884
        %v2886 = vsel %vm1499, %v2844, %v2885
        %v2888 = vshrl.u32 %v2253, 16
        %v2890 = vrot.slane %v2888, 3
        %v2891 = vshll.u32 %v2253, 16
        %v2893 = vrot.slane %v2891, 4
        %v2894 = vor.u32 %v2890, %v2893
        %v2895 = vsel %vm1499, %v2853, %v2894
        %v2896 = vshrl.u32 %v2296, 16
        %v2898 = vrot.slane %v2896, 3
        %v2899 = vshll.u32 %v2296, 16
        %v2901 = vrot.slane %v2899, 4
        %v2902 = vor.u32 %v2898, %v2901
        %v2903 = vsel %vm1499, %v2861, %v2902
        %v2904 = vshrl.u32 %v2347, 16
        %v2906 = vrot.slane %v2904, 3
        %v2907 = vshll.u32 %v2347, 16
        %v2909 = vrot.slane %v2907, 4
        %v2910 = vor.u32 %v2906, %v2909
        %v2911 = vsel %vm1499, %v2869, %v2910
        %v2912 = vshrl.u32 %v2398, 16
        %v2914 = vrot.slane %v2912, 3
        %v2915 = vshll.u32 %v2398, 16
        %v2917 = vrot.slane %v2915, 4
        %v2918 = vor.u32 %v2914, %v2917
        %v2919 = vsel %vm1499, %v2877, %v2918
        %v2920 = vshrl.u32 %v2439, 16
        %v2922 = vrot.slane %v2920, 3
        %v2923 = vshll.u32 %v2439, 16
        %v2925 = vrot.slane %v2923, 4
        %v2926 = vor.u32 %v2922, %v2925
        %v2927 = vsel %vm1499, %v2885, %v2926
        %v2929 = vshrl.u32 %v2255, 16
        %v2931 = vrot.slane %v2929, 3
        %v2932 = vshll.u32 %v2255, 16
        %v2934 = vrot.slane %v2932, 4
        %v2935 = vor.u32 %v2931, %v2934
        %v2936 = vsel %vm1499, %v2894, %v2935
        %v2937 = vshrl.u32 %v2299, 16
        %v2939 = vrot.slane %v2937, 3
        %v2940 = vshll.u32 %v2299, 16
        %v2942 = vrot.slane %v2940, 4
        %v2943 = vor.u32 %v2939, %v2942
        %v2944 = vsel %vm1499, %v2902, %v2943
        %v2945 = vshrl.u32 %v2350, 16
        %v2947 = vrot.slane %v2945, 3
        %v2948 = vshll.u32 %v2350, 16
        %v2950 = vrot.slane %v2948, 4
        %v2951 = vor.u32 %v2947, %v2950
        %v2952 = vsel %vm1499, %v2910, %v2951
        %v2953 = vshrl.u32 %v2401, 16
        %v2955 = vrot.slane %v2953, 3
        %v2956 = vshll.u32 %v2401, 16
        %v2958 = vrot.slane %v2956, 4
        %v2959 = vor.u32 %v2955, %v2958
        %v2960 = vsel %vm1499, %v2918, %v2959
        %v2961 = vshrl.u32 %v2441, 16
        %v2963 = vrot.slane %v2961, 3
        %v2964 = vshll.u32 %v2441, 16
        %v2966 = vrot.slane %v2964, 4
        %v2967 = vor.u32 %v2963, %v2966
        %v2968 = vsel %vm1499, %v2926, %v2967
        %v2970 = vshrl.u32 %v2257, 16
        %v2972 = vrot.slane %v2970, 3
        %v2973 = vshll.u32 %v2257, 16
        %v2975 = vrot.slane %v2973, 4
        %v2976 = vor.u32 %v2972, %v2975
        %v2977 = vsel %vm1499, %v2935, %v2976
        %v2978 = vshrl.u32 %v2302, 16
        %v2980 = vrot.slane %v2978, 3
        %v2981 = vshll.u32 %v2302, 16
        %v2983 = vrot.slane %v2981, 4
        %v2984 = vor.u32 %v2980, %v2983
        %v2985 = vsel %vm1499, %v2943, %v2984
        %v2986 = vshrl.u32 %v2353, 16
        %v2988 = vrot.slane %v2986, 3
        %v2989 = vshll.u32 %v2353, 16
        %v2991 = vrot.slane %v2989, 4
        %v2992 = vor.u32 %v2988, %v2991
        %v2993 = vsel %vm1499, %v2951, %v2992
        %v2994 = vshrl.u32 %v2404, 16
        %v2996 = vrot.slane %v2994, 3
        %v2997 = vshll.u32 %v2404, 16
        %v2999 = vrot.slane %v2997, 4
        %v3000 = vor.u32 %v2996, %v2999
        %v3001 = vsel %vm1499, %v2959, %v3000
        %v3002 = vshrl.u32 %v2443, 16
        %v3004 = vrot.slane %v3002, 3
        %v3005 = vshll.u32 %v2443, 16
        %v3007 = vrot.slane %v3005, 4
        %v3008 = vor.u32 %v3004, %v3007
        %v3009 = vsel %vm1499, %v2967, %v3008
        %v3011 = vshrl.u32 %v2259, 16
        %v3013 = vrot.slane %v3011, 3
        %v3014 = vshll.u32 %v2259, 16
        %v3016 = vrot.slane %v3014, 4
        %v3017 = vor.u32 %v3013, %v3016
        %v3018 = vsel %vm1499, %v2976, %v3017
        %v3019 = vshrl.u32 %v2305, 16
        %v3021 = vrot.slane %v3019, 3
        %v3022 = vshll.u32 %v2305, 16
        %v3024 = vrot.slane %v3022, 4
        %v3025 = vor.u32 %v3021, %v3024
        %v3026 = vsel %vm1499, %v2984, %v3025
        %v3027 = vshrl.u32 %v2356, 16
        %v3029 = vrot.slane %v3027, 3
        %v3030 = vshll.u32 %v2356, 16
        %v3032 = vrot.slane %v3030, 4
        %v3033 = vor.u32 %v3029, %v3032
        %v3034 = vsel %vm1499, %v2992, %v3033
        %v3035 = vshrl.u32 %v2407, 16
        %v3037 = vrot.slane %v3035, 3
        %v3038 = vshll.u32 %v2407, 16
        %v3040 = vrot.slane %v3038, 4
        %v3041 = vor.u32 %v3037, %v3040
        %v3042 = vsel %vm1499, %v3000, %v3041
        %v3043 = vshrl.u32 %v2445, 16
        %v3045 = vrot.slane %v3043, 3
        %v3046 = vshll.u32 %v2445, 16
        %v3048 = vrot.slane %v3046, 4
        %v3049 = vor.u32 %v3045, %v3048
        %v3050 = vsel %vm1499, %v3008, %v3049
        %v3052 = vshrl.u32 %v2261, 16
        %v3054 = vrot.slane %v3052, 3
        %v3055 = vshll.u32 %v2261, 16
        %v3057 = vrot.slane %v3055, 4
        %v3058 = vor.u32 %v3054, %v3057
        %v3059 = vsel %vm1499, %v3017, %v3058
        %v3060 = vshrl.u32 %v2308, 16
        %v3062 = vrot.slane %v3060, 3
        %v3063 = vshll.u32 %v2308, 16
        %v3065 = vrot.slane %v3063, 4
        %v3066 = vor.u32 %v3062, %v3065
        %v3067 = vsel %vm1499, %v3025, %v3066
        %v3068 = vshrl.u32 %v2359, 16
        %v3070 = vrot.slane %v3068, 3
        %v3071 = vshll.u32 %v2359, 16
        %v3073 = vrot.slane %v3071, 4
        %v3074 = vor.u32 %v3070, %v3073
        %v3075 = vsel %vm1499, %v3033, %v3074
        %v3076 = vshrl.u32 %v2410, 16
        %v3078 = vrot.slane %v3076, 3
        %v3079 = vshll.u32 %v2410, 16
        %v3081 = vrot.slane %v3079, 4
        %v3082 = vor.u32 %v3078, %v3081
        %v3083 = vsel %vm1499, %v3041, %v3082
        %v3084 = vshrl.u32 %v2447, 16
        %v3086 = vrot.slane %v3084, 3
        %v3087 = vshll.u32 %v2447, 16
        %v3089 = vrot.slane %v3087, 4
        %v3090 = vor.u32 %v3086, %v3089
        %v3091 = vsel %vm1499, %v3049, %v3090
        %v3093 = vshrl.u32 %v2263, 16
        %v3095 = vrot.slane %v3093, 3
        %v3096 = vshll.u32 %v2263, 16
        %v3098 = vrot.slane %v3096, 4
        %v3099 = vor.u32 %v3095, %v3098
        %v3100 = vsel %vm1499, %v3058, %v3099
        %v3101 = vshrl.u32 %v2311, 16
        %v3103 = vrot.slane %v3101, 3
        %v3104 = vshll.u32 %v2311, 16
        %v3106 = vrot.slane %v3104, 4
        %v3107 = vor.u32 %v3103, %v3106
        %v3108 = vsel %vm1499, %v3066, %v3107
        %v3109 = vshrl.u32 %v2362, 16
        %v3111 = vrot.slane %v3109, 3
        %v3112 = vshll.u32 %v2362, 16
        %v3114 = vrot.slane %v3112, 4
        %v3115 = vor.u32 %v3111, %v3114
        %v3116 = vsel %vm1499, %v3074, %v3115
        %v3117 = vshrl.u32 %v2413, 16
        %v3119 = vrot.slane %v3117, 3
        %v3120 = vshll.u32 %v2413, 16
        %v3122 = vrot.slane %v3120, 4
        %v3123 = vor.u32 %v3119, %v3122
        %v3124 = vsel %vm1499, %v3082, %v3123
        %v3125 = vshrl.u32 %v2450, 16
        %v3127 = vrot.slane %v3125, 3
        %v3128 = vshll.u32 %v2450, 16
        %v3130 = vrot.slane %v3128, 4
        %v3131 = vor.u32 %v3127, %v3130
        %v3132 = vsel %vm1499, %v3090, %v3131
        %v3134 = vshrl.u32 %v2265, 16
        %v3136 = vrot.slane %v3134, 3
        %v3137 = vshll.u32 %v2265, 16
        %v3139 = vrot.slane %v3137, 4
        %v3140 = vor.u32 %v3136, %v3139
        %v3141 = vsel %vm1499, %v3099, %v3140
        %v3142 = vshrl.u32 %v2314, 16
        %v3144 = vrot.slane %v3142, 3
        %v3145 = vshll.u32 %v2314, 16
        %v3147 = vrot.slane %v3145, 4
        %v3148 = vor.u32 %v3144, %v3147
        %v3149 = vsel %vm1499, %v3107, %v3148
        %v3150 = vshrl.u32 %v2365, 16
        %v3152 = vrot.slane %v3150, 3
        %v3153 = vshll.u32 %v2365, 16
        %v3155 = vrot.slane %v3153, 4
        %v3156 = vor.u32 %v3152, %v3155
        %v3157 = vsel %vm1499, %v3115, %v3156
        %v3158 = vshrl.u32 %v2416, 16
        %v3160 = vrot.slane %v3158, 3
        %v3161 = vshll.u32 %v2416, 16
        %v3163 = vrot.slane %v3161, 4
        %v3164 = vor.u32 %v3160, %v3163
        %v3165 = vsel %vm1499, %v3123, %v3164
        %v3166 = vshrl.u32 %v2453, 16
        %v3168 = vrot.slane %v3166, 3
        %v3169 = vshll.u32 %v2453, 16
        %v3171 = vrot.slane %v3169, 4
        %v3172 = vor.u32 %v3168, %v3171
        %v3173 = vsel %vm1499, %v3131, %v3172
        %v3175 = vshrl.u32 %v2266, 16
        %v3177 = vrot.slane %v3175, 3
        %v3178 = vshll.u32 %v2266, 16
        %v3180 = vrot.slane %v3178, 4
        %v3181 = vor.u32 %v3177, %v3180
        %v3182 = vsel %vm1499, %v3140, %v3181
        %v3183 = vshrl.u32 %v2317, 16
        %v3185 = vrot.slane %v3183, 3
        %v3186 = vshll.u32 %v2317, 16
        %v3188 = vrot.slane %v3186, 4
        %v3189 = vor.u32 %v3185, %v3188
        %v3190 = vsel %vm1499, %v3148, %v3189
        %v3191 = vshrl.u32 %v2368, 16
        %v3193 = vrot.slane %v3191, 3
        %v3194 = vshll.u32 %v2368, 16
        %v3196 = vrot.slane %v3194, 4
        %v3197 = vor.u32 %v3193, %v3196
        %v3198 = vsel %vm1499, %v3156, %v3197
        %v3199 = vshrl.u32 %v2419, 16
        %v3201 = vrot.slane %v3199, 3
        %v3202 = vshll.u32 %v2419, 16
        %v3204 = vrot.slane %v3202, 4
        %v3205 = vor.u32 %v3201, %v3204
        %v3206 = vsel %vm1499, %v3164, %v3205
        %v3207 = vshrl.u32 %v2455, 16
        %v3209 = vrot.slane %v3207, 3
        %v3210 = vshll.u32 %v2455, 16
        %v3212 = vrot.slane %v3210, 4
        %v3213 = vor.u32 %v3209, %v3212
        %v3214 = vsel %vm1499, %v3172, %v3213
        %v3216 = vshrl.u32 %v2037, 16
        %v3218 = vrot.slane %v3216, 3
        %v3219 = vshll.u32 %v2037, 16
        %v3221 = vrot.slane %v3219, 4
        %v3222 = vor.u32 %v3218, %v3221
        %v3223 = vsel %vm1499, %v3181, %v3222
        %v3360 = vunpack.c.l.b16 %v2456
        %v3361 = vunpack.c.l.b16 %v2457
        %v3362 = vunpack.c.l.b16 %v2458
        %v3363 = vunpack.c.l.b16 %v2459
        %v3364 = vunpack.c.l.b16 %v2460
        %v3365 = vunpack.c.l.b16 %v2461
        %v3366 = vunpack.c.l.b16 %v2462
        %v3367 = vunpack.c.l.b16 %v2463
        %v3368 = vunpack.c.l.b16 %v2464
        %v3369 = vunpack.c.l.b16 %v2465
        %v3370 = vunpack.c.l.b16 %v2466
        %v3371 = vunpack.c.l.b16 %v2467
        %v3372 = vunpack.c.l.b16 %v2468
        %v3373 = vunpack.c.l.b16 %v2469
        %v3374 = vunpack.c.l.b16 %v2470
        %v3375 = vunpack.c.l.b16 %v2471
        %v3376 = vunpack.c.l.b16 %v2472
        %v3377 = vunpack.c.l.b16 %v2473
        %v3378 = vunpack.c.l.b16 %v2474
        %v3379 = vunpack.c.l.b16 %v2475
        %v3380 = vunpack.c.l.b16 %v2476
        %v3381 = vunpack.c.l.b16 %v2477
        %v3382 = vunpack.c.l.b16 %v2478
        %v3383 = vunpack.c.l.b16 %v2479
        %v3384 = vunpack.c.l.b16 %v2480
        %v3385 = vunpack.c.l.b16 %v2481
        %v3386 = vunpack.c.l.b16 %v2482
        %v3387 = vunpack.c.l.b16 %v2483
        %v3388 = vunpack.c.l.b16 %v2484
        %v3389 = vunpack.c.l.b16 %v2485
        %v3390 = vunpack.c.l.b16 %v2486
        %v3391 = vunpack.c.l.b16 %v2487
        %v3392 = vunpack.c.l.b16 %v2488
        %v3393 = vunpack.c.l.b16 %v2489
        %v3394 = vunpack.c.l.b16 %v2490
        %v3395 = vunpack.c.l.b16 %v2491
        %v3396 = vunpack.c.l.b16 %v2492
        %v3397 = vunpack.c.l.b16 %v2493
        %v3398 = vunpack.c.l.b16 %v2494
        %v3399 = vunpack.c.l.b16 %v2495
        %v3400 = vunpack.c.l.b16 %v2496
        %v3401 = vunpack.c.l.b16 %v2497
        %v3402 = vunpack.c.l.b16 %v2498
        %v3403 = vunpack.c.l.b16 %v2499
        %v3404 = vunpack.c.l.b16 %v2500
        %v3405 = vunpack.c.l.b16 %v2501
        %v3406 = vunpack.c.l.b16 %v2502
        %v3407 = vunpack.c.l.b16 %v2503
        %v3408 = vunpack.c.l.b16 %v2504
        %v3409 = vunpack.c.l.b16 %v2505
        %v3410 = vunpack.c.l.b16 %v2506
        %v3411 = vunpack.c.l.b16 %v2507
        %v3412 = vunpack.c.l.b16 %v2508
        %v3413 = vunpack.c.l.b16 %v2509
        %v3414 = vunpack.c.l.b16 %v2510
        %v3415 = vunpack.c.l.b16 %v2511
        %v3416 = vunpack.c.l.b16 %v2512
        %v3417 = vunpack.c.l.b16 %v2513
        %v3418 = vunpack.c.l.b16 %v2514
        %v3419 = vunpack.c.l.b16 %v2515
        %v3420 = vunpack.c.l.b16 %v2516
        %v3421 = vunpack.c.l.b16 %v2517
        %v3422 = vunpack.c.l.b16 %v2518
        %v3423 = vunpack.c.l.b16 %v2519
        %v3424 = vunpack.c.l.b16 %v2520
        %v3425 = vunpack.c.l.b16 %v2521
        %v3426 = vunpack.c.l.b16 %v2522
        %v3427 = vunpack.c.l.b16 %v2523
        %v3428 = vunpack.c.l.b16 %v2524
        %v3429 = vunpack.c.l.b16 %v2525
        %v3430 = vunpack.c.l.b16 %v2526
        %v3431 = vunpack.c.l.b16 %v2527
        %v3432 = vpack.c.b16 %v3361, %v3360
        %v3433 = vpack.c.b16 %v3363, %v3362
        %v3434 = vpack.c.b16 %v3365, %v3364
        %v3435 = vpack.c.b16 %v3367, %v3366
        %v3436 = vpack.c.b16 %v3369, %v3368
        %v3437 = vpack.c.b16 %v3371, %v3370
        %v3438 = vpack.c.b16 %v3373, %v3372
        %v3439 = vpack.c.b16 %v3375, %v3374
        %v3440 = vpack.c.b16 %v3377, %v3376
        %v3441 = vpack.c.b16 %v3379, %v3378
        %v3442 = vpack.c.b16 %v3381, %v3380
        %v3443 = vpack.c.b16 %v3383, %v3382
        %v3444 = vpack.c.b16 %v3385, %v3384
        %v3445 = vpack.c.b16 %v3387, %v3386
        %v3446 = vpack.c.b16 %v3389, %v3388
        %v3447 = vpack.c.b16 %v3391, %v3390
        %v3448 = vpack.c.b16 %v3393, %v3392
        %v3449 = vpack.c.b16 %v3395, %v3394
        %v3450 = vpack.c.b16 %v3397, %v3396
        %v3451 = vpack.c.b16 %v3399, %v3398
        %v3452 = vpack.c.b16 %v3401, %v3400
        %v3453 = vpack.c.b16 %v3403, %v3402
        %v3454 = vpack.c.b16 %v3405, %v3404
        %v3455 = vpack.c.b16 %v3407, %v3406
        %v3456 = vpack.c.b16 %v3409, %v3408
        %v3457 = vpack.c.b16 %v3411, %v3410
        %v3458 = vpack.c.b16 %v3413, %v3412
        %v3459 = vpack.c.b16 %v3415, %v3414
        %v3460 = vpack.c.b16 %v3417, %v3416
        %v3461 = vpack.c.b16 %v3419, %v3418
        %v3462 = vpack.c.b16 %v3421, %v3420
        %v3463 = vpack.c.b16 %v3423, %v3422
        %v3464 = vpack.c.b16 %v3425, %v3424
        %v3465 = vpack.c.b16 %v3427, %v3426
        %v3466 = vpack.c.b16 %v3429, %v3428
        %v3467 = vpack.c.b16 %v3431, %v3430
        %v3505 = vsel %vm2267, %v2608, 0
        %v3508 = vsel %vm2267, %v2649, 0
        %v3511 = vsel %vm2267, %v2690, 0
        %v3514 = vsel %vm2267, %v2731, 0
        %v3517 = vsel %vm2267, %v2772, 0
        %v3520 = vsel %vm2267, %v2813, 0
        %v3523 = vsel %vm2267, %v2854, 0
        %v3526 = vsel %vm2267, %v2895, 0
        %v3529 = vsel %vm2267, %v2936, 0
        %v3532 = vsel %vm2267, %v2977, 0
        %v3535 = vsel %vm2267, %v3018, 0
        %v3538 = vsel %vm2267, %v3059, 0
        %v3541 = vsel %vm2267, %v3100, 0
        %v3544 = vsel %vm2267, %v3141, 0
        %v3547 = vsel %vm2267, %v3182, 0
        %v3550 = vsel %vm2267, %v3223, 0
        %3552 = vmatpush.bf16.msra.mxu0 %v3439
        %3553 = vmatpush.bf16.msra.mxu0 %v3438
        %3554 = vmatpush.bf16.msra.mxu0 %v3437
        %3555 = vmatpush.bf16.msra.mxu0 %v3436
        %3556 = vmatpush.bf16.msra.mxu0 %v3435
        %3557 = vmatpush.bf16.msra.mxu0 %v3434
        %3558 = vmatpush.bf16.msra.mxu0 %v3433
        %3559 = vmatpush.bf16.msra.mxu0 %v3432
        %3560 = vmatmul.bf16.gmra.mxu0 %v2546
        %v3561 = vpop.f32.mrf.mxu0
        %v3562 = vadd.f32 %v2530, %v3561
        %v3563 = vpop.f32.mrf.mxu0
        %v3564 = vadd.f32 %v2530, %v3563
        %3565 = vmatmul.bf16.gmra.mxu0 %v2616
        %v3566 = vpop.f32.mrf.mxu0
        %v3567 = vadd.f32 %v2530, %v3566
        %v3568 = vpop.f32.mrf.mxu0
        %v3569 = vadd.f32 %v2530, %v3568
        %3570 = vmatmul.bf16.gmra.mxu0 %v2657
        %v3571 = vpop.f32.mrf.mxu0
        %v3572 = vadd.f32 %v2530, %v3571
        %v3573 = vpop.f32.mrf.mxu0
        %v3574 = vadd.f32 %v2530, %v3573
        %3575 = vmatmul.bf16.gmra.mxu0 %v2698
        %v3576 = vpop.f32.mrf.mxu0
        %v3577 = vadd.f32 %v2530, %v3576
        %v3578 = vpop.f32.mrf.mxu0
        %v3579 = vadd.f32 %v2530, %v3578
        %3580 = vmatmul.bf16.gmra.mxu0 %v2739
        %v3581 = vpop.f32.mrf.mxu0
        %v3582 = vadd.f32 %v2530, %v3581
        %v3583 = vpop.f32.mrf.mxu0
        %v3584 = vadd.f32 %v2530, %v3583
        %3585 = vmatmul.bf16.gmra.mxu0 %v2780
        %v3586 = vpop.f32.mrf.mxu0
        %v3587 = vadd.f32 %v2530, %v3586
        %v3588 = vpop.f32.mrf.mxu0
        %v3589 = vadd.f32 %v2530, %v3588
        %3590 = vmatmul.bf16.gmra.mxu0 %v2821
        %v3591 = vpop.f32.mrf.mxu0
        %v3592 = vadd.f32 %v2530, %v3591
        %v3593 = vpop.f32.mrf.mxu0
        %v3594 = vadd.f32 %v2530, %v3593
        %3595 = vmatmul.bf16.gmra.mxu0 %v2862
        %v3596 = vpop.f32.mrf.mxu0
        %v3597 = vadd.f32 %v2530, %v3596
        %v3598 = vpop.f32.mrf.mxu0
        %v3599 = vadd.f32 %v2530, %v3598
        %3600 = vmatmul.bf16.gmra.mxu0 %v2903
        %v3601 = vpop.f32.mrf.mxu0
        %v3602 = vadd.f32 %v2530, %v3601
        %v3603 = vpop.f32.mrf.mxu0
        %v3604 = vadd.f32 %v2530, %v3603
        %3605 = vmatmul.bf16.gmra.mxu0 %v2944
        %v3606 = vpop.f32.mrf.mxu0
        %v3607 = vadd.f32 %v2530, %v3606
        %v3608 = vpop.f32.mrf.mxu0
        %v3609 = vadd.f32 %v2530, %v3608
        %3610 = vmatmul.bf16.gmra.mxu0 %v2985
        %v3611 = vpop.f32.mrf.mxu0
        %v3612 = vadd.f32 %v2530, %v3611
        %v3613 = vpop.f32.mrf.mxu0
        %v3614 = vadd.f32 %v2530, %v3613
        %3615 = vmatmul.bf16.gmra.mxu0 %v3026
        %v3616 = vpop.f32.mrf.mxu0
        %v3617 = vadd.f32 %v2530, %v3616
        %v3618 = vpop.f32.mrf.mxu0
        %v3619 = vadd.f32 %v2530, %v3618
        %3620 = vmatmul.bf16.gmra.mxu0 %v3067
        %v3621 = vpop.f32.mrf.mxu0
        %v3622 = vadd.f32 %v2530, %v3621
        %v3623 = vpop.f32.mrf.mxu0
        %v3624 = vadd.f32 %v2530, %v3623
        %3625 = vmatmul.bf16.gmra.mxu0 %v3108
        %v3626 = vpop.f32.mrf.mxu0
        %v3627 = vadd.f32 %v2530, %v3626
        %v3628 = vpop.f32.mrf.mxu0
        %v3629 = vadd.f32 %v2530, %v3628
        %3630 = vmatmul.bf16.gmra.mxu0 %v3149
        %v3631 = vpop.f32.mrf.mxu0
        %v3632 = vadd.f32 %v2530, %v3631
        %v3633 = vpop.f32.mrf.mxu0
        %v3634 = vadd.f32 %v2530, %v3633
        %3635 = vmatmul.bf16.gmra.mxu0 %v3190
        %v3636 = vpop.f32.mrf.mxu0
        %v3637 = vadd.f32 %v2530, %v3636
        %v3638 = vpop.f32.mrf.mxu0
        %v3639 = vadd.f32 %v2530, %v3638
        %3640 = vdwg.mxu0
        %3641 = vmatpush.bf16.msra.mxu0 %v3447
        %3642 = vmatpush.bf16.msra.mxu0 %v3446
        %3643 = vmatpush.bf16.msra.mxu0 %v3445
        %3644 = vmatpush.bf16.msra.mxu0 %v3444
        %3645 = vmatpush.bf16.msra.mxu0 %v3443
        %3646 = vmatpush.bf16.msra.mxu0 %v3442
        %3647 = vmatpush.bf16.msra.mxu0 %v3441
        %3648 = vmatpush.bf16.msra.mxu0 %v3440
        %3649 = vmatmul.bf16.gmra.mxu0 %v2561
        %v3650 = vpop.f32.mrf.mxu0
        %v3651 = vadd.f32 %v3562, %v3650
        %v3652 = vpop.f32.mrf.mxu0
        %v3653 = vadd.f32 %v3564, %v3652
        %3654 = vmatmul.bf16.gmra.mxu0 %v2624
        %v3655 = vpop.f32.mrf.mxu0
        %v3656 = vadd.f32 %v3567, %v3655
        %v3657 = vpop.f32.mrf.mxu0
        %v3658 = vadd.f32 %v3569, %v3657
        %3659 = vmatmul.bf16.gmra.mxu0 %v2665
        %v3660 = vpop.f32.mrf.mxu0
        %v3661 = vadd.f32 %v3572, %v3660
        %v3662 = vpop.f32.mrf.mxu0
        %v3663 = vadd.f32 %v3574, %v3662
        %3664 = vmatmul.bf16.gmra.mxu0 %v2706
        %v3665 = vpop.f32.mrf.mxu0
        %v3666 = vadd.f32 %v3577, %v3665
        %v3667 = vpop.f32.mrf.mxu0
        %v3668 = vadd.f32 %v3579, %v3667
        %3669 = vmatmul.bf16.gmra.mxu0 %v2747
        %v3670 = vpop.f32.mrf.mxu0
        %v3671 = vadd.f32 %v3582, %v3670
        %v3672 = vpop.f32.mrf.mxu0
        %v3673 = vadd.f32 %v3584, %v3672
        %3674 = vmatmul.bf16.gmra.mxu0 %v2788
        %v3675 = vpop.f32.mrf.mxu0
        %v3676 = vadd.f32 %v3587, %v3675
        %v3677 = vpop.f32.mrf.mxu0
        %v3678 = vadd.f32 %v3589, %v3677
        %3679 = vmatmul.bf16.gmra.mxu0 %v2829
        %v3680 = vpop.f32.mrf.mxu0
        %v3681 = vadd.f32 %v3592, %v3680
        %v3682 = vpop.f32.mrf.mxu0
        %v3683 = vadd.f32 %v3594, %v3682
        %3684 = vmatmul.bf16.gmra.mxu0 %v2870
        %v3685 = vpop.f32.mrf.mxu0
        %v3686 = vadd.f32 %v3597, %v3685
        %v3687 = vpop.f32.mrf.mxu0
        %v3688 = vadd.f32 %v3599, %v3687
        %3689 = vmatmul.bf16.gmra.mxu0 %v2911
        %v3690 = vpop.f32.mrf.mxu0
        %v3691 = vadd.f32 %v3602, %v3690
        %v3692 = vpop.f32.mrf.mxu0
        %v3693 = vadd.f32 %v3604, %v3692
        %3694 = vmatmul.bf16.gmra.mxu0 %v2952
        %v3695 = vpop.f32.mrf.mxu0
        %v3696 = vadd.f32 %v3607, %v3695
        %v3697 = vpop.f32.mrf.mxu0
        %v3698 = vadd.f32 %v3609, %v3697
        %3699 = vmatmul.bf16.gmra.mxu0 %v2993
        %v3700 = vpop.f32.mrf.mxu0
        %v3701 = vadd.f32 %v3612, %v3700
        %v3702 = vpop.f32.mrf.mxu0
        %v3703 = vadd.f32 %v3614, %v3702
        %3704 = vmatmul.bf16.gmra.mxu0 %v3034
        %v3705 = vpop.f32.mrf.mxu0
        %v3706 = vadd.f32 %v3617, %v3705
        %v3707 = vpop.f32.mrf.mxu0
        %v3708 = vadd.f32 %v3619, %v3707
        %3709 = vmatmul.bf16.gmra.mxu0 %v3075
        %v3710 = vpop.f32.mrf.mxu0
        %v3711 = vadd.f32 %v3622, %v3710
        %v3712 = vpop.f32.mrf.mxu0
        %v3713 = vadd.f32 %v3624, %v3712
        %3714 = vmatmul.bf16.gmra.mxu0 %v3116
        %v3715 = vpop.f32.mrf.mxu0
        %v3716 = vadd.f32 %v3627, %v3715
        %v3717 = vpop.f32.mrf.mxu0
        %v3718 = vadd.f32 %v3629, %v3717
        %3719 = vmatmul.bf16.gmra.mxu0 %v3157
        %v3720 = vpop.f32.mrf.mxu0
        %v3721 = vadd.f32 %v3632, %v3720
        %v3722 = vpop.f32.mrf.mxu0
        %v3723 = vadd.f32 %v3634, %v3722
        %3724 = vmatmul.bf16.gmra.mxu0 %v3198
        %v3725 = vpop.f32.mrf.mxu0
        %v3726 = vadd.f32 %v3637, %v3725
        %v3727 = vpop.f32.mrf.mxu0
        %v3728 = vadd.f32 %v3639, %v3727
        %3729 = vdwg.mxu0
        %3730 = vmatpush.bf16.msra.mxu0 %v3455
        %3731 = vmatpush.bf16.msra.mxu0 %v3454
        %3732 = vmatpush.bf16.msra.mxu0 %v3453
        %3733 = vmatpush.bf16.msra.mxu0 %v3452
        %3734 = vmatpush.bf16.msra.mxu0 %v3451
        %3735 = vmatpush.bf16.msra.mxu0 %v3450
        %3736 = vmatpush.bf16.msra.mxu0 %v3449
        %3737 = vmatpush.bf16.msra.mxu0 %v3448
        %3738 = vmatmul.bf16.gmra.mxu0 %v2576
        %v3739 = vpop.f32.mrf.mxu0
        %v3740 = vadd.f32 %v3651, %v3739
        %v3741 = vpop.f32.mrf.mxu0
        %v3742 = vadd.f32 %v3653, %v3741
        %3743 = vmatmul.bf16.gmra.mxu0 %v2632
        %v3744 = vpop.f32.mrf.mxu0
        %v3745 = vadd.f32 %v3656, %v3744
        %v3746 = vpop.f32.mrf.mxu0
        %v3747 = vadd.f32 %v3658, %v3746
        %3748 = vmatmul.bf16.gmra.mxu0 %v2673
        %v3749 = vpop.f32.mrf.mxu0
        %v3750 = vadd.f32 %v3661, %v3749
        %v3751 = vpop.f32.mrf.mxu0
        %v3752 = vadd.f32 %v3663, %v3751
        %3753 = vmatmul.bf16.gmra.mxu0 %v2714
        %v3754 = vpop.f32.mrf.mxu0
        %v3755 = vadd.f32 %v3666, %v3754
        %v3756 = vpop.f32.mrf.mxu0
        %v3757 = vadd.f32 %v3668, %v3756
        %3758 = vmatmul.bf16.gmra.mxu0 %v2755
        %v3759 = vpop.f32.mrf.mxu0
        %v3760 = vadd.f32 %v3671, %v3759
        %v3761 = vpop.f32.mrf.mxu0
        %v3762 = vadd.f32 %v3673, %v3761
        %3763 = vmatmul.bf16.gmra.mxu0 %v2796
        %v3764 = vpop.f32.mrf.mxu0
        %v3765 = vadd.f32 %v3676, %v3764
        %v3766 = vpop.f32.mrf.mxu0
        %v3767 = vadd.f32 %v3678, %v3766
        %3768 = vmatmul.bf16.gmra.mxu0 %v2837
        %v3769 = vpop.f32.mrf.mxu0
        %v3770 = vadd.f32 %v3681, %v3769
        %v3771 = vpop.f32.mrf.mxu0
        %v3772 = vadd.f32 %v3683, %v3771
        %3773 = vmatmul.bf16.gmra.mxu0 %v2878
        %v3774 = vpop.f32.mrf.mxu0
        %v3775 = vadd.f32 %v3686, %v3774
        %v3776 = vpop.f32.mrf.mxu0
        %v3777 = vadd.f32 %v3688, %v3776
        %3778 = vmatmul.bf16.gmra.mxu0 %v2919
        %v3779 = vpop.f32.mrf.mxu0
        %v3780 = vadd.f32 %v3691, %v3779
        %v3781 = vpop.f32.mrf.mxu0
        %v3782 = vadd.f32 %v3693, %v3781
        %3783 = vmatmul.bf16.gmra.mxu0 %v2960
        %v3784 = vpop.f32.mrf.mxu0
        %v3785 = vadd.f32 %v3696, %v3784
        %v3786 = vpop.f32.mrf.mxu0
        %v3787 = vadd.f32 %v3698, %v3786
        %3788 = vmatmul.bf16.gmra.mxu0 %v3001
        %v3789 = vpop.f32.mrf.mxu0
        %v3790 = vadd.f32 %v3701, %v3789
        %v3791 = vpop.f32.mrf.mxu0
        %v3792 = vadd.f32 %v3703, %v3791
        %3793 = vmatmul.bf16.gmra.mxu0 %v3042
        %v3794 = vpop.f32.mrf.mxu0
        %v3795 = vadd.f32 %v3706, %v3794
        %v3796 = vpop.f32.mrf.mxu0
        %v3797 = vadd.f32 %v3708, %v3796
        %3798 = vmatmul.bf16.gmra.mxu0 %v3083
        %v3799 = vpop.f32.mrf.mxu0
        %v3800 = vadd.f32 %v3711, %v3799
        %v3801 = vpop.f32.mrf.mxu0
        %v3802 = vadd.f32 %v3713, %v3801
        %3803 = vmatmul.bf16.gmra.mxu0 %v3124
        %v3804 = vpop.f32.mrf.mxu0
        %v3805 = vadd.f32 %v3716, %v3804
        %v3806 = vpop.f32.mrf.mxu0
        %v3807 = vadd.f32 %v3718, %v3806
        %3808 = vmatmul.bf16.gmra.mxu0 %v3165
        %v3809 = vpop.f32.mrf.mxu0
        %v3810 = vadd.f32 %v3721, %v3809
        %v3811 = vpop.f32.mrf.mxu0
        %v3812 = vadd.f32 %v3723, %v3811
        %3813 = vmatmul.bf16.gmra.mxu0 %v3206
        %v3814 = vpop.f32.mrf.mxu0
        %v3815 = vadd.f32 %v3726, %v3814
        %v3816 = vpop.f32.mrf.mxu0
        %v3817 = vadd.f32 %v3728, %v3816
        %3818 = vdwg.mxu0
        %3819 = vmatpush.bf16.msra.mxu0 %v3463
        %3820 = vmatpush.bf16.msra.mxu0 %v3462
        %3821 = vmatpush.bf16.msra.mxu0 %v3461
        %3822 = vmatpush.bf16.msra.mxu0 %v3460
        %3823 = vmatpush.bf16.msra.mxu0 %v3459
        %3824 = vmatpush.bf16.msra.mxu0 %v3458
        %3825 = vmatpush.bf16.msra.mxu0 %v3457
        %3826 = vmatpush.bf16.msra.mxu0 %v3456
        %3827 = vmatmul.bf16.gmra.mxu0 %v2591
        %v3828 = vpop.f32.mrf.mxu0
        %v3829 = vadd.f32 %v3740, %v3828
        %v3830 = vpop.f32.mrf.mxu0
        %v3831 = vadd.f32 %v3742, %v3830
        %3832 = vmatmul.bf16.gmra.mxu0 %v2640
        %v3833 = vpop.f32.mrf.mxu0
        %v3834 = vadd.f32 %v3745, %v3833
        %v3835 = vpop.f32.mrf.mxu0
        %v3836 = vadd.f32 %v3747, %v3835
        %3837 = vmatmul.bf16.gmra.mxu0 %v2681
        %v3838 = vpop.f32.mrf.mxu0
        %v3839 = vadd.f32 %v3750, %v3838
        %v3840 = vpop.f32.mrf.mxu0
        %v3841 = vadd.f32 %v3752, %v3840
        %3842 = vmatmul.bf16.gmra.mxu0 %v2722
        %v3843 = vpop.f32.mrf.mxu0
        %v3844 = vadd.f32 %v3755, %v3843
        %v3845 = vpop.f32.mrf.mxu0
        %v3846 = vadd.f32 %v3757, %v3845
        %3847 = vmatmul.bf16.gmra.mxu0 %v2763
        %v3848 = vpop.f32.mrf.mxu0
        %v3849 = vadd.f32 %v3760, %v3848
        %v3850 = vpop.f32.mrf.mxu0
        %v3851 = vadd.f32 %v3762, %v3850
        %3852 = vmatmul.bf16.gmra.mxu0 %v2804
        %v3853 = vpop.f32.mrf.mxu0
        %v3854 = vadd.f32 %v3765, %v3853
        %v3855 = vpop.f32.mrf.mxu0
        %v3856 = vadd.f32 %v3767, %v3855
        %3857 = vmatmul.bf16.gmra.mxu0 %v2845
        %v3858 = vpop.f32.mrf.mxu0
        %v3859 = vadd.f32 %v3770, %v3858
        %v3860 = vpop.f32.mrf.mxu0
        %v3861 = vadd.f32 %v3772, %v3860
        %3862 = vmatmul.bf16.gmra.mxu0 %v2886
        %v3863 = vpop.f32.mrf.mxu0
        %v3864 = vadd.f32 %v3775, %v3863
        %v3865 = vpop.f32.mrf.mxu0
        %v3866 = vadd.f32 %v3777, %v3865
        %3867 = vmatmul.bf16.gmra.mxu0 %v2927
        %v3868 = vpop.f32.mrf.mxu0
        %v3869 = vadd.f32 %v3780, %v3868
        %v3870 = vpop.f32.mrf.mxu0
        %v3871 = vadd.f32 %v3782, %v3870
        %3872 = vmatmul.bf16.gmra.mxu0 %v2968
        %v3873 = vpop.f32.mrf.mxu0
        %v3874 = vadd.f32 %v3785, %v3873
        %v3875 = vpop.f32.mrf.mxu0
        %v3876 = vadd.f32 %v3787, %v3875
        %3877 = vmatmul.bf16.gmra.mxu0 %v3009
        %v3878 = vpop.f32.mrf.mxu0
        %v3879 = vadd.f32 %v3790, %v3878
        %v3880 = vpop.f32.mrf.mxu0
        %v3881 = vadd.f32 %v3792, %v3880
        %3882 = vmatmul.bf16.gmra.mxu0 %v3050
        %v3883 = vpop.f32.mrf.mxu0
        %v3884 = vadd.f32 %v3795, %v3883
        %v3885 = vpop.f32.mrf.mxu0
        %v3886 = vadd.f32 %v3797, %v3885
        %3887 = vmatmul.bf16.gmra.mxu0 %v3091
        %v3888 = vpop.f32.mrf.mxu0
        %v3889 = vadd.f32 %v3800, %v3888
        %v3890 = vpop.f32.mrf.mxu0
        %v3891 = vadd.f32 %v3802, %v3890
        %3892 = vmatmul.bf16.gmra.mxu0 %v3132
        %v3893 = vpop.f32.mrf.mxu0
        %v3894 = vadd.f32 %v3805, %v3893
        %v3895 = vpop.f32.mrf.mxu0
        %v3896 = vadd.f32 %v3807, %v3895
        %3897 = vmatmul.bf16.gmra.mxu0 %v3173
        %v3898 = vpop.f32.mrf.mxu0
        %v3899 = vadd.f32 %v3810, %v3898
        %v3900 = vpop.f32.mrf.mxu0
        %v3901 = vadd.f32 %v3812, %v3900
        %3902 = vmatmul.bf16.gmra.mxu0 %v3214
        %v3903 = vpop.f32.mrf.mxu0
        %v3904 = vadd.f32 %v3815, %v3903
        %v3905 = vpop.f32.mrf.mxu0
        %v3906 = vadd.f32 %v3817, %v3905
        %3907 = vdwg.mxu0
        %3908 = vmatpush.bf16.msra.mxu0 0
        %3909 = vmatpush.bf16.msra.mxu0 0
        %3910 = vmatpush.bf16.msra.mxu0 0
        %3911 = vmatpush.bf16.msra.mxu0 0
        %3912 = vmatpush.bf16.msra.mxu0 %v3467
        %3913 = vmatpush.bf16.msra.mxu0 %v3466
        %3914 = vmatpush.bf16.msra.mxu0 %v3465
        %3915 = vmatpush.bf16.msra.mxu0 %v3464
        %3916 = vmatmul.bf16.gmra.mxu0 %v3505
        %v3917 = vpop.f32.mrf.mxu0
        %v3918 = vadd.f32 %v3829, %v3917
        %v3919 = vpop.f32.mrf.mxu0
        %v3920 = vadd.f32 %v3831, %v3919
        %3921 = vmatmul.bf16.gmra.mxu0 %v3508
        %v3922 = vpop.f32.mrf.mxu0
        %v3923 = vadd.f32 %v3834, %v3922
        %v3924 = vpop.f32.mrf.mxu0
        %v3925 = vadd.f32 %v3836, %v3924
        %3926 = vmatmul.bf16.gmra.mxu0 %v3511
        %v3927 = vpop.f32.mrf.mxu0
        %v3928 = vadd.f32 %v3839, %v3927
        %v3929 = vpop.f32.mrf.mxu0
        %v3930 = vadd.f32 %v3841, %v3929
        %3931 = vmatmul.bf16.gmra.mxu0 %v3514
        %v3932 = vpop.f32.mrf.mxu0
        %v3933 = vadd.f32 %v3844, %v3932
        %v3934 = vpop.f32.mrf.mxu0
        %v3935 = vadd.f32 %v3846, %v3934
        %3936 = vmatmul.bf16.gmra.mxu0 %v3517
        %v3937 = vpop.f32.mrf.mxu0
        %v3938 = vadd.f32 %v3849, %v3937
        %v3939 = vpop.f32.mrf.mxu0
        %v3940 = vadd.f32 %v3851, %v3939
        %3941 = vmatmul.bf16.gmra.mxu0 %v3520
        %v3942 = vpop.f32.mrf.mxu0
        %v3943 = vadd.f32 %v3854, %v3942
        %v3944 = vpop.f32.mrf.mxu0
        %v3945 = vadd.f32 %v3856, %v3944
        %3946 = vmatmul.bf16.gmra.mxu0 %v3523
        %v3947 = vpop.f32.mrf.mxu0
        %v3948 = vadd.f32 %v3859, %v3947
        %v3949 = vpop.f32.mrf.mxu0
        %v3950 = vadd.f32 %v3861, %v3949
        %3951 = vmatmul.bf16.gmra.mxu0 %v3526
        %v3952 = vpop.f32.mrf.mxu0
        %v3953 = vadd.f32 %v3864, %v3952
        %v3954 = vpop.f32.mrf.mxu0
        %v3955 = vadd.f32 %v3866, %v3954
        %3956 = vmatmul.bf16.gmra.mxu0 %v3529
        %v3957 = vpop.f32.mrf.mxu0
        %v3958 = vadd.f32 %v3869, %v3957
        %v3959 = vpop.f32.mrf.mxu0
        %v3960 = vadd.f32 %v3871, %v3959
        %3961 = vmatmul.bf16.gmra.mxu0 %v3532
        %v3962 = vpop.f32.mrf.mxu0
        %v3963 = vadd.f32 %v3874, %v3962
        %v3964 = vpop.f32.mrf.mxu0
        %v3965 = vadd.f32 %v3876, %v3964
        %3966 = vmatmul.bf16.gmra.mxu0 %v3535
        %v3967 = vpop.f32.mrf.mxu0
        %v3968 = vadd.f32 %v3879, %v3967
        %v3969 = vpop.f32.mrf.mxu0
        %v3970 = vadd.f32 %v3881, %v3969
        %3971 = vmatmul.bf16.gmra.mxu0 %v3538
        %v3972 = vpop.f32.mrf.mxu0
        %v3973 = vadd.f32 %v3884, %v3972
        %v3974 = vpop.f32.mrf.mxu0
        %v3975 = vadd.f32 %v3886, %v3974
        %3976 = vmatmul.bf16.gmra.mxu0 %v3541
        %v3977 = vpop.f32.mrf.mxu0
        %v3978 = vadd.f32 %v3889, %v3977
        %v3979 = vpop.f32.mrf.mxu0
        %v3980 = vadd.f32 %v3891, %v3979
        %3981 = vmatmul.bf16.gmra.mxu0 %v3544
        %v3982 = vpop.f32.mrf.mxu0
        %v3983 = vadd.f32 %v3894, %v3982
        %v3984 = vpop.f32.mrf.mxu0
        %v3985 = vadd.f32 %v3896, %v3984
        %3986 = vmatmul.bf16.gmra.mxu0 %v3547
        %v3987 = vpop.f32.mrf.mxu0
        %v3988 = vadd.f32 %v3899, %v3987
        %v3989 = vpop.f32.mrf.mxu0
        %v3990 = vadd.f32 %v3901, %v3989
        %3991 = vmatmul.bf16.gmra.mxu0 %v3550
        %v3992 = vpop.f32.mrf.mxu0
        %v3993 = vadd.f32 %v3904, %v3992
        %v3994 = vpop.f32.mrf.mxu0
        %v3995 = vadd.f32 %v3906, %v3994
        %3996 = vdwg.mxu0
        %v3997 = vmax.f32 %v3918, 0.0
        %v3998 = vmax.f32 %v3920, 0.0
        %v3999 = vmax.f32 %v3923, 0.0
        %v4000 = vmax.f32 %v3925, 0.0
        %v4001 = vmax.f32 %v3928, 0.0
        %v4002 = vmax.f32 %v3930, 0.0
        %v4003 = vmax.f32 %v3933, 0.0
        %v4004 = vmax.f32 %v3935, 0.0
        %v4005 = vmax.f32 %v3938, 0.0
        %v4006 = vmax.f32 %v3940, 0.0
        %v4007 = vmax.f32 %v3943, 0.0
        %v4008 = vmax.f32 %v3945, 0.0
        %v4009 = vmax.f32 %v3948, 0.0
        %v4010 = vmax.f32 %v3950, 0.0
        %v4011 = vmax.f32 %v3953, 0.0
        %v4012 = vmax.f32 %v3955, 0.0
        %v4013 = vmax.f32 %v3958, 0.0
        %v4014 = vmax.f32 %v3960, 0.0
        %v4015 = vmax.f32 %v3963, 0.0
        %v4016 = vmax.f32 %v3965, 0.0
        %v4017 = vmax.f32 %v3968, 0.0
        %v4018 = vmax.f32 %v3970, 0.0
        %v4019 = vmax.f32 %v3973, 0.0
        %v4020 = vmax.f32 %v3975, 0.0
        %v4021 = vmax.f32 %v3978, 0.0
        %v4022 = vmax.f32 %v3980, 0.0
        %v4023 = vmax.f32 %v3983, 0.0
        %v4024 = vmax.f32 %v3985, 0.0
        %v4025 = vmax.f32 %v3988, 0.0
        %v4026 = vmax.f32 %v3990, 0.0
        %v4027 = vmax.f32 %v3993, 0.0
        %v4028 = vmax.f32 %v3995, 0.0
        %v4029 = vpack.c.bf16 %v3997, %v3997
        %v4030 = vpack.c.bf16 %v3998, %v3998
        %v4031 = vpack.c.bf16 %v3999, %v3999
        %v4032 = vpack.c.bf16 %v4000, %v4000
        %v4033 = vpack.c.bf16 %v4001, %v4001
        %v4034 = vpack.c.bf16 %v4002, %v4002
        %v4035 = vpack.c.bf16 %v4003, %v4003
        %v4036 = vpack.c.bf16 %v4004, %v4004
        %v4037 = vpack.c.bf16 %v4005, %v4005
        %v4038 = vpack.c.bf16 %v4006, %v4006
        %v4039 = vpack.c.bf16 %v4007, %v4007
        %v4040 = vpack.c.bf16 %v4008, %v4008
        %v4041 = vpack.c.bf16 %v4009, %v4009
        %v4042 = vpack.c.bf16 %v4010, %v4010
        %v4043 = vpack.c.bf16 %v4011, %v4011
        %v4044 = vpack.c.bf16 %v4012, %v4012
        %v4045 = vpack.c.bf16 %v4013, %v4013
        %v4046 = vpack.c.bf16 %v4014, %v4014
        %v4047 = vpack.c.bf16 %v4015, %v4015
        %v4048 = vpack.c.bf16 %v4016, %v4016
        %v4049 = vpack.c.bf16 %v4017, %v4017
        %v4050 = vpack.c.bf16 %v4018, %v4018
        %v4051 = vpack.c.bf16 %v4019, %v4019
        %v4052 = vpack.c.bf16 %v4020, %v4020
        %v4053 = vpack.c.bf16 %v4021, %v4021
        %v4054 = vpack.c.bf16 %v4022, %v4022
        %v4055 = vpack.c.bf16 %v4023, %v4023
        %v4056 = vpack.c.bf16 %v4024, %v4024
        %v4057 = vpack.c.bf16 %v4025, %v4025
        %v4058 = vpack.c.bf16 %v4026, %v4026
        %v4059 = vpack.c.bf16 %v4027, %v4027
        %v4060 = vpack.c.bf16 %v4028, %v4028
        %v4093 = vunpack.c.l.b16 %v4029
        %v4094 = vunpack.c.l.b16 %v4030
        %v4095 = vunpack.c.l.b16 %v4031
        %v4096 = vunpack.c.l.b16 %v4032
        %v4097 = vunpack.c.l.b16 %v4033
        %v4098 = vunpack.c.l.b16 %v4034
        %v4099 = vunpack.c.l.b16 %v4035
        %v4100 = vunpack.c.l.b16 %v4036
        %v4101 = vunpack.c.l.b16 %v4037
        %v4102 = vunpack.c.l.b16 %v4038
        %v4103 = vunpack.c.l.b16 %v4039
        %v4104 = vunpack.c.l.b16 %v4040
        %v4105 = vunpack.c.l.b16 %v4041
        %v4106 = vunpack.c.l.b16 %v4042
        %v4107 = vunpack.c.l.b16 %v4043
        %v4108 = vunpack.c.l.b16 %v4044
        %v4109 = vunpack.c.l.b16 %v4045
        %v4110 = vunpack.c.l.b16 %v4046
        %v4111 = vunpack.c.l.b16 %v4047
        %v4112 = vunpack.c.l.b16 %v4048
        %v4113 = vunpack.c.l.b16 %v4049
        %v4114 = vunpack.c.l.b16 %v4050
        %v4115 = vunpack.c.l.b16 %v4051
        %v4116 = vunpack.c.l.b16 %v4052
        %v4117 = vunpack.c.l.b16 %v4053
        %v4118 = vunpack.c.l.b16 %v4054
        %v4119 = vunpack.c.l.b16 %v4055
        %v4120 = vunpack.c.l.b16 %v4056
        %v4121 = vunpack.c.l.b16 %v4057
        %v4122 = vunpack.c.l.b16 %v4058
        %v4123 = vunpack.c.l.b16 %v4059
        %v4124 = vunpack.c.l.b16 %v4060
        %v4125 = vpack.c.b16 %v4093, %v4093
        %v4126 = vpack.c.b16 %v4095, %v4094
        %v4127 = vpack.c.b16 %v4097, %v4096
        %v4128 = vpack.c.b16 %v4099, %v4098
        %v4129 = vpack.c.b16 %v4101, %v4100
        %v4130 = vpack.c.b16 %v4103, %v4102
        %v4131 = vpack.c.b16 %v4105, %v4104
        %v4132 = vpack.c.b16 %v4107, %v4106
        %v4133 = vpack.c.b16 %v4109, %v4108
        %v4134 = vpack.c.b16 %v4111, %v4110
        %v4135 = vpack.c.b16 %v4113, %v4112
        %v4136 = vpack.c.b16 %v4115, %v4114
        %v4137 = vpack.c.b16 %v4117, %v4116
        %v4138 = vpack.c.b16 %v4119, %v4118
        %v4139 = vpack.c.b16 %v4121, %v4120
        %v4140 = vpack.c.b16 %v4123, %v4122
        %v4141 = vpack.c.b16 %v4124, %v4124
        %v4158 = vsel %vm867, 0, %v4125
        %v4161 = vsel %vm867, %v4141, 0
        %v4163 = vsel %vm1201, %v4158, 0
        %v4164 = vsel %vm1208, %v4126, 0
        %v4165 = vsel %vm1215, %v4127, 0
        %v4166 = vsel %vm1222, %v4128, 0
        %v4167 = vsel %vm1229, %v4129, 0
        %v4168 = vsel %vm1236, %v4130, 0
        %v4169 = vsel %vm1243, %v4131, 0
        %v4170 = vsel %vm1250, %v4132, 0
        %v4171 = vsel %vm1257, %v4133, 0
        %v4172 = vsel %vm1264, %v4134, 0
        %v4173 = vsel %vm1271, %v4135, 0
        %v4174 = vsel %vm1278, %v4136, 0
        %v4175 = vsel %vm1285, %v4137, 0
        %v4176 = vsel %vm1292, %v4138, 0
        %v4177 = vsel %vm1299, %v4139, 0
        %v4178 = vsel %vm1306, %v4140, 0
        %v4179 = vsel %vm1649, %v4158, 0
        %v4180 = vsel %vm1656, %v4126, 0
        %v4181 = vsel %vm1663, %v4127, 0
        %v4182 = vsel %vm1670, %v4128, 0
        %v4183 = vsel %vm1677, %v4129, 0
        %v4184 = vsel %vm1684, %v4130, 0
        %v4185 = vsel %vm1691, %v4131, 0
        %v4186 = vsel %vm1698, %v4132, 0
        %v4187 = vsel %vm1705, %v4133, 0
        %v4188 = vsel %vm1712, %v4134, 0
        %v4189 = vsel %vm1719, %v4135, 0
        %v4190 = vsel %vm1726, %v4136, 0
        %v4191 = vsel %vm1733, %v4137, 0
        %v4192 = vsel %vm1740, %v4138, 0
        %v4193 = vsel %vm1747, %v4139, 0
        %v4194 = vsel %vm1754, %v4140, 0
        %v4195 = vsel %vm1777, %v4158, 0
        %v4196 = vsel %vm1201, %v4126, 0
        %v4197 = vsel %vm1208, %v4127, 0
        %v4198 = vsel %vm1215, %v4128, 0
        %v4199 = vsel %vm1222, %v4129, 0
        %v4200 = vsel %vm1229, %v4130, 0
        %v4201 = vsel %vm1236, %v4131, 0
        %v4202 = vsel %vm1243, %v4132, 0
        %v4203 = vsel %vm1250, %v4133, 0
        %v4204 = vsel %vm1257, %v4134, 0
        %v4205 = vsel %vm1264, %v4135, 0
        %v4206 = vsel %vm1271, %v4136, 0
        %v4207 = vsel %vm1278, %v4137, 0
        %v4208 = vsel %vm1285, %v4138, 0
        %v4209 = vsel %vm1292, %v4139, 0
        %v4210 = vsel %vm1299, %v4140, 0
        %v4211 = vsel %vm1306, %v4161, 0
        %v4212 = vsel %vm1801, %v4158, 0
        %v4213 = vsel %vm1649, %v4126, 0
        %v4214 = vsel %vm1656, %v4127, 0
        %v4215 = vsel %vm1663, %v4128, 0
        %v4216 = vsel %vm1670, %v4129, 0
        %v4217 = vsel %vm1677, %v4130, 0
        %v4218 = vsel %vm1684, %v4131, 0
        %v4219 = vsel %vm1691, %v4132, 0
        %v4220 = vsel %vm1698, %v4133, 0
        %v4221 = vsel %vm1705, %v4134, 0
        %v4222 = vsel %vm1712, %v4135, 0
        %v4223 = vsel %vm1719, %v4136, 0
        %v4224 = vsel %vm1726, %v4137, 0
        %v4225 = vsel %vm1733, %v4138, 0
        %v4226 = vsel %vm1740, %v4139, 0
        %v4227 = vsel %vm1747, %v4140, 0
        %v4228 = vsel %vm1754, %v4161, 0
        %v4229 = vsel %vm1777, %v4126, 0
        %v4230 = vsel %vm1201, %v4127, 0
        %v4231 = vsel %vm1208, %v4128, 0
        %v4232 = vsel %vm1215, %v4129, 0
        %v4233 = vsel %vm1222, %v4130, 0
        %v4234 = vsel %vm1229, %v4131, 0
        %v4235 = vsel %vm1236, %v4132, 0
        %v4236 = vsel %vm1243, %v4133, 0
        %v4237 = vsel %vm1250, %v4134, 0
        %v4238 = vsel %vm1257, %v4135, 0
        %v4239 = vsel %vm1264, %v4136, 0
        %v4240 = vsel %vm1271, %v4137, 0
        %v4241 = vsel %vm1278, %v4138, 0
        %v4242 = vsel %vm1285, %v4139, 0
        %v4243 = vsel %vm1292, %v4140, 0
        %v4244 = vsel %vm1299, %v4161, 0
        %v4245 = vsel %vm1801, %v4126, 0
        %v4246 = vsel %vm1649, %v4127, 0
        %v4247 = vsel %vm1656, %v4128, 0
        %v4248 = vsel %vm1663, %v4129, 0
        %v4249 = vsel %vm1670, %v4130, 0
        %v4250 = vsel %vm1677, %v4131, 0
        %v4251 = vsel %vm1684, %v4132, 0
        %v4252 = vsel %vm1691, %v4133, 0
        %v4253 = vsel %vm1698, %v4134, 0
        %v4254 = vsel %vm1705, %v4135, 0
        %v4255 = vsel %vm1712, %v4136, 0
        %v4256 = vsel %vm1719, %v4137, 0
        %v4257 = vsel %vm1726, %v4138, 0
        %v4258 = vsel %vm1733, %v4139, 0
        %v4259 = vsel %vm1740, %v4140, 0
        %v4260 = vsel %vm1747, %v4161, 0
        %v4261 = vshll.u32 %v4158, 16
        %v4263 = vrot.slane %v4261, 1
        %v4264 = vsel %vm1851, %v1857, %v4263
        %v4265 = vshrl.u32 %v4158, 16
        %v4267 = vor.u32 %v4265, %v4263
        %v4269 = vshll.u32 %v4126, 16
        %v4271 = vrot.slane %v4269, 1
        %v4272 = vsel %vm1851, %v4267, %v4271
        %v4273 = vshrl.u32 %v4126, 16
        %v4275 = vor.u32 %v4273, %v4271
        %v4277 = vshll.u32 %v4127, 16
        %v4279 = vrot.slane %v4277, 1
        %v4280 = vsel %vm1851, %v4275, %v4279
        %v4281 = vshrl.u32 %v4127, 16
        %v4283 = vor.u32 %v4281, %v4279
        %v4285 = vshll.u32 %v4128, 16
        %v4287 = vrot.slane %v4285, 1
        %v4288 = vsel %vm1851, %v4283, %v4287
        %v4289 = vshrl.u32 %v4128, 16
        %v4291 = vor.u32 %v4289, %v4287
        %v4293 = vshll.u32 %v4129, 16
        %v4295 = vrot.slane %v4293, 1
        %v4296 = vsel %vm1851, %v4291, %v4295
        %v4297 = vshrl.u32 %v4129, 16
        %v4299 = vor.u32 %v4297, %v4295
        %v4301 = vshll.u32 %v4130, 16
        %v4303 = vrot.slane %v4301, 1
        %v4304 = vsel %vm1851, %v4299, %v4303
        %v4305 = vshrl.u32 %v4130, 16
        %v4307 = vor.u32 %v4305, %v4303
        %v4309 = vshll.u32 %v4131, 16
        %v4311 = vrot.slane %v4309, 1
        %v4312 = vsel %vm1851, %v4307, %v4311
        %v4313 = vshrl.u32 %v4131, 16
        %v4315 = vor.u32 %v4313, %v4311
        %v4317 = vshll.u32 %v4132, 16
        %v4319 = vrot.slane %v4317, 1
        %v4320 = vsel %vm1851, %v4315, %v4319
        %v4321 = vshrl.u32 %v4132, 16
        %v4323 = vor.u32 %v4321, %v4319
        %v4325 = vshll.u32 %v4133, 16
        %v4327 = vrot.slane %v4325, 1
        %v4328 = vsel %vm1851, %v4323, %v4327
        %v4329 = vshrl.u32 %v4133, 16
        %v4331 = vor.u32 %v4329, %v4327
        %v4333 = vshll.u32 %v4134, 16
        %v4335 = vrot.slane %v4333, 1
        %v4336 = vsel %vm1851, %v4331, %v4335
        %v4337 = vshrl.u32 %v4134, 16
        %v4339 = vor.u32 %v4337, %v4335
        %v4341 = vshll.u32 %v4135, 16
        %v4343 = vrot.slane %v4341, 1
        %v4344 = vsel %vm1851, %v4339, %v4343
        %v4345 = vshrl.u32 %v4135, 16
        %v4347 = vor.u32 %v4345, %v4343
        %v4349 = vshll.u32 %v4136, 16
        %v4351 = vrot.slane %v4349, 1
        %v4352 = vsel %vm1851, %v4347, %v4351
        %v4353 = vshrl.u32 %v4136, 16
        %v4355 = vor.u32 %v4353, %v4351
        %v4357 = vshll.u32 %v4137, 16
        %v4359 = vrot.slane %v4357, 1
        %v4360 = vsel %vm1851, %v4355, %v4359
        %v4361 = vshrl.u32 %v4137, 16
        %v4363 = vor.u32 %v4361, %v4359
        %v4365 = vshll.u32 %v4138, 16
        %v4367 = vrot.slane %v4365, 1
        %v4368 = vsel %vm1851, %v4363, %v4367
        %v4369 = vshrl.u32 %v4138, 16
        %v4371 = vor.u32 %v4369, %v4367
        %v4373 = vshll.u32 %v4139, 16
        %v4375 = vrot.slane %v4373, 1
        %v4376 = vsel %vm1851, %v4371, %v4375
        %v4377 = vshrl.u32 %v4139, 16
        %v4379 = vor.u32 %v4377, %v4375
        %v4381 = vshll.u32 %v4140, 16
        %v4383 = vrot.slane %v4381, 1
        %v4384 = vsel %vm1851, %v4379, %v4383
        %v4385 = vshrl.u32 %v4140, 16
        %v4387 = vor.u32 %v4385, %v4383
        %4388 = vrot.lane.b32.xlu0 %v4264, 64
        %v4389 = vpop.permute.xlu0 %4388
        %4390 = vrot.lane.b32.xlu0 %v4272, 64
        %v4391 = vpop.permute.xlu0 %4390
        %4392 = vrot.lane.b32.xlu0 %v4280, 64
        %v4393 = vpop.permute.xlu0 %4392
        %4394 = vrot.lane.b32.xlu0 %v4288, 64
        %v4395 = vpop.permute.xlu0 %4394
        %4396 = vrot.lane.b32.xlu0 %v4296, 64
        %v4397 = vpop.permute.xlu0 %4396
        %4398 = vrot.lane.b32.xlu0 %v4304, 64
        %v4399 = vpop.permute.xlu0 %4398
        %4400 = vrot.lane.b32.xlu0 %v4312, 64
        %v4401 = vpop.permute.xlu0 %4400
        %4402 = vrot.lane.b32.xlu0 %v4320, 64
        %v4403 = vpop.permute.xlu0 %4402
        %4404 = vrot.lane.b32.xlu0 %v4328, 64
        %v4405 = vpop.permute.xlu0 %4404
        %4406 = vrot.lane.b32.xlu0 %v4336, 64
        %v4407 = vpop.permute.xlu0 %4406
        %4408 = vrot.lane.b32.xlu0 %v4344, 64
        %v4409 = vpop.permute.xlu0 %4408
        %4410 = vrot.lane.b32.xlu0 %v4352, 64
        %v4411 = vpop.permute.xlu0 %4410
        %4412 = vrot.lane.b32.xlu0 %v4360, 64
        %v4413 = vpop.permute.xlu0 %4412
        %4414 = vrot.lane.b32.xlu0 %v4368, 64
        %v4415 = vpop.permute.xlu0 %4414
        %4416 = vrot.lane.b32.xlu0 %v4376, 64
        %v4417 = vpop.permute.xlu0 %4416
        %4418 = vrot.lane.b32.xlu0 %v4384, 64
        %v4419 = vpop.permute.xlu0 %4418
        %4420 = vrot.lane.b32.xlu0 %v4387, 64
        %v4421 = vpop.permute.xlu0 %4420
        %v4438 = vrot.slane %v4179, 1
        %v4439 = vsel %vm2036, %v2037, %v4438
        %v4440 = vrot.slane %v4180, 1
        %v4441 = vsel %vm2036, %v4438, %v4440
        %v4442 = vrot.slane %v4181, 1
        %v4443 = vsel %vm2036, %v4440, %v4442
        %v4444 = vrot.slane %v4182, 1
        %v4445 = vsel %vm2036, %v4442, %v4444
        %v4446 = vrot.slane %v4183, 1
        %v4447 = vsel %vm2036, %v4444, %v4446
        %v4448 = vrot.slane %v4184, 1
        %v4449 = vsel %vm2036, %v4446, %v4448
        %v4450 = vrot.slane %v4185, 1
        %v4451 = vsel %vm2036, %v4448, %v4450
        %v4452 = vrot.slane %v4186, 1
        %v4453 = vsel %vm2036, %v4450, %v4452
        %v4454 = vrot.slane %v4187, 1
        %v4455 = vsel %vm2036, %v4452, %v4454
        %v4456 = vrot.slane %v4188, 1
        %v4457 = vsel %vm2036, %v4454, %v4456
        %v4458 = vrot.slane %v4189, 1
        %v4459 = vsel %vm2036, %v4456, %v4458
        %v4460 = vrot.slane %v4190, 1
        %v4461 = vsel %vm2036, %v4458, %v4460
        %v4462 = vrot.slane %v4191, 1
        %v4463 = vsel %vm2036, %v4460, %v4462
        %v4464 = vrot.slane %v4192, 1
        %v4465 = vsel %vm2036, %v4462, %v4464
        %v4466 = vrot.slane %v4193, 1
        %v4467 = vsel %vm2036, %v4464, %v4466
        %v4468 = vrot.slane %v4194, 1
        %v4469 = vsel %vm2036, %v4466, %v4468
        %4487 = vrot.lane.b32.xlu0 %v4195, 64
        %v4488 = vpop.permute.xlu0 %4487
        %4489 = vrot.lane.b32.xlu0 %v4196, 64
        %v4490 = vpop.permute.xlu0 %4489
        %4491 = vrot.lane.b32.xlu0 %v4197, 64
        %v4492 = vpop.permute.xlu0 %4491
        %4493 = vrot.lane.b32.xlu0 %v4198, 64
        %v4494 = vpop.permute.xlu0 %4493
        %4495 = vrot.lane.b32.xlu0 %v4199, 64
        %v4496 = vpop.permute.xlu0 %4495
        %4497 = vrot.lane.b32.xlu0 %v4200, 64
        %v4498 = vpop.permute.xlu0 %4497
        %4499 = vrot.lane.b32.xlu0 %v4201, 64
        %v4500 = vpop.permute.xlu0 %4499
        %4501 = vrot.lane.b32.xlu0 %v4202, 64
        %v4502 = vpop.permute.xlu0 %4501
        %4503 = vrot.lane.b32.xlu0 %v4203, 64
        %v4504 = vpop.permute.xlu0 %4503
        %4505 = vrot.lane.b32.xlu0 %v4204, 64
        %v4506 = vpop.permute.xlu0 %4505
        %4507 = vrot.lane.b32.xlu0 %v4205, 64
        %v4508 = vpop.permute.xlu0 %4507
        %4509 = vrot.lane.b32.xlu0 %v4206, 64
        %v4510 = vpop.permute.xlu0 %4509
        %4511 = vrot.lane.b32.xlu0 %v4207, 64
        %v4512 = vpop.permute.xlu0 %4511
        %4513 = vrot.lane.b32.xlu0 %v4208, 64
        %v4514 = vpop.permute.xlu0 %4513
        %4515 = vrot.lane.b32.xlu0 %v4209, 64
        %v4516 = vpop.permute.xlu0 %4515
        %4517 = vrot.lane.b32.xlu0 %v4210, 64
        %v4518 = vpop.permute.xlu0 %4517
        %4519 = vrot.lane.b32.xlu0 %v4211, 64
        %v4520 = vpop.permute.xlu0 %4519
        %v4521 = vshll.u32 %v4161, 16
        %v4523 = vrot.slane %v4521, 1
        %v4524 = vsel %vm1851, %v4387, %v4523
        %v4525 = vshrl.u32 %v4161, 16
        %v4527 = vor.u32 %v4525, %v4523
        %v4545 = vrot.slane %v4212, 1
        %v4546 = vrot.slane %v4213, 1
        %v4547 = vsel %vm2036, %v4545, %v4546
        %v4548 = vrot.slane %v4214, 1
        %v4549 = vsel %vm2036, %v4546, %v4548
        %v4550 = vrot.slane %v4215, 1
        %v4551 = vsel %vm2036, %v4548, %v4550
        %v4552 = vrot.slane %v4216, 1
        %v4553 = vsel %vm2036, %v4550, %v4552
        %v4554 = vrot.slane %v4217, 1
        %v4555 = vsel %vm2036, %v4552, %v4554
        %v4556 = vrot.slane %v4218, 1
        %v4557 = vsel %vm2036, %v4554, %v4556
        %v4558 = vrot.slane %v4219, 1
        %v4559 = vsel %vm2036, %v4556, %v4558
        %v4560 = vrot.slane %v4220, 1
        %v4561 = vsel %vm2036, %v4558, %v4560
        %v4562 = vrot.slane %v4221, 1
        %v4563 = vsel %vm2036, %v4560, %v4562
        %v4564 = vrot.slane %v4222, 1
        %v4565 = vsel %vm2036, %v4562, %v4564
        %v4566 = vrot.slane %v4223, 1
        %v4567 = vsel %vm2036, %v4564, %v4566
        %v4568 = vrot.slane %v4224, 1
        %v4569 = vsel %vm2036, %v4566, %v4568
        %v4570 = vrot.slane %v4225, 1
        %v4571 = vsel %vm2036, %v4568, %v4570
        %v4572 = vrot.slane %v4226, 1
        %v4573 = vsel %vm2036, %v4570, %v4572
        %v4574 = vrot.slane %v4227, 1
        %v4575 = vsel %vm2036, %v4572, %v4574
        %v4576 = vrot.slane %v4228, 1
        %v4577 = vsel %vm2036, %v4574, %v4576
        %4578 = vrot.lane.b32.xlu0 %v4547, 64
        %v4579 = vpop.permute.xlu0 %4578
        %4580 = vrot.lane.b32.xlu0 %v4549, 64
        %v4581 = vpop.permute.xlu0 %4580
        %4582 = vrot.lane.b32.xlu0 %v4551, 64
        %v4583 = vpop.permute.xlu0 %4582
        %4584 = vrot.lane.b32.xlu0 %v4553, 64
        %v4585 = vpop.permute.xlu0 %4584
        %4586 = vrot.lane.b32.xlu0 %v4555, 64
        %v4587 = vpop.permute.xlu0 %4586
        %4588 = vrot.lane.b32.xlu0 %v4557, 64
        %v4589 = vpop.permute.xlu0 %4588
        %4590 = vrot.lane.b32.xlu0 %v4559, 64
        %v4591 = vpop.permute.xlu0 %4590
        %4592 = vrot.lane.b32.xlu0 %v4561, 64
        %v4593 = vpop.permute.xlu0 %4592
        %4594 = vrot.lane.b32.xlu0 %v4563, 64
        %v4595 = vpop.permute.xlu0 %4594
        %4596 = vrot.lane.b32.xlu0 %v4565, 64
        %v4597 = vpop.permute.xlu0 %4596
        %4598 = vrot.lane.b32.xlu0 %v4567, 64
        %v4599 = vpop.permute.xlu0 %4598
        %4600 = vrot.lane.b32.xlu0 %v4569, 64
        %v4601 = vpop.permute.xlu0 %4600
        %4602 = vrot.lane.b32.xlu0 %v4571, 64
        %v4603 = vpop.permute.xlu0 %4602
        %4604 = vrot.lane.b32.xlu0 %v4573, 64
        %v4605 = vpop.permute.xlu0 %4604
        %4606 = vrot.lane.b32.xlu0 %v4575, 64
        %v4607 = vpop.permute.xlu0 %4606
        %4608 = vrot.lane.b32.xlu0 %v4577, 64
        %v4609 = vpop.permute.xlu0 %4608
        %4610 = vrot.lane.b32.xlu0 %v4576, 64
        %v4611 = vpop.permute.xlu0 %4610
        %v4612 = vsel %vm1851, %v4527, %v1856
        %4613 = vrot.lane.b32.xlu0 %v4524, 64
        %v4614 = vpop.permute.xlu0 %4613
        %4615 = vrot.lane.b32.xlu0 %v4612, 64
        %v4616 = vpop.permute.xlu0 %4615
        %v4633 = vrot.slane %v4245, 1
        %v4634 = vrot.slane %v4246, 1
        %v4635 = vsel %vm2036, %v4633, %v4634
        %v4636 = vrot.slane %v4247, 1
        %v4637 = vsel %vm2036, %v4634, %v4636
        %v4638 = vrot.slane %v4248, 1
        %v4639 = vsel %vm2036, %v4636, %v4638
        %v4640 = vrot.slane %v4249, 1
        %v4641 = vsel %vm2036, %v4638, %v4640
        %v4642 = vrot.slane %v4250, 1
        %v4643 = vsel %vm2036, %v4640, %v4642
        %v4644 = vrot.slane %v4251, 1
        %v4645 = vsel %vm2036, %v4642, %v4644
        %v4646 = vrot.slane %v4252, 1
        %v4647 = vsel %vm2036, %v4644, %v4646
        %v4648 = vrot.slane %v4253, 1
        %v4649 = vsel %vm2036, %v4646, %v4648
        %v4650 = vrot.slane %v4254, 1
        %v4651 = vsel %vm2036, %v4648, %v4650
        %v4652 = vrot.slane %v4255, 1
        %v4653 = vsel %vm2036, %v4650, %v4652
        %v4654 = vrot.slane %v4256, 1
        %v4655 = vsel %vm2036, %v4652, %v4654
        %v4656 = vrot.slane %v4257, 1
        %v4657 = vsel %vm2036, %v4654, %v4656
        %v4658 = vrot.slane %v4258, 1
        %v4659 = vsel %vm2036, %v4656, %v4658
        %v4660 = vrot.slane %v4259, 1
        %v4661 = vsel %vm2036, %v4658, %v4660
        %v4662 = vrot.slane %v4260, 1
        %v4663 = vsel %vm2036, %v4660, %v4662
        %v4664 = vsel %vm2036, %v4662, %v2037
        %v4666 = vsel %vm2267, 0, %v4389
        %v4669 = vsel %vm2267, %v4163, %v4391
        %v4672 = vsel %vm2267, %v4164, %v4393
        %v4675 = vsel %vm2267, %v4165, %v4395
        %v4678 = vsel %vm2267, %v4166, %v4397
        %v4681 = vsel %vm2267, %v4167, %v4399
        %v4684 = vsel %vm2267, %v4168, %v4401
        %v4687 = vsel %vm2267, %v4169, %v4403
        %v4690 = vsel %vm2267, %v4170, %v4405
        %v4693 = vsel %vm2267, %v4171, %v4407
        %v4696 = vsel %vm2267, %v4172, %v4409
        %v4699 = vsel %vm2267, %v4173, %v4411
        %v4702 = vsel %vm2267, %v4174, %v4413
        %v4705 = vsel %vm2267, %v4175, %v4415
        %v4708 = vsel %vm2267, %v4176, %v4417
        %v4711 = vsel %vm2267, %v4177, %v4419
        %v4714 = vsel %vm2267, %v4178, %v4421
        %v4717 = vsel %vm2267, %v4439, %v4488
        %v4720 = vsel %vm2267, %v4441, %v4490
        %v4723 = vsel %vm2267, %v4443, %v4492
        %v4726 = vsel %vm2267, %v4445, %v4494
        %v4729 = vsel %vm2267, %v4447, %v4496
        %v4732 = vsel %vm2267, %v4449, %v4498
        %v4735 = vsel %vm2267, %v4451, %v4500
        %v4738 = vsel %vm2267, %v4453, %v4502
        %v4741 = vsel %vm2267, %v4455, %v4504
        %v4744 = vsel %vm2267, %v4457, %v4506
        %v4747 = vsel %vm2267, %v4459, %v4508
        %v4750 = vsel %vm2267, %v4461, %v4510
        %v4753 = vsel %vm2267, %v4463, %v4512
        %v4756 = vsel %vm2267, %v4465, %v4514
        %v4759 = vsel %vm2267, %v4467, %v4516
        %v4762 = vsel %vm2267, %v4469, %v4518
        %v4765 = vsel %vm2267, %v4468, %v4520
        %v4768 = vsel %vm2267, %v4272, %v4579
        %v4771 = vsel %vm2267, %v4280, %v4581
        %v4774 = vsel %vm2267, %v4288, %v4583
        %v4777 = vsel %vm2267, %v4296, %v4585
        %v4780 = vsel %vm2267, %v4304, %v4587
        %v4783 = vsel %vm2267, %v4312, %v4589
        %v4786 = vsel %vm2267, %v4320, %v4591
        %v4789 = vsel %vm2267, %v4328, %v4593
        %v4792 = vsel %vm2267, %v4336, %v4595
        %v4795 = vsel %vm2267, %v4344, %v4597
        %v4798 = vsel %vm2267, %v4352, %v4599
        %v4801 = vsel %vm2267, %v4360, %v4601
        %v4804 = vsel %vm2267, %v4368, %v4603
        %v4807 = vsel %vm2267, %v4376, %v4605
        %v4810 = vsel %vm2267, %v4384, %v4607
        %v4813 = vsel %vm2267, %v4524, %v4609
        %v4816 = vsel %vm2267, %v4527, %v4611
        %v4818 = vsel %vm2267, %v4229, %v4393
        %v4820 = vsel %vm2267, %v4230, %v4395
        %v4822 = vsel %vm2267, %v4231, %v4397
        %v4824 = vsel %vm2267, %v4232, %v4399
        %v4826 = vsel %vm2267, %v4233, %v4401
        %v4828 = vsel %vm2267, %v4234, %v4403
        %v4830 = vsel %vm2267, %v4235, %v4405
        %v4832 = vsel %vm2267, %v4236, %v4407
        %v4834 = vsel %vm2267, %v4237, %v4409
        %v4836 = vsel %vm2267, %v4238, %v4411
        %v4838 = vsel %vm2267, %v4239, %v4413
        %v4840 = vsel %vm2267, %v4240, %v4415
        %v4842 = vsel %vm2267, %v4241, %v4417
        %v4844 = vsel %vm2267, %v4242, %v4419
        %v4847 = vsel %vm2267, %v4243, %v4614
        %v4850 = vsel %vm2267, %v4244, %v4616
        %v4851 = vld [vmem:[%s3] sm:$0xf]
        %v4852 = vld [vmem:[%s3 + $0x4] sm:$0xf]
        %v4853 = vld [vmem:[%s3 + $0x8] sm:$0xf]
        %v4854 = vld [vmem:[%s3 + $0xc] sm:$0xf]
        %v4855 = vld [vmem:[%s3 + $0x10] sm:$0xf]
        %v4856 = vld [vmem:[%s3 + $0x14] sm:$0xf]
        %v4857 = vld [vmem:[%s3 + $0x18] sm:$0xf]
        %v4858 = vld [vmem:[%s3 + $0x1c] sm:$0xf]
        %v4859 = vld [vmem:[%s3 + $0x20] sm:$0xf]
        %v4860 = vld [vmem:[%s3 + $0x24] sm:$0xf]
        %v4861 = vld [vmem:[%s3 + $0x28] sm:$0xf]
        %v4862 = vld [vmem:[%s3 + $0x2c] sm:$0xf]
        %v4863 = vld [vmem:[%s3 + $0x30] sm:$0xf]
        %v4864 = vld [vmem:[%s3 + $0x34] sm:$0xf]
        %v4865 = vld [vmem:[%s3 + $0x38] sm:$0xf]
        %v4866 = vld [vmem:[%s3 + $0x3c] sm:$0xf]
        %v4867 = vld [vmem:[%s3 + $0x40] sm:$0xf]
        %v4868 = vld [vmem:[%s3 + $0x44] sm:$0xf]
        %v4869 = vld [vmem:[%s3 + $0x48] sm:$0xf]
        %v4870 = vld [vmem:[%s3 + $0x4c] sm:$0xf]
        %v4871 = vld [vmem:[%s3 + $0x50] sm:$0xf]
        %v4872 = vld [vmem:[%s3 + $0x54] sm:$0xf]
        %v4873 = vld [vmem:[%s3 + $0x58] sm:$0xf]
        %v4874 = vld [vmem:[%s3 + $0x5c] sm:$0xf]
        %v4875 = vld [vmem:[%s3 + $0x60] sm:$0xf]
        %v4876 = vld [vmem:[%s3 + $0x64] sm:$0xf]
        %v4877 = vld [vmem:[%s3 + $0x68] sm:$0xf]
        %v4878 = vld [vmem:[%s3 + $0x6c] sm:$0xf]
        %v4879 = vld [vmem:[%s3 + $0x70] sm:$0xf]
        %v4880 = vld [vmem:[%s3 + $0x74] sm:$0xf]
        %v4881 = vld [vmem:[%s3 + $0x78] sm:$0xf]
        %v4882 = vld [vmem:[%s3 + $0x7c] sm:$0xf]
        %v4883 = vld [vmem:[%s3 + $0x80] sm:$0xf]
        %v4884 = vld [vmem:[%s3 + $0x84] sm:$0xf]
        %v4885 = vld [vmem:[%s3 + $0x88] sm:$0xf]
        %v4886 = vld [vmem:[%s3 + $0x8c] sm:$0xf]
        %v4887 = vld [vmem:[%s3 + $0x90] sm:$0xf]
        %v4888 = vld [vmem:[%s3 + $0x94] sm:$0xf]
        %v4889 = vld [vmem:[%s3 + $0x98] sm:$0xf]
        %v4890 = vld [vmem:[%s3 + $0x9c] sm:$0xf]
        %v4891 = vld [vmem:[%s3 + $0xa0] sm:$0xf]
        %v4892 = vld [vmem:[%s3 + $0xa4] sm:$0xf]
        %v4893 = vld [vmem:[%s3 + $0xa8] sm:$0xf]
        %v4894 = vld [vmem:[%s3 + $0xac] sm:$0xf]
        %v4895 = vld [vmem:[%s3 + $0xb0] sm:$0xf]
        %v4896 = vld [vmem:[%s3 + $0xb4] sm:$0xf]
        %v4897 = vld [vmem:[%s3 + $0xb8] sm:$0xf]
        %v4898 = vld [vmem:[%s3 + $0xbc] sm:$0xf]
        %v4899 = vld [vmem:[%s3 + $0xc0] sm:$0xf]
        %v4900 = vld [vmem:[%s3 + $0xc4] sm:$0xf]
        %v4901 = vld [vmem:[%s3 + $0xc8] sm:$0xf]
        %v4902 = vld [vmem:[%s3 + $0xcc] sm:$0xf]
        %v4903 = vld [vmem:[%s3 + $0xd0] sm:$0xf]
        %v4904 = vld [vmem:[%s3 + $0xd4] sm:$0xf]
        %v4905 = vld [vmem:[%s3 + $0xd8] sm:$0xf]
        %v4906 = vld [vmem:[%s3 + $0xdc] sm:$0xf]
        %v4907 = vld [vmem:[%s3 + $0xe0] sm:$0xf]
        %v4908 = vld [vmem:[%s3 + $0xe4] sm:$0xf]
        %v4909 = vld [vmem:[%s3 + $0xe8] sm:$0xf]
        %v4910 = vld [vmem:[%s3 + $0xec] sm:$0xf]
        %v4911 = vld [vmem:[%s3 + $0xf0] sm:$0xf]
        %v4912 = vld [vmem:[%s3 + $0xf4] sm:$0xf]
        %v4913 = vld [vmem:[%s3 + $0xf8] sm:$0xf]
        %v4914 = vld [vmem:[%s3 + $0xfc] sm:$0xf]
        %v4915 = vld [vmem:[%s3 + $0x100] sm:$0xf]
        %v4916 = vld [vmem:[%s3 + $0x104] sm:$0xf]
        %v4917 = vld [vmem:[%s3 + $0x108] sm:$0xf]
        %v4918 = vld [vmem:[%s3 + $0x10c] sm:$0xf]
        %v4919 = vld [vmem:[%s3 + $0x110] sm:$0xf]
        %v4920 = vld [vmem:[%s3 + $0x114] sm:$0xf]
        %v4921 = vld [vmem:[%s3 + $0x118] sm:$0xf]
        %v4922 = vld [vmem:[%s3 + $0x11c] sm:$0xf]
        %v4923 = vld [vmem:[%s4] sm:$0x1]
        %v4925 = vperm.slane %v4923, 0
        %v4927 = vshrl.u32 %v4666, 16
        %v4929 = vrot.slane %v4927, 3
        %v4930 = vshll.u32 %v4666, 16
        %v4932 = vrot.slane %v4930, 4
        %v4933 = vor.u32 %v4929, %v4932
        %v4934 = vshrl.u32 %v4669, 16
        %v4936 = vrot.slane %v4934, 3
        %v4937 = vshll.u32 %v4669, 16
        %v4939 = vrot.slane %v4937, 4
        %v4940 = vor.u32 %v4936, %v4939
        %v4941 = vsel %vm1499, %v4933, %v4940
        %v4942 = vshrl.u32 %v4717, 16
        %v4944 = vrot.slane %v4942, 3
        %v4945 = vshll.u32 %v4717, 16
        %v4947 = vrot.slane %v4945, 4
        %v4948 = vor.u32 %v4944, %v4947
        %v4949 = vshrl.u32 %v4720, 16
        %v4951 = vrot.slane %v4949, 3
        %v4952 = vshll.u32 %v4720, 16
        %v4954 = vrot.slane %v4952, 4
        %v4955 = vor.u32 %v4951, %v4954
        %v4956 = vsel %vm1499, %v4948, %v4955
        %v4957 = vshrl.u32 %v4768, 16
        %v4959 = vrot.slane %v4957, 3
        %v4960 = vshll.u32 %v4768, 16
        %v4962 = vrot.slane %v4960, 4
        %v4963 = vor.u32 %v4959, %v4962
        %v4964 = vshrl.u32 %v4771, 16
        %v4966 = vrot.slane %v4964, 3
        %v4967 = vshll.u32 %v4771, 16
        %v4969 = vrot.slane %v4967, 4
        %v4970 = vor.u32 %v4966, %v4969
        %v4971 = vsel %vm1499, %v4963, %v4970
        %v4972 = vshrl.u32 %v4818, 16
        %v4974 = vrot.slane %v4972, 3
        %v4975 = vshll.u32 %v4818, 16
        %v4977 = vrot.slane %v4975, 4
        %v4978 = vor.u32 %v4974, %v4977
        %v4979 = vshrl.u32 %v4820, 16
        %v4981 = vrot.slane %v4979, 3
        %v4982 = vshll.u32 %v4820, 16
        %v4984 = vrot.slane %v4982, 4
        %v4985 = vor.u32 %v4981, %v4984
        %v4986 = vsel %vm1499, %v4978, %v4985
        %v4988 = vshrl.u32 %v4635, 16
        %v4990 = vrot.slane %v4988, 3
        %v4991 = vshll.u32 %v4635, 16
        %v4993 = vrot.slane %v4991, 4
        %v4994 = vor.u32 %v4990, %v4993
        %v4996 = vshrl.u32 %v4637, 16
        %v4998 = vrot.slane %v4996, 3
        %v4999 = vshll.u32 %v4637, 16
        %v5001 = vrot.slane %v4999, 4
        %v5002 = vor.u32 %v4998, %v5001
        %v5003 = vsel %vm1499, %v4994, %v5002
        %v5004 = vshrl.u32 %v4672, 16
        %v5006 = vrot.slane %v5004, 3
        %v5007 = vshll.u32 %v4672, 16
        %v5009 = vrot.slane %v5007, 4
        %v5010 = vor.u32 %v5006, %v5009
        %v5011 = vsel %vm1499, %v4940, %v5010
        %v5012 = vshrl.u32 %v4723, 16
        %v5014 = vrot.slane %v5012, 3
        %v5015 = vshll.u32 %v4723, 16
        %v5017 = vrot.slane %v5015, 4
        %v5018 = vor.u32 %v5014, %v5017
        %v5019 = vsel %vm1499, %v4955, %v5018
        %v5020 = vshrl.u32 %v4774, 16
        %v5022 = vrot.slane %v5020, 3
        %v5023 = vshll.u32 %v4774, 16
        %v5025 = vrot.slane %v5023, 4
        %v5026 = vor.u32 %v5022, %v5025
        %v5027 = vsel %vm1499, %v4970, %v5026
        %v5028 = vshrl.u32 %v4822, 16
        %v5030 = vrot.slane %v5028, 3
        %v5031 = vshll.u32 %v4822, 16
        %v5033 = vrot.slane %v5031, 4
        %v5034 = vor.u32 %v5030, %v5033
        %v5035 = vsel %vm1499, %v4985, %v5034
        %v5037 = vshrl.u32 %v4639, 16
        %v5039 = vrot.slane %v5037, 3
        %v5040 = vshll.u32 %v4639, 16
        %v5042 = vrot.slane %v5040, 4
        %v5043 = vor.u32 %v5039, %v5042
        %v5044 = vsel %vm1499, %v5002, %v5043
        %v5045 = vshrl.u32 %v4675, 16
        %v5047 = vrot.slane %v5045, 3
        %v5048 = vshll.u32 %v4675, 16
        %v5050 = vrot.slane %v5048, 4
        %v5051 = vor.u32 %v5047, %v5050
        %v5052 = vsel %vm1499, %v5010, %v5051
        %v5053 = vshrl.u32 %v4726, 16
        %v5055 = vrot.slane %v5053, 3
        %v5056 = vshll.u32 %v4726, 16
        %v5058 = vrot.slane %v5056, 4
        %v5059 = vor.u32 %v5055, %v5058
        %v5060 = vsel %vm1499, %v5018, %v5059
        %v5061 = vshrl.u32 %v4777, 16
        %v5063 = vrot.slane %v5061, 3
        %v5064 = vshll.u32 %v4777, 16
        %v5066 = vrot.slane %v5064, 4
        %v5067 = vor.u32 %v5063, %v5066
        %v5068 = vsel %vm1499, %v5026, %v5067
        %v5069 = vshrl.u32 %v4824, 16
        %v5071 = vrot.slane %v5069, 3
        %v5072 = vshll.u32 %v4824, 16
        %v5074 = vrot.slane %v5072, 4
        %v5075 = vor.u32 %v5071, %v5074
        %v5076 = vsel %vm1499, %v5034, %v5075
        %v5078 = vshrl.u32 %v4641, 16
        %v5080 = vrot.slane %v5078, 3
        %v5081 = vshll.u32 %v4641, 16
        %v5083 = vrot.slane %v5081, 4
        %v5084 = vor.u32 %v5080, %v5083
        %v5085 = vsel %vm1499, %v5043, %v5084
        %v5086 = vshrl.u32 %v4678, 16
        %v5088 = vrot.slane %v5086, 3
        %v5089 = vshll.u32 %v4678, 16
        %v5091 = vrot.slane %v5089, 4
        %v5092 = vor.u32 %v5088, %v5091
        %v5093 = vsel %vm1499, %v5051, %v5092
        %v5094 = vshrl.u32 %v4729, 16
        %v5096 = vrot.slane %v5094, 3
        %v5097 = vshll.u32 %v4729, 16
        %v5099 = vrot.slane %v5097, 4
        %v5100 = vor.u32 %v5096, %v5099
        %v5101 = vsel %vm1499, %v5059, %v5100
        %v5102 = vshrl.u32 %v4780, 16
        %v5104 = vrot.slane %v5102, 3
        %v5105 = vshll.u32 %v4780, 16
        %v5107 = vrot.slane %v5105, 4
        %v5108 = vor.u32 %v5104, %v5107
        %v5109 = vsel %vm1499, %v5067, %v5108
        %v5110 = vshrl.u32 %v4826, 16
        %v5112 = vrot.slane %v5110, 3
        %v5113 = vshll.u32 %v4826, 16
        %v5115 = vrot.slane %v5113, 4
        %v5116 = vor.u32 %v5112, %v5115
        %v5117 = vsel %vm1499, %v5075, %v5116
        %v5119 = vshrl.u32 %v4643, 16
        %v5121 = vrot.slane %v5119, 3
        %v5122 = vshll.u32 %v4643, 16
        %v5124 = vrot.slane %v5122, 4
        %v5125 = vor.u32 %v5121, %v5124
        %v5126 = vsel %vm1499, %v5084, %v5125
        %v5127 = vshrl.u32 %v4681, 16
        %v5129 = vrot.slane %v5127, 3
        %v5130 = vshll.u32 %v4681, 16
        %v5132 = vrot.slane %v5130, 4
        %v5133 = vor.u32 %v5129, %v5132
        %v5134 = vsel %vm1499, %v5092, %v5133
        %v5135 = vshrl.u32 %v4732, 16
        %v5137 = vrot.slane %v5135, 3
        %v5138 = vshll.u32 %v4732, 16
        %v5140 = vrot.slane %v5138, 4
        %v5141 = vor.u32 %v5137, %v5140
        %v5142 = vsel %vm1499, %v5100, %v5141
        %v5143 = vshrl.u32 %v4783, 16
        %v5145 = vrot.slane %v5143, 3
        %v5146 = vshll.u32 %v4783, 16
        %v5148 = vrot.slane %v5146, 4
        %v5149 = vor.u32 %v5145, %v5148
        %v5150 = vsel %vm1499, %v5108, %v5149
        %v5151 = vshrl.u32 %v4828, 16
        %v5153 = vrot.slane %v5151, 3
        %v5154 = vshll.u32 %v4828, 16
        %v5156 = vrot.slane %v5154, 4
        %v5157 = vor.u32 %v5153, %v5156
        %v5158 = vsel %vm1499, %v5116, %v5157
        %v5160 = vshrl.u32 %v4645, 16
        %v5162 = vrot.slane %v5160, 3
        %v5163 = vshll.u32 %v4645, 16
        %v5165 = vrot.slane %v5163, 4
        %v5166 = vor.u32 %v5162, %v5165
        %v5167 = vsel %vm1499, %v5125, %v5166
        %v5168 = vshrl.u32 %v4684, 16
        %v5170 = vrot.slane %v5168, 3
        %v5171 = vshll.u32 %v4684, 16
        %v5173 = vrot.slane %v5171, 4
        %v5174 = vor.u32 %v5170, %v5173
        %v5175 = vsel %vm1499, %v5133, %v5174
        %v5176 = vshrl.u32 %v4735, 16
        %v5178 = vrot.slane %v5176, 3
        %v5179 = vshll.u32 %v4735, 16
        %v5181 = vrot.slane %v5179, 4
        %v5182 = vor.u32 %v5178, %v5181
        %v5183 = vsel %vm1499, %v5141, %v5182
        %v5184 = vshrl.u32 %v4786, 16
        %v5186 = vrot.slane %v5184, 3
        %v5187 = vshll.u32 %v4786, 16
        %v5189 = vrot.slane %v5187, 4
        %v5190 = vor.u32 %v5186, %v5189
        %v5191 = vsel %vm1499, %v5149, %v5190
        %v5192 = vshrl.u32 %v4830, 16
        %v5194 = vrot.slane %v5192, 3
        %v5195 = vshll.u32 %v4830, 16
        %v5197 = vrot.slane %v5195, 4
        %v5198 = vor.u32 %v5194, %v5197
        %v5199 = vsel %vm1499, %v5157, %v5198
        %v5201 = vshrl.u32 %v4647, 16
        %v5203 = vrot.slane %v5201, 3
        %v5204 = vshll.u32 %v4647, 16
        %v5206 = vrot.slane %v5204, 4
        %v5207 = vor.u32 %v5203, %v5206
        %v5208 = vsel %vm1499, %v5166, %v5207
        %v5209 = vshrl.u32 %v4687, 16
        %v5211 = vrot.slane %v5209, 3
        %v5212 = vshll.u32 %v4687, 16
        %v5214 = vrot.slane %v5212, 4
        %v5215 = vor.u32 %v5211, %v5214
        %v5216 = vsel %vm1499, %v5174, %v5215
        %v5217 = vshrl.u32 %v4738, 16
        %v5219 = vrot.slane %v5217, 3
        %v5220 = vshll.u32 %v4738, 16
        %v5222 = vrot.slane %v5220, 4
        %v5223 = vor.u32 %v5219, %v5222
        %v5224 = vsel %vm1499, %v5182, %v5223
        %v5225 = vshrl.u32 %v4789, 16
        %v5227 = vrot.slane %v5225, 3
        %v5228 = vshll.u32 %v4789, 16
        %v5230 = vrot.slane %v5228, 4
        %v5231 = vor.u32 %v5227, %v5230
        %v5232 = vsel %vm1499, %v5190, %v5231
        %v5233 = vshrl.u32 %v4832, 16
        %v5235 = vrot.slane %v5233, 3
        %v5236 = vshll.u32 %v4832, 16
        %v5238 = vrot.slane %v5236, 4
        %v5239 = vor.u32 %v5235, %v5238
        %v5240 = vsel %vm1499, %v5198, %v5239
        %v5242 = vshrl.u32 %v4649, 16
        %v5244 = vrot.slane %v5242, 3
        %v5245 = vshll.u32 %v4649, 16
        %v5247 = vrot.slane %v5245, 4
        %v5248 = vor.u32 %v5244, %v5247
        %v5249 = vsel %vm1499, %v5207, %v5248
        %v5250 = vshrl.u32 %v4690, 16
        %v5252 = vrot.slane %v5250, 3
        %v5253 = vshll.u32 %v4690, 16
        %v5255 = vrot.slane %v5253, 4
        %v5256 = vor.u32 %v5252, %v5255
        %v5257 = vsel %vm1499, %v5215, %v5256
        %v5258 = vshrl.u32 %v4741, 16
        %v5260 = vrot.slane %v5258, 3
        %v5261 = vshll.u32 %v4741, 16
        %v5263 = vrot.slane %v5261, 4
        %v5264 = vor.u32 %v5260, %v5263
        %v5265 = vsel %vm1499, %v5223, %v5264
        %v5266 = vshrl.u32 %v4792, 16
        %v5268 = vrot.slane %v5266, 3
        %v5269 = vshll.u32 %v4792, 16
        %v5271 = vrot.slane %v5269, 4
        %v5272 = vor.u32 %v5268, %v5271
        %v5273 = vsel %vm1499, %v5231, %v5272
        %v5274 = vshrl.u32 %v4834, 16
        %v5276 = vrot.slane %v5274, 3
        %v5277 = vshll.u32 %v4834, 16
        %v5279 = vrot.slane %v5277, 4
        %v5280 = vor.u32 %v5276, %v5279
        %v5281 = vsel %vm1499, %v5239, %v5280
        %v5283 = vshrl.u32 %v4651, 16
        %v5285 = vrot.slane %v5283, 3
        %v5286 = vshll.u32 %v4651, 16
        %v5288 = vrot.slane %v5286, 4
        %v5289 = vor.u32 %v5285, %v5288
        %v5290 = vsel %vm1499, %v5248, %v5289
        %v5291 = vshrl.u32 %v4693, 16
        %v5293 = vrot.slane %v5291, 3
        %v5294 = vshll.u32 %v4693, 16
        %v5296 = vrot.slane %v5294, 4
        %v5297 = vor.u32 %v5293, %v5296
        %v5298 = vsel %vm1499, %v5256, %v5297
        %v5299 = vshrl.u32 %v4744, 16
        %v5301 = vrot.slane %v5299, 3
        %v5302 = vshll.u32 %v4744, 16
        %v5304 = vrot.slane %v5302, 4
        %v5305 = vor.u32 %v5301, %v5304
        %v5306 = vsel %vm1499, %v5264, %v5305
        %v5307 = vshrl.u32 %v4795, 16
        %v5309 = vrot.slane %v5307, 3
        %v5310 = vshll.u32 %v4795, 16
        %v5312 = vrot.slane %v5310, 4
        %v5313 = vor.u32 %v5309, %v5312
        %v5314 = vsel %vm1499, %v5272, %v5313
        %v5315 = vshrl.u32 %v4836, 16
        %v5317 = vrot.slane %v5315, 3
        %v5318 = vshll.u32 %v4836, 16
        %v5320 = vrot.slane %v5318, 4
        %v5321 = vor.u32 %v5317, %v5320
        %v5322 = vsel %vm1499, %v5280, %v5321
        %v5324 = vshrl.u32 %v4653, 16
        %v5326 = vrot.slane %v5324, 3
        %v5327 = vshll.u32 %v4653, 16
        %v5329 = vrot.slane %v5327, 4
        %v5330 = vor.u32 %v5326, %v5329
        %v5331 = vsel %vm1499, %v5289, %v5330
        %v5332 = vshrl.u32 %v4696, 16
        %v5334 = vrot.slane %v5332, 3
        %v5335 = vshll.u32 %v4696, 16
        %v5337 = vrot.slane %v5335, 4
        %v5338 = vor.u32 %v5334, %v5337
        %v5339 = vsel %vm1499, %v5297, %v5338
        %v5340 = vshrl.u32 %v4747, 16
        %v5342 = vrot.slane %v5340, 3
        %v5343 = vshll.u32 %v4747, 16
        %v5345 = vrot.slane %v5343, 4
        %v5346 = vor.u32 %v5342, %v5345
        %v5347 = vsel %vm1499, %v5305, %v5346
        %v5348 = vshrl.u32 %v4798, 16
        %v5350 = vrot.slane %v5348, 3
        %v5351 = vshll.u32 %v4798, 16
        %v5353 = vrot.slane %v5351, 4
        %v5354 = vor.u32 %v5350, %v5353
        %v5355 = vsel %vm1499, %v5313, %v5354
        %v5356 = vshrl.u32 %v4838, 16
        %v5358 = vrot.slane %v5356, 3
        %v5359 = vshll.u32 %v4838, 16
        %v5361 = vrot.slane %v5359, 4
        %v5362 = vor.u32 %v5358, %v5361
        %v5363 = vsel %vm1499, %v5321, %v5362
        %v5365 = vshrl.u32 %v4655, 16
        %v5367 = vrot.slane %v5365, 3
        %v5368 = vshll.u32 %v4655, 16
        %v5370 = vrot.slane %v5368, 4
        %v5371 = vor.u32 %v5367, %v5370
        %v5372 = vsel %vm1499, %v5330, %v5371
        %v5373 = vshrl.u32 %v4699, 16
        %v5375 = vrot.slane %v5373, 3
        %v5376 = vshll.u32 %v4699, 16
        %v5378 = vrot.slane %v5376, 4
        %v5379 = vor.u32 %v5375, %v5378
        %v5380 = vsel %vm1499, %v5338, %v5379
        %v5381 = vshrl.u32 %v4750, 16
        %v5383 = vrot.slane %v5381, 3
        %v5384 = vshll.u32 %v4750, 16
        %v5386 = vrot.slane %v5384, 4
        %v5387 = vor.u32 %v5383, %v5386
        %v5388 = vsel %vm1499, %v5346, %v5387
        %v5389 = vshrl.u32 %v4801, 16
        %v5391 = vrot.slane %v5389, 3
        %v5392 = vshll.u32 %v4801, 16
        %v5394 = vrot.slane %v5392, 4
        %v5395 = vor.u32 %v5391, %v5394
        %v5396 = vsel %vm1499, %v5354, %v5395
        %v5397 = vshrl.u32 %v4840, 16
        %v5399 = vrot.slane %v5397, 3
        %v5400 = vshll.u32 %v4840, 16
        %v5402 = vrot.slane %v5400, 4
        %v5403 = vor.u32 %v5399, %v5402
        %v5404 = vsel %vm1499, %v5362, %v5403
        %v5406 = vshrl.u32 %v4657, 16
        %v5408 = vrot.slane %v5406, 3
        %v5409 = vshll.u32 %v4657, 16
        %v5411 = vrot.slane %v5409, 4
        %v5412 = vor.u32 %v5408, %v5411
        %v5413 = vsel %vm1499, %v5371, %v5412
        %v5414 = vshrl.u32 %v4702, 16
        %v5416 = vrot.slane %v5414, 3
        %v5417 = vshll.u32 %v4702, 16
        %v5419 = vrot.slane %v5417, 4
        %v5420 = vor.u32 %v5416, %v5419
        %v5421 = vsel %vm1499, %v5379, %v5420
        %v5422 = vshrl.u32 %v4753, 16
        %v5424 = vrot.slane %v5422, 3
        %v5425 = vshll.u32 %v4753, 16
        %v5427 = vrot.slane %v5425, 4
        %v5428 = vor.u32 %v5424, %v5427
        %v5429 = vsel %vm1499, %v5387, %v5428
        %v5430 = vshrl.u32 %v4804, 16
        %v5432 = vrot.slane %v5430, 3
        %v5433 = vshll.u32 %v4804, 16
        %v5435 = vrot.slane %v5433, 4
        %v5436 = vor.u32 %v5432, %v5435
        %v5437 = vsel %vm1499, %v5395, %v5436
        %v5438 = vshrl.u32 %v4842, 16
        %v5440 = vrot.slane %v5438, 3
        %v5441 = vshll.u32 %v4842, 16
        %v5443 = vrot.slane %v5441, 4
        %v5444 = vor.u32 %v5440, %v5443
        %v5445 = vsel %vm1499, %v5403, %v5444
        %v5447 = vshrl.u32 %v4659, 16
        %v5449 = vrot.slane %v5447, 3
        %v5450 = vshll.u32 %v4659, 16
        %v5452 = vrot.slane %v5450, 4
        %v5453 = vor.u32 %v5449, %v5452
        %v5454 = vsel %vm1499, %v5412, %v5453
        %v5455 = vshrl.u32 %v4705, 16
        %v5457 = vrot.slane %v5455, 3
        %v5458 = vshll.u32 %v4705, 16
        %v5460 = vrot.slane %v5458, 4
        %v5461 = vor.u32 %v5457, %v5460
        %v5462 = vsel %vm1499, %v5420, %v5461
        %v5463 = vshrl.u32 %v4756, 16
        %v5465 = vrot.slane %v5463, 3
        %v5466 = vshll.u32 %v4756, 16
        %v5468 = vrot.slane %v5466, 4
        %v5469 = vor.u32 %v5465, %v5468
        %v5470 = vsel %vm1499, %v5428, %v5469
        %v5471 = vshrl.u32 %v4807, 16
        %v5473 = vrot.slane %v5471, 3
        %v5474 = vshll.u32 %v4807, 16
        %v5476 = vrot.slane %v5474, 4
        %v5477 = vor.u32 %v5473, %v5476
        %v5478 = vsel %vm1499, %v5436, %v5477
        %v5479 = vshrl.u32 %v4844, 16
        %v5481 = vrot.slane %v5479, 3
        %v5482 = vshll.u32 %v4844, 16
        %v5484 = vrot.slane %v5482, 4
        %v5485 = vor.u32 %v5481, %v5484
        %v5486 = vsel %vm1499, %v5444, %v5485
        %v5488 = vshrl.u32 %v4661, 16
        %v5490 = vrot.slane %v5488, 3
        %v5491 = vshll.u32 %v4661, 16
        %v5493 = vrot.slane %v5491, 4
        %v5494 = vor.u32 %v5490, %v5493
        %v5495 = vsel %vm1499, %v5453, %v5494
        %v5496 = vshrl.u32 %v4708, 16
        %v5498 = vrot.slane %v5496, 3
        %v5499 = vshll.u32 %v4708, 16
        %v5501 = vrot.slane %v5499, 4
        %v5502 = vor.u32 %v5498, %v5501
        %v5503 = vsel %vm1499, %v5461, %v5502
        %v5504 = vshrl.u32 %v4759, 16
        %v5506 = vrot.slane %v5504, 3
        %v5507 = vshll.u32 %v4759, 16
        %v5509 = vrot.slane %v5507, 4
        %v5510 = vor.u32 %v5506, %v5509
        %v5511 = vsel %vm1499, %v5469, %v5510
        %v5512 = vshrl.u32 %v4810, 16
        %v5514 = vrot.slane %v5512, 3
        %v5515 = vshll.u32 %v4810, 16
        %v5517 = vrot.slane %v5515, 4
        %v5518 = vor.u32 %v5514, %v5517
        %v5519 = vsel %vm1499, %v5477, %v5518
        %v5520 = vshrl.u32 %v4847, 16
        %v5522 = vrot.slane %v5520, 3
        %v5523 = vshll.u32 %v4847, 16
        %v5525 = vrot.slane %v5523, 4
        %v5526 = vor.u32 %v5522, %v5525
        %v5527 = vsel %vm1499, %v5485, %v5526
        %v5529 = vshrl.u32 %v4663, 16
        %v5531 = vrot.slane %v5529, 3
        %v5532 = vshll.u32 %v4663, 16
        %v5534 = vrot.slane %v5532, 4
        %v5535 = vor.u32 %v5531, %v5534
        %v5536 = vsel %vm1499, %v5494, %v5535
        %v5537 = vshrl.u32 %v4711, 16
        %v5539 = vrot.slane %v5537, 3
        %v5540 = vshll.u32 %v4711, 16
        %v5542 = vrot.slane %v5540, 4
        %v5543 = vor.u32 %v5539, %v5542
        %v5544 = vsel %vm1499, %v5502, %v5543
        %v5545 = vshrl.u32 %v4762, 16
        %v5547 = vrot.slane %v5545, 3
        %v5548 = vshll.u32 %v4762, 16
        %v5550 = vrot.slane %v5548, 4
        %v5551 = vor.u32 %v5547, %v5550
        %v5552 = vsel %vm1499, %v5510, %v5551
        %v5553 = vshrl.u32 %v4813, 16
        %v5555 = vrot.slane %v5553, 3
        %v5556 = vshll.u32 %v4813, 16
        %v5558 = vrot.slane %v5556, 4
        %v5559 = vor.u32 %v5555, %v5558
        %v5560 = vsel %vm1499, %v5518, %v5559
        %v5561 = vshrl.u32 %v4850, 16
        %v5563 = vrot.slane %v5561, 3
        %v5564 = vshll.u32 %v4850, 16
        %v5566 = vrot.slane %v5564, 4
        %v5567 = vor.u32 %v5563, %v5566
        %v5568 = vsel %vm1499, %v5526, %v5567
        %v5570 = vshrl.u32 %v4664, 16
        %v5572 = vrot.slane %v5570, 3
        %v5573 = vshll.u32 %v4664, 16
        %v5575 = vrot.slane %v5573, 4
        %v5576 = vor.u32 %v5572, %v5575
        %v5577 = vsel %vm1499, %v5535, %v5576
        %v5578 = vshrl.u32 %v4714, 16
        %v5580 = vrot.slane %v5578, 3
        %v5581 = vshll.u32 %v4714, 16
        %v5583 = vrot.slane %v5581, 4
        %v5584 = vor.u32 %v5580, %v5583
        %v5585 = vsel %vm1499, %v5543, %v5584
        %v5586 = vshrl.u32 %v4765, 16
        %v5588 = vrot.slane %v5586, 3
        %v5589 = vshll.u32 %v4765, 16
        %v5591 = vrot.slane %v5589, 4
        %v5592 = vor.u32 %v5588, %v5591
        %v5593 = vsel %vm1499, %v5551, %v5592
        %v5594 = vshrl.u32 %v4816, 16
        %v5596 = vrot.slane %v5594, 3
        %v5597 = vshll.u32 %v4816, 16
        %v5599 = vrot.slane %v5597, 4
        %v5600 = vor.u32 %v5596, %v5599
        %v5601 = vsel %vm1499, %v5559, %v5600
        %v5602 = vsel %vm1499, %v5567, %v3213
        %v5603 = vsel %vm1499, %v5576, %v3222
        %v5740 = vunpack.c.l.b16 %v4851
        %v5741 = vunpack.c.l.b16 %v4852
        %v5742 = vunpack.c.l.b16 %v4853
        %v5743 = vunpack.c.l.b16 %v4854
        %v5744 = vunpack.c.l.b16 %v4855
        %v5745 = vunpack.c.l.b16 %v4856
        %v5746 = vunpack.c.l.b16 %v4857
        %v5747 = vunpack.c.l.b16 %v4858
        %v5748 = vunpack.c.l.b16 %v4859
        %v5749 = vunpack.c.l.b16 %v4860
        %v5750 = vunpack.c.l.b16 %v4861
        %v5751 = vunpack.c.l.b16 %v4862
        %v5752 = vunpack.c.l.b16 %v4863
        %v5753 = vunpack.c.l.b16 %v4864
        %v5754 = vunpack.c.l.b16 %v4865
        %v5755 = vunpack.c.l.b16 %v4866
        %v5756 = vunpack.c.l.b16 %v4867
        %v5757 = vunpack.c.l.b16 %v4868
        %v5758 = vunpack.c.l.b16 %v4869
        %v5759 = vunpack.c.l.b16 %v4870
        %v5760 = vunpack.c.l.b16 %v4871
        %v5761 = vunpack.c.l.b16 %v4872
        %v5762 = vunpack.c.l.b16 %v4873
        %v5763 = vunpack.c.l.b16 %v4874
        %v5764 = vunpack.c.l.b16 %v4875
        %v5765 = vunpack.c.l.b16 %v4876
        %v5766 = vunpack.c.l.b16 %v4877
        %v5767 = vunpack.c.l.b16 %v4878
        %v5768 = vunpack.c.l.b16 %v4879
        %v5769 = vunpack.c.l.b16 %v4880
        %v5770 = vunpack.c.l.b16 %v4881
        %v5771 = vunpack.c.l.b16 %v4882
        %v5772 = vunpack.c.l.b16 %v4883
        %v5773 = vunpack.c.l.b16 %v4884
        %v5774 = vunpack.c.l.b16 %v4885
        %v5775 = vunpack.c.l.b16 %v4886
        %v5776 = vunpack.c.l.b16 %v4887
        %v5777 = vunpack.c.l.b16 %v4888
        %v5778 = vunpack.c.l.b16 %v4889
        %v5779 = vunpack.c.l.b16 %v4890
        %v5780 = vunpack.c.l.b16 %v4891
        %v5781 = vunpack.c.l.b16 %v4892
        %v5782 = vunpack.c.l.b16 %v4893
        %v5783 = vunpack.c.l.b16 %v4894
        %v5784 = vunpack.c.l.b16 %v4895
        %v5785 = vunpack.c.l.b16 %v4896
        %v5786 = vunpack.c.l.b16 %v4897
        %v5787 = vunpack.c.l.b16 %v4898
        %v5788 = vunpack.c.l.b16 %v4899
        %v5789 = vunpack.c.l.b16 %v4900
        %v5790 = vunpack.c.l.b16 %v4901
        %v5791 = vunpack.c.l.b16 %v4902
        %v5792 = vunpack.c.l.b16 %v4903
        %v5793 = vunpack.c.l.b16 %v4904
        %v5794 = vunpack.c.l.b16 %v4905
        %v5795 = vunpack.c.l.b16 %v4906
        %v5796 = vunpack.c.l.b16 %v4907
        %v5797 = vunpack.c.l.b16 %v4908
        %v5798 = vunpack.c.l.b16 %v4909
        %v5799 = vunpack.c.l.b16 %v4910
        %v5800 = vunpack.c.l.b16 %v4911
        %v5801 = vunpack.c.l.b16 %v4912
        %v5802 = vunpack.c.l.b16 %v4913
        %v5803 = vunpack.c.l.b16 %v4914
        %v5804 = vunpack.c.l.b16 %v4915
        %v5805 = vunpack.c.l.b16 %v4916
        %v5806 = vunpack.c.l.b16 %v4917
        %v5807 = vunpack.c.l.b16 %v4918
        %v5808 = vunpack.c.l.b16 %v4919
        %v5809 = vunpack.c.l.b16 %v4920
        %v5810 = vunpack.c.l.b16 %v4921
        %v5811 = vunpack.c.l.b16 %v4922
        %v5812 = vpack.c.b16 %v5741, %v5740
        %v5813 = vpack.c.b16 %v5743, %v5742
        %v5814 = vpack.c.b16 %v5745, %v5744
        %v5815 = vpack.c.b16 %v5747, %v5746
        %v5816 = vpack.c.b16 %v5749, %v5748
        %v5817 = vpack.c.b16 %v5751, %v5750
        %v5818 = vpack.c.b16 %v5753, %v5752
        %v5819 = vpack.c.b16 %v5755, %v5754
        %v5820 = vpack.c.b16 %v5757, %v5756
        %v5821 = vpack.c.b16 %v5759, %v5758
        %v5822 = vpack.c.b16 %v5761, %v5760
        %v5823 = vpack.c.b16 %v5763, %v5762
        %v5824 = vpack.c.b16 %v5765, %v5764
        %v5825 = vpack.c.b16 %v5767, %v5766
        %v5826 = vpack.c.b16 %v5769, %v5768
        %v5827 = vpack.c.b16 %v5771, %v5770
        %v5828 = vpack.c.b16 %v5773, %v5772
        %v5829 = vpack.c.b16 %v5775, %v5774
        %v5830 = vpack.c.b16 %v5777, %v5776
        %v5831 = vpack.c.b16 %v5779, %v5778
        %v5832 = vpack.c.b16 %v5781, %v5780
        %v5833 = vpack.c.b16 %v5783, %v5782
        %v5834 = vpack.c.b16 %v5785, %v5784
        %v5835 = vpack.c.b16 %v5787, %v5786
        %v5836 = vpack.c.b16 %v5789, %v5788
        %v5837 = vpack.c.b16 %v5791, %v5790
        %v5838 = vpack.c.b16 %v5793, %v5792
        %v5839 = vpack.c.b16 %v5795, %v5794
        %v5840 = vpack.c.b16 %v5797, %v5796
        %v5841 = vpack.c.b16 %v5799, %v5798
        %v5842 = vpack.c.b16 %v5801, %v5800
        %v5843 = vpack.c.b16 %v5803, %v5802
        %v5844 = vpack.c.b16 %v5805, %v5804
        %v5845 = vpack.c.b16 %v5807, %v5806
        %v5846 = vpack.c.b16 %v5809, %v5808
        %v5847 = vpack.c.b16 %v5811, %v5810
        %v5885 = vsel %vm2267, %v5003, 0
        %v5888 = vsel %vm2267, %v5044, 0
        %v5891 = vsel %vm2267, %v5085, 0
        %v5894 = vsel %vm2267, %v5126, 0
        %v5897 = vsel %vm2267, %v5167, 0
        %v5900 = vsel %vm2267, %v5208, 0
        %v5903 = vsel %vm2267, %v5249, 0
        %v5906 = vsel %vm2267, %v5290, 0
        %v5909 = vsel %vm2267, %v5331, 0
        %v5912 = vsel %vm2267, %v5372, 0
        %v5915 = vsel %vm2267, %v5413, 0
        %v5918 = vsel %vm2267, %v5454, 0
        %v5921 = vsel %vm2267, %v5495, 0
        %v5924 = vsel %vm2267, %v5536, 0
        %v5927 = vsel %vm2267, %v5577, 0
        %v5930 = vsel %vm2267, %v5603, 0
        %5932 = vmatpush.bf16.msra.mxu0 %v5819
        %5933 = vmatpush.bf16.msra.mxu0 %v5818
        %5934 = vmatpush.bf16.msra.mxu0 %v5817
        %5935 = vmatpush.bf16.msra.mxu0 %v5816
        %5936 = vmatpush.bf16.msra.mxu0 %v5815
        %5937 = vmatpush.bf16.msra.mxu0 %v5814
        %5938 = vmatpush.bf16.msra.mxu0 %v5813
        %5939 = vmatpush.bf16.msra.mxu0 %v5812
        %5940 = vmatmul.bf16.gmra.mxu0 %v4941
        %v5941 = vpop.f32.mrf.mxu0
        %v5942 = vadd.f32 %v4925, %v5941
        %v5943 = vpop.f32.mrf.mxu0
        %v5944 = vadd.f32 %v4925, %v5943
        %5945 = vmatmul.bf16.gmra.mxu0 %v5011
        %v5946 = vpop.f32.mrf.mxu0
        %v5947 = vadd.f32 %v4925, %v5946
        %v5948 = vpop.f32.mrf.mxu0
        %v5949 = vadd.f32 %v4925, %v5948
        %5950 = vmatmul.bf16.gmra.mxu0 %v5052
        %v5951 = vpop.f32.mrf.mxu0
        %v5952 = vadd.f32 %v4925, %v5951
        %v5953 = vpop.f32.mrf.mxu0
        %v5954 = vadd.f32 %v4925, %v5953
        %5955 = vmatmul.bf16.gmra.mxu0 %v5093
        %v5956 = vpop.f32.mrf.mxu0
        %v5957 = vadd.f32 %v4925, %v5956
        %v5958 = vpop.f32.mrf.mxu0
        %v5959 = vadd.f32 %v4925, %v5958
        %5960 = vmatmul.bf16.gmra.mxu0 %v5134
        %v5961 = vpop.f32.mrf.mxu0
        %v5962 = vadd.f32 %v4925, %v5961
        %v5963 = vpop.f32.mrf.mxu0
        %v5964 = vadd.f32 %v4925, %v5963
        %5965 = vmatmul.bf16.gmra.mxu0 %v5175
        %v5966 = vpop.f32.mrf.mxu0
        %v5967 = vadd.f32 %v4925, %v5966
        %v5968 = vpop.f32.mrf.mxu0
        %v5969 = vadd.f32 %v4925, %v5968
        %5970 = vmatmul.bf16.gmra.mxu0 %v5216
        %v5971 = vpop.f32.mrf.mxu0
        %v5972 = vadd.f32 %v4925, %v5971
        %v5973 = vpop.f32.mrf.mxu0
        %v5974 = vadd.f32 %v4925, %v5973
        %5975 = vmatmul.bf16.gmra.mxu0 %v5257
        %v5976 = vpop.f32.mrf.mxu0
        %v5977 = vadd.f32 %v4925, %v5976
        %v5978 = vpop.f32.mrf.mxu0
        %v5979 = vadd.f32 %v4925, %v5978
        %5980 = vmatmul.bf16.gmra.mxu0 %v5298
        %v5981 = vpop.f32.mrf.mxu0
        %v5982 = vadd.f32 %v4925, %v5981
        %v5983 = vpop.f32.mrf.mxu0
        %v5984 = vadd.f32 %v4925, %v5983
        %5985 = vmatmul.bf16.gmra.mxu0 %v5339
        %v5986 = vpop.f32.mrf.mxu0
        %v5987 = vadd.f32 %v4925, %v5986
        %v5988 = vpop.f32.mrf.mxu0
        %v5989 = vadd.f32 %v4925, %v5988
        %5990 = vmatmul.bf16.gmra.mxu0 %v5380
        %v5991 = vpop.f32.mrf.mxu0
        %v5992 = vadd.f32 %v4925, %v5991
        %v5993 = vpop.f32.mrf.mxu0
        %v5994 = vadd.f32 %v4925, %v5993
        %5995 = vmatmul.bf16.gmra.mxu0 %v5421
        %v5996 = vpop.f32.mrf.mxu0
        %v5997 = vadd.f32 %v4925, %v5996
        %v5998 = vpop.f32.mrf.mxu0
        %v5999 = vadd.f32 %v4925, %v5998
        %6000 = vmatmul.bf16.gmra.mxu0 %v5462
        %v6001 = vpop.f32.mrf.mxu0
        %v6002 = vadd.f32 %v4925, %v6001
        %v6003 = vpop.f32.mrf.mxu0
        %v6004 = vadd.f32 %v4925, %v6003
        %6005 = vmatmul.bf16.gmra.mxu0 %v5503
        %v6006 = vpop.f32.mrf.mxu0
        %v6007 = vadd.f32 %v4925, %v6006
        %v6008 = vpop.f32.mrf.mxu0
        %v6009 = vadd.f32 %v4925, %v6008
        %6010 = vmatmul.bf16.gmra.mxu0 %v5544
        %v6011 = vpop.f32.mrf.mxu0
        %v6012 = vadd.f32 %v4925, %v6011
        %v6013 = vpop.f32.mrf.mxu0
        %v6014 = vadd.f32 %v4925, %v6013
        %6015 = vmatmul.bf16.gmra.mxu0 %v5585
        %v6016 = vpop.f32.mrf.mxu0
        %v6017 = vadd.f32 %v4925, %v6016
        %v6018 = vpop.f32.mrf.mxu0
        %v6019 = vadd.f32 %v4925, %v6018
        %6020 = vdwg.mxu0
        %6021 = vmatpush.bf16.msra.mxu0 %v5827
        %6022 = vmatpush.bf16.msra.mxu0 %v5826
        %6023 = vmatpush.bf16.msra.mxu0 %v5825
        %6024 = vmatpush.bf16.msra.mxu0 %v5824
        %6025 = vmatpush.bf16.msra.mxu0 %v5823
        %6026 = vmatpush.bf16.msra.mxu0 %v5822
        %6027 = vmatpush.bf16.msra.mxu0 %v5821
        %6028 = vmatpush.bf16.msra.mxu0 %v5820
        %6029 = vmatmul.bf16.gmra.mxu0 %v4956
        %v6030 = vpop.f32.mrf.mxu0
        %v6031 = vadd.f32 %v5942, %v6030
        %v6032 = vpop.f32.mrf.mxu0
        %v6033 = vadd.f32 %v5944, %v6032
        %6034 = vmatmul.bf16.gmra.mxu0 %v5019
        %v6035 = vpop.f32.mrf.mxu0
        %v6036 = vadd.f32 %v5947, %v6035
        %v6037 = vpop.f32.mrf.mxu0
        %v6038 = vadd.f32 %v5949, %v6037
        %6039 = vmatmul.bf16.gmra.mxu0 %v5060
        %v6040 = vpop.f32.mrf.mxu0
        %v6041 = vadd.f32 %v5952, %v6040
        %v6042 = vpop.f32.mrf.mxu0
        %v6043 = vadd.f32 %v5954, %v6042
        %6044 = vmatmul.bf16.gmra.mxu0 %v5101
        %v6045 = vpop.f32.mrf.mxu0
        %v6046 = vadd.f32 %v5957, %v6045
        %v6047 = vpop.f32.mrf.mxu0
        %v6048 = vadd.f32 %v5959, %v6047
        %6049 = vmatmul.bf16.gmra.mxu0 %v5142
        %v6050 = vpop.f32.mrf.mxu0
        %v6051 = vadd.f32 %v5962, %v6050
        %v6052 = vpop.f32.mrf.mxu0
        %v6053 = vadd.f32 %v5964, %v6052
        %6054 = vmatmul.bf16.gmra.mxu0 %v5183
        %v6055 = vpop.f32.mrf.mxu0
        %v6056 = vadd.f32 %v5967, %v6055
        %v6057 = vpop.f32.mrf.mxu0
        %v6058 = vadd.f32 %v5969, %v6057
        %6059 = vmatmul.bf16.gmra.mxu0 %v5224
        %v6060 = vpop.f32.mrf.mxu0
        %v6061 = vadd.f32 %v5972, %v6060
        %v6062 = vpop.f32.mrf.mxu0
        %v6063 = vadd.f32 %v5974, %v6062
        %6064 = vmatmul.bf16.gmra.mxu0 %v5265
        %v6065 = vpop.f32.mrf.mxu0
        %v6066 = vadd.f32 %v5977, %v6065
        %v6067 = vpop.f32.mrf.mxu0
        %v6068 = vadd.f32 %v5979, %v6067
        %6069 = vmatmul.bf16.gmra.mxu0 %v5306
        %v6070 = vpop.f32.mrf.mxu0
        %v6071 = vadd.f32 %v5982, %v6070
        %v6072 = vpop.f32.mrf.mxu0
        %v6073 = vadd.f32 %v5984, %v6072
        %6074 = vmatmul.bf16.gmra.mxu0 %v5347
        %v6075 = vpop.f32.mrf.mxu0
        %v6076 = vadd.f32 %v5987, %v6075
        %v6077 = vpop.f32.mrf.mxu0
        %v6078 = vadd.f32 %v5989, %v6077
        %6079 = vmatmul.bf16.gmra.mxu0 %v5388
        %v6080 = vpop.f32.mrf.mxu0
        %v6081 = vadd.f32 %v5992, %v6080
        %v6082 = vpop.f32.mrf.mxu0
        %v6083 = vadd.f32 %v5994, %v6082
        %6084 = vmatmul.bf16.gmra.mxu0 %v5429
        %v6085 = vpop.f32.mrf.mxu0
        %v6086 = vadd.f32 %v5997, %v6085
        %v6087 = vpop.f32.mrf.mxu0
        %v6088 = vadd.f32 %v5999, %v6087
        %6089 = vmatmul.bf16.gmra.mxu0 %v5470
        %v6090 = vpop.f32.mrf.mxu0
        %v6091 = vadd.f32 %v6002, %v6090
        %v6092 = vpop.f32.mrf.mxu0
        %v6093 = vadd.f32 %v6004, %v6092
        %6094 = vmatmul.bf16.gmra.mxu0 %v5511
        %v6095 = vpop.f32.mrf.mxu0
        %v6096 = vadd.f32 %v6007, %v6095
        %v6097 = vpop.f32.mrf.mxu0
        %v6098 = vadd.f32 %v6009, %v6097
        %6099 = vmatmul.bf16.gmra.mxu0 %v5552
        %v6100 = vpop.f32.mrf.mxu0
        %v6101 = vadd.f32 %v6012, %v6100
        %v6102 = vpop.f32.mrf.mxu0
        %v6103 = vadd.f32 %v6014, %v6102
        %6104 = vmatmul.bf16.gmra.mxu0 %v5593
        %v6105 = vpop.f32.mrf.mxu0
        %v6106 = vadd.f32 %v6017, %v6105
        %v6107 = vpop.f32.mrf.mxu0
        %v6108 = vadd.f32 %v6019, %v6107
        %6109 = vdwg.mxu0
        %6110 = vmatpush.bf16.msra.mxu0 %v5835
        %6111 = vmatpush.bf16.msra.mxu0 %v5834
        %6112 = vmatpush.bf16.msra.mxu0 %v5833
        %6113 = vmatpush.bf16.msra.mxu0 %v5832
        %6114 = vmatpush.bf16.msra.mxu0 %v5831
        %6115 = vmatpush.bf16.msra.mxu0 %v5830
        %6116 = vmatpush.bf16.msra.mxu0 %v5829
        %6117 = vmatpush.bf16.msra.mxu0 %v5828
        %6118 = vmatmul.bf16.gmra.mxu0 %v4971
        %v6119 = vpop.f32.mrf.mxu0
        %v6120 = vadd.f32 %v6031, %v6119
        %v6121 = vpop.f32.mrf.mxu0
        %v6122 = vadd.f32 %v6033, %v6121
        %6123 = vmatmul.bf16.gmra.mxu0 %v5027
        %v6124 = vpop.f32.mrf.mxu0
        %v6125 = vadd.f32 %v6036, %v6124
        %v6126 = vpop.f32.mrf.mxu0
        %v6127 = vadd.f32 %v6038, %v6126
        %6128 = vmatmul.bf16.gmra.mxu0 %v5068
        %v6129 = vpop.f32.mrf.mxu0
        %v6130 = vadd.f32 %v6041, %v6129
        %v6131 = vpop.f32.mrf.mxu0
        %v6132 = vadd.f32 %v6043, %v6131
        %6133 = vmatmul.bf16.gmra.mxu0 %v5109
        %v6134 = vpop.f32.mrf.mxu0
        %v6135 = vadd.f32 %v6046, %v6134
        %v6136 = vpop.f32.mrf.mxu0
        %v6137 = vadd.f32 %v6048, %v6136
        %6138 = vmatmul.bf16.gmra.mxu0 %v5150
        %v6139 = vpop.f32.mrf.mxu0
        %v6140 = vadd.f32 %v6051, %v6139
        %v6141 = vpop.f32.mrf.mxu0
        %v6142 = vadd.f32 %v6053, %v6141
        %6143 = vmatmul.bf16.gmra.mxu0 %v5191
        %v6144 = vpop.f32.mrf.mxu0
        %v6145 = vadd.f32 %v6056, %v6144
        %v6146 = vpop.f32.mrf.mxu0
        %v6147 = vadd.f32 %v6058, %v6146
        %6148 = vmatmul.bf16.gmra.mxu0 %v5232
        %v6149 = vpop.f32.mrf.mxu0
        %v6150 = vadd.f32 %v6061, %v6149
        %v6151 = vpop.f32.mrf.mxu0
        %v6152 = vadd.f32 %v6063, %v6151
        %6153 = vmatmul.bf16.gmra.mxu0 %v5273
        %v6154 = vpop.f32.mrf.mxu0
        %v6155 = vadd.f32 %v6066, %v6154
        %v6156 = vpop.f32.mrf.mxu0
        %v6157 = vadd.f32 %v6068, %v6156
        %6158 = vmatmul.bf16.gmra.mxu0 %v5314
        %v6159 = vpop.f32.mrf.mxu0
        %v6160 = vadd.f32 %v6071, %v6159
        %v6161 = vpop.f32.mrf.mxu0
        %v6162 = vadd.f32 %v6073, %v6161
        %6163 = vmatmul.bf16.gmra.mxu0 %v5355
        %v6164 = vpop.f32.mrf.mxu0
        %v6165 = vadd.f32 %v6076, %v6164
        %v6166 = vpop.f32.mrf.mxu0
        %v6167 = vadd.f32 %v6078, %v6166
        %6168 = vmatmul.bf16.gmra.mxu0 %v5396
        %v6169 = vpop.f32.mrf.mxu0
        %v6170 = vadd.f32 %v6081, %v6169
        %v6171 = vpop.f32.mrf.mxu0
        %v6172 = vadd.f32 %v6083, %v6171
        %6173 = vmatmul.bf16.gmra.mxu0 %v5437
        %v6174 = vpop.f32.mrf.mxu0
        %v6175 = vadd.f32 %v6086, %v6174
        %v6176 = vpop.f32.mrf.mxu0
        %v6177 = vadd.f32 %v6088, %v6176
        %6178 = vmatmul.bf16.gmra.mxu0 %v5478
        %v6179 = vpop.f32.mrf.mxu0
        %v6180 = vadd.f32 %v6091, %v6179
        %v6181 = vpop.f32.mrf.mxu0
        %v6182 = vadd.f32 %v6093, %v6181
        %6183 = vmatmul.bf16.gmra.mxu0 %v5519
        %v6184 = vpop.f32.mrf.mxu0
        %v6185 = vadd.f32 %v6096, %v6184
        %v6186 = vpop.f32.mrf.mxu0
        %v6187 = vadd.f32 %v6098, %v6186
        %6188 = vmatmul.bf16.gmra.mxu0 %v5560
        %v6189 = vpop.f32.mrf.mxu0
        %v6190 = vadd.f32 %v6101, %v6189
        %v6191 = vpop.f32.mrf.mxu0
        %v6192 = vadd.f32 %v6103, %v6191
        %6193 = vmatmul.bf16.gmra.mxu0 %v5601
        %v6194 = vpop.f32.mrf.mxu0
        %v6195 = vadd.f32 %v6106, %v6194
        %v6196 = vpop.f32.mrf.mxu0
        %v6197 = vadd.f32 %v6108, %v6196
        %6198 = vdwg.mxu0
        %6199 = vmatpush.bf16.msra.mxu0 %v5843
        %6200 = vmatpush.bf16.msra.mxu0 %v5842
        %6201 = vmatpush.bf16.msra.mxu0 %v5841
        %6202 = vmatpush.bf16.msra.mxu0 %v5840
        %6203 = vmatpush.bf16.msra.mxu0 %v5839
        %6204 = vmatpush.bf16.msra.mxu0 %v5838
        %6205 = vmatpush.bf16.msra.mxu0 %v5837
        %6206 = vmatpush.bf16.msra.mxu0 %v5836
        %6207 = vmatmul.bf16.gmra.mxu0 %v4986
        %v6208 = vpop.f32.mrf.mxu0
        %v6209 = vadd.f32 %v6120, %v6208
        %v6210 = vpop.f32.mrf.mxu0
        %v6211 = vadd.f32 %v6122, %v6210
        %6212 = vmatmul.bf16.gmra.mxu0 %v5035
        %v6213 = vpop.f32.mrf.mxu0
        %v6214 = vadd.f32 %v6125, %v6213
        %v6215 = vpop.f32.mrf.mxu0
        %v6216 = vadd.f32 %v6127, %v6215
        %6217 = vmatmul.bf16.gmra.mxu0 %v5076
        %v6218 = vpop.f32.mrf.mxu0
        %v6219 = vadd.f32 %v6130, %v6218
        %v6220 = vpop.f32.mrf.mxu0
        %v6221 = vadd.f32 %v6132, %v6220
        %6222 = vmatmul.bf16.gmra.mxu0 %v5117
        %v6223 = vpop.f32.mrf.mxu0
        %v6224 = vadd.f32 %v6135, %v6223
        %v6225 = vpop.f32.mrf.mxu0
        %v6226 = vadd.f32 %v6137, %v6225
        %6227 = vmatmul.bf16.gmra.mxu0 %v5158
        %v6228 = vpop.f32.mrf.mxu0
        %v6229 = vadd.f32 %v6140, %v6228
        %v6230 = vpop.f32.mrf.mxu0
        %v6231 = vadd.f32 %v6142, %v6230
        %6232 = vmatmul.bf16.gmra.mxu0 %v5199
        %v6233 = vpop.f32.mrf.mxu0
        %v6234 = vadd.f32 %v6145, %v6233
        %v6235 = vpop.f32.mrf.mxu0
        %v6236 = vadd.f32 %v6147, %v6235
        %6237 = vmatmul.bf16.gmra.mxu0 %v5240
        %v6238 = vpop.f32.mrf.mxu0
        %v6239 = vadd.f32 %v6150, %v6238
        %v6240 = vpop.f32.mrf.mxu0
        %v6241 = vadd.f32 %v6152, %v6240
        %6242 = vmatmul.bf16.gmra.mxu0 %v5281
        %v6243 = vpop.f32.mrf.mxu0
        %v6244 = vadd.f32 %v6155, %v6243
        %v6245 = vpop.f32.mrf.mxu0
        %v6246 = vadd.f32 %v6157, %v6245
        %6247 = vmatmul.bf16.gmra.mxu0 %v5322
        %v6248 = vpop.f32.mrf.mxu0
        %v6249 = vadd.f32 %v6160, %v6248
        %v6250 = vpop.f32.mrf.mxu0
        %v6251 = vadd.f32 %v6162, %v6250
        %6252 = vmatmul.bf16.gmra.mxu0 %v5363
        %v6253 = vpop.f32.mrf.mxu0
        %v6254 = vadd.f32 %v6165, %v6253
        %v6255 = vpop.f32.mrf.mxu0
        %v6256 = vadd.f32 %v6167, %v6255
        %6257 = vmatmul.bf16.gmra.mxu0 %v5404
        %v6258 = vpop.f32.mrf.mxu0
        %v6259 = vadd.f32 %v6170, %v6258
        %v6260 = vpop.f32.mrf.mxu0
        %v6261 = vadd.f32 %v6172, %v6260
        %6262 = vmatmul.bf16.gmra.mxu0 %v5445
        %v6263 = vpop.f32.mrf.mxu0
        %v6264 = vadd.f32 %v6175, %v6263
        %v6265 = vpop.f32.mrf.mxu0
        %v6266 = vadd.f32 %v6177, %v6265
        %6267 = vmatmul.bf16.gmra.mxu0 %v5486
        %v6268 = vpop.f32.mrf.mxu0
        %v6269 = vadd.f32 %v6180, %v6268
        %v6270 = vpop.f32.mrf.mxu0
        %v6271 = vadd.f32 %v6182, %v6270
        %6272 = vmatmul.bf16.gmra.mxu0 %v5527
        %v6273 = vpop.f32.mrf.mxu0
        %v6274 = vadd.f32 %v6185, %v6273
        %v6275 = vpop.f32.mrf.mxu0
        %v6276 = vadd.f32 %v6187, %v6275
        %6277 = vmatmul.bf16.gmra.mxu0 %v5568
        %v6278 = vpop.f32.mrf.mxu0
        %v6279 = vadd.f32 %v6190, %v6278
        %v6280 = vpop.f32.mrf.mxu0
        %v6281 = vadd.f32 %v6192, %v6280
        %6282 = vmatmul.bf16.gmra.mxu0 %v5602
        %v6283 = vpop.f32.mrf.mxu0
        %v6284 = vadd.f32 %v6195, %v6283
        %v6285 = vpop.f32.mrf.mxu0
        %v6286 = vadd.f32 %v6197, %v6285
        %6287 = vdwg.mxu0
        %6288 = vmatpush.bf16.msra.mxu0 0
        %6289 = vmatpush.bf16.msra.mxu0 0
        %6290 = vmatpush.bf16.msra.mxu0 0
        %6291 = vmatpush.bf16.msra.mxu0 0
        %6292 = vmatpush.bf16.msra.mxu0 %v5847
        %6293 = vmatpush.bf16.msra.mxu0 %v5846
        %6294 = vmatpush.bf16.msra.mxu0 %v5845
        %6295 = vmatpush.bf16.msra.mxu0 %v5844
        %6296 = vmatmul.bf16.gmra.mxu0 %v5885
        %v6297 = vpop.f32.mrf.mxu0
        %v6298 = vadd.f32 %v6209, %v6297
        %v6299 = vpop.f32.mrf.mxu0
        %v6300 = vadd.f32 %v6211, %v6299
        %6301 = vmatmul.bf16.gmra.mxu0 %v5888
        %v6302 = vpop.f32.mrf.mxu0
        %v6303 = vadd.f32 %v6214, %v6302
        %v6304 = vpop.f32.mrf.mxu0
        %v6305 = vadd.f32 %v6216, %v6304
        %6306 = vmatmul.bf16.gmra.mxu0 %v5891
        %v6307 = vpop.f32.mrf.mxu0
        %v6308 = vadd.f32 %v6219, %v6307
        %v6309 = vpop.f32.mrf.mxu0
        %v6310 = vadd.f32 %v6221, %v6309
        %6311 = vmatmul.bf16.gmra.mxu0 %v5894
        %v6312 = vpop.f32.mrf.mxu0
        %v6313 = vadd.f32 %v6224, %v6312
        %v6314 = vpop.f32.mrf.mxu0
        %v6315 = vadd.f32 %v6226, %v6314
        %6316 = vmatmul.bf16.gmra.mxu0 %v5897
        %v6317 = vpop.f32.mrf.mxu0
        %v6318 = vadd.f32 %v6229, %v6317
        %v6319 = vpop.f32.mrf.mxu0
        %v6320 = vadd.f32 %v6231, %v6319
        %6321 = vmatmul.bf16.gmra.mxu0 %v5900
        %v6322 = vpop.f32.mrf.mxu0
        %v6323 = vadd.f32 %v6234, %v6322
        %v6324 = vpop.f32.mrf.mxu0
        %v6325 = vadd.f32 %v6236, %v6324
        %6326 = vmatmul.bf16.gmra.mxu0 %v5903
        %v6327 = vpop.f32.mrf.mxu0
        %v6328 = vadd.f32 %v6239, %v6327
        %v6329 = vpop.f32.mrf.mxu0
        %v6330 = vadd.f32 %v6241, %v6329
        %6331 = vmatmul.bf16.gmra.mxu0 %v5906
        %v6332 = vpop.f32.mrf.mxu0
        %v6333 = vadd.f32 %v6244, %v6332
        %v6334 = vpop.f32.mrf.mxu0
        %v6335 = vadd.f32 %v6246, %v6334
        %6336 = vmatmul.bf16.gmra.mxu0 %v5909
        %v6337 = vpop.f32.mrf.mxu0
        %v6338 = vadd.f32 %v6249, %v6337
        %v6339 = vpop.f32.mrf.mxu0
        %v6340 = vadd.f32 %v6251, %v6339
        %6341 = vmatmul.bf16.gmra.mxu0 %v5912
        %v6342 = vpop.f32.mrf.mxu0
        %v6343 = vadd.f32 %v6254, %v6342
        %v6344 = vpop.f32.mrf.mxu0
        %v6345 = vadd.f32 %v6256, %v6344
        %6346 = vmatmul.bf16.gmra.mxu0 %v5915
        %v6347 = vpop.f32.mrf.mxu0
        %v6348 = vadd.f32 %v6259, %v6347
        %v6349 = vpop.f32.mrf.mxu0
        %v6350 = vadd.f32 %v6261, %v6349
        %6351 = vmatmul.bf16.gmra.mxu0 %v5918
        %v6352 = vpop.f32.mrf.mxu0
        %v6353 = vadd.f32 %v6264, %v6352
        %v6354 = vpop.f32.mrf.mxu0
        %v6355 = vadd.f32 %v6266, %v6354
        %6356 = vmatmul.bf16.gmra.mxu0 %v5921
        %v6357 = vpop.f32.mrf.mxu0
        %v6358 = vadd.f32 %v6269, %v6357
        %v6359 = vpop.f32.mrf.mxu0
        %v6360 = vadd.f32 %v6271, %v6359
        %6361 = vmatmul.bf16.gmra.mxu0 %v5924
        %v6362 = vpop.f32.mrf.mxu0
        %v6363 = vadd.f32 %v6274, %v6362
        %v6364 = vpop.f32.mrf.mxu0
        %v6365 = vadd.f32 %v6276, %v6364
        %6366 = vmatmul.bf16.gmra.mxu0 %v5927
        %v6367 = vpop.f32.mrf.mxu0
        %v6368 = vadd.f32 %v6279, %v6367
        %v6369 = vpop.f32.mrf.mxu0
        %v6370 = vadd.f32 %v6281, %v6369
        %6371 = vmatmul.bf16.gmra.mxu0 %v5930
        %v6372 = vpop.f32.mrf.mxu0
        %v6373 = vadd.f32 %v6284, %v6372
        %v6374 = vpop.f32.mrf.mxu0
        %v6375 = vadd.f32 %v6286, %v6374
        %6376 = vdwg.mxu0
        %v6377 = vadd.f32 %v226, %v6298
        %v6378 = vadd.f32 %v227, %v6300
        %v6379 = vadd.f32 %v228, %v6303
        %v6380 = vadd.f32 %v229, %v6305
        %v6381 = vadd.f32 %v230, %v6308
        %v6382 = vadd.f32 %v231, %v6310
        %v6383 = vadd.f32 %v232, %v6313
        %v6384 = vadd.f32 %v233, %v6315
        %v6385 = vadd.f32 %v234, %v6318
        %v6386 = vadd.f32 %v235, %v6320
        %v6387 = vadd.f32 %v236, %v6323
        %v6388 = vadd.f32 %v237, %v6325
        %v6389 = vadd.f32 %v238, %v6328
        %v6390 = vadd.f32 %v239, %v6330
        %v6391 = vadd.f32 %v240, %v6333
        %v6392 = vadd.f32 %v241, %v6335
        %v6393 = vadd.f32 %v242, %v6338
        %v6394 = vadd.f32 %v243, %v6340
        %v6395 = vadd.f32 %v244, %v6343
        %v6396 = vadd.f32 %v245, %v6345
        %v6397 = vadd.f32 %v246, %v6348
        %v6398 = vadd.f32 %v247, %v6350
        %v6399 = vadd.f32 %v248, %v6353
        %v6400 = vadd.f32 %v249, %v6355
        %v6401 = vadd.f32 %v250, %v6358
        %v6402 = vadd.f32 %v251, %v6360
        %v6403 = vadd.f32 %v252, %v6363
        %v6404 = vadd.f32 %v253, %v6365
        %v6405 = vadd.f32 %v254, %v6368
        %v6406 = vadd.f32 %v255, %v6370
        %v6407 = vadd.f32 %v256, %v6373
        %v6408 = vadd.f32 %v257, %v6375
        %6409 = vst.msk [vmem:[%s217] sm:$0xff] %vm2267, %v6377
        %6410 = vst.msk [vmem:[%s217 + $0x8] sm:$0xff] %vm2267, %v6378
        %6411 = vst.msk [vmem:[%s217 + $0x10] sm:$0xff] %vm2267, %v6379
        %6412 = vst.msk [vmem:[%s217 + $0x18] sm:$0xff] %vm2267, %v6380
        %6413 = vst.msk [vmem:[%s217 + $0x20] sm:$0xff] %vm2267, %v6381
        %6414 = vst.msk [vmem:[%s217 + $0x28] sm:$0xff] %vm2267, %v6382
        %6415 = vst.msk [vmem:[%s217 + $0x30] sm:$0xff] %vm2267, %v6383
        %6416 = vst.msk [vmem:[%s217 + $0x38] sm:$0xff] %vm2267, %v6384
        %6417 = vst.msk [vmem:[%s217 + $0x40] sm:$0xff] %vm2267, %v6385
        %6418 = vst.msk [vmem:[%s217 + $0x48] sm:$0xff] %vm2267, %v6386
        %6419 = vst.msk [vmem:[%s217 + $0x50] sm:$0xff] %vm2267, %v6387
        %6420 = vst.msk [vmem:[%s217 + $0x58] sm:$0xff] %vm2267, %v6388
        %6421 = vst.msk [vmem:[%s217 + $0x60] sm:$0xff] %vm2267, %v6389
        %6422 = vst.msk [vmem:[%s217 + $0x68] sm:$0xff] %vm2267, %v6390
        %6423 = vst.msk [vmem:[%s217 + $0x70] sm:$0xff] %vm2267, %v6391
        %6424 = vst.msk [vmem:[%s217 + $0x78] sm:$0xff] %vm2267, %v6392
        %6425 = vst.msk [vmem:[%s217 + $0x80] sm:$0xff] %vm2267, %v6393
        %6426 = vst.msk [vmem:[%s217 + $0x88] sm:$0xff] %vm2267, %v6394
        %6427 = vst.msk [vmem:[%s217 + $0x90] sm:$0xff] %vm2267, %v6395
        %6428 = vst.msk [vmem:[%s217 + $0x98] sm:$0xff] %vm2267, %v6396
        %6429 = vst.msk [vmem:[%s217 + $0xa0] sm:$0xff] %vm2267, %v6397
        %6430 = vst.msk [vmem:[%s217 + $0xa8] sm:$0xff] %vm2267, %v6398
        %6431 = vst.msk [vmem:[%s217 + $0xb0] sm:$0xff] %vm2267, %v6399
        %6432 = vst.msk [vmem:[%s217 + $0xb8] sm:$0xff] %vm2267, %v6400
        %6433 = vst.msk [vmem:[%s217 + $0xc0] sm:$0xff] %vm2267, %v6401
        %6434 = vst.msk [vmem:[%s217 + $0xc8] sm:$0xff] %vm2267, %v6402
        %6435 = vst.msk [vmem:[%s217 + $0xd0] sm:$0xff] %vm2267, %v6403
        %6436 = vst.msk [vmem:[%s217 + $0xd8] sm:$0xff] %vm2267, %v6404
        %6437 = vst.msk [vmem:[%s217 + $0xe0] sm:$0xff] %vm2267, %v6405
        %6438 = vst.msk [vmem:[%s217 + $0xe8] sm:$0xff] %vm2267, %v6406
        %6439 = vst.msk [vmem:[%s217 + $0xf0] sm:$0xff] %vm2267, %v6407
        %6440 = vst.msk [vmem:[%s217 + $0xf8] sm:$0xff] %vm2267, %v6408
        %s6441 = sand.u32 %s137, 1
        %s6442 = scalar_lea.sflag [#allocation3], %s6441
        %s6443 = sand.u32 %s137, 1
        %s6444 = smul.addr %s6443, 256
        %s6445 = scalar_lea.vmem [#allocation2], %s6444
        // Predicated region
        $region41: #{shortcut_block_forward.1} parent=39 // pred_check
          %p6446 = pneg %p147
        $region42: #{shortcut_block_forward.1} parent=39 // pred_check_branch
          %6448 = sbr.rel (%p6446) target = $region44
        $region43: #{shortcut_block_forward.1} parent=39 // pred_region
          %6450 = vsyncadd %s6442, 0
          %s6451 = smul.addr %s19, 32
          %s6452 = smul.addr %s6451, 8
          %s6453 = scalar_lea.hbm %s5, %s6452
          %s6454 = sshll.u32 %s6445, 4
          %s6455 = int_to_ptr.vmem [resolvable:$true] %s6454
          %s6456 = sshll.u32 %s6453, 4
          %s6457 = int_to_ptr.hbm [resolvable:$true] %s6456
          %6462 = dma.vmem_to_hbm [thread:$0]  %s6455, 4096, %s6457, %s6442, 128, 128, 8
        $region44: #{shortcut_block_forward.1} parent=39 // pred_fallthru
          _
      $region40: #{shortcut_block_forward.1} parent=5 // pred_fallthru
        _
      %p6463 = scmp.le.s32.totalorder 2, %s14
      // Predicated region
      $region45: #{shortcut_block_forward.1} parent=5 // pred_check
        %p6464 = pneg %p6463
      $region46: #{shortcut_block_forward.1} parent=5 // pred_check_branch
        %6466 = sbr.rel (%p6464) target = $region48
      $region47: #{shortcut_block_forward.1} parent=5 // pred_region
        %s6467 = ssub.s32 %s14, 2
        // Predicated region
        $region49: #{shortcut_block_forward.1} parent=47 // pred_check
          %p6468 = pneg %p153
        $region50: #{shortcut_block_forward.1} parent=47 // pred_check_branch
          %6470 = sbr.rel (%p6468) target = $region52
        $region51: #{shortcut_block_forward.1} parent=47 // pred_region
          %s6471 = sand.u32 %s138, 1
          %s6472 = scalar_lea.sflag [#allocation3], %s6471
          %s6473 = sand.u32 %s138, 1
          %s6474 = smul.addr %s6473, 256
          %s6475 = scalar_lea.vmem [#allocation2], %s6474
          %6477 = dma.done %s6472, 4096
        $region52: #{shortcut_block_forward.1} parent=47 // pred_fallthru
          _
      $region48: #{shortcut_block_forward.1} parent=5 // pred_fallthru
        _
    $region6: #{shortcut_block_forward.1} parent=1 // loop_footer
      %s18 = sadd.s32 1, %s14
    $region7: #{shortcut_block_forward.1} parent=1 // loop_footer_branch
      %13 = sbr.rel target = $region3
    $region8: #{shortcut_block_forward.1} parent=1 // loop_exit
      _
    %6478 = vsyncpa [#allocation3], 1
    %s6479 = scalar_lea.sflag [#allocation3], 1
    %6480 = vsyncpa %s6479, 1

</llo_original>
